<compile_context>
chip_gen: v6e
topology: v6e:2x2x1
jax: 0.10.0
libtpu: 0.0.40
codegen_flags: <defaults>
</compile_context>

<pallas_src>
import functools

import jax
import jax.numpy as jnp
from jax.experimental import pallas as pl
from jax.experimental.pallas import tpu as pltpu


def _round_up(x, m):
    return ((x + m - 1) // m) * m


def _pick_time_chunk(seq, target):
    """Largest divisor of `seq` that is <= target (keeps the chunk loop exact)."""
    tc = 1
    for d in range(1, min(seq, target) + 1):
        if seq % d == 0:
            tc = d
    return tc


# -----------------------------------------------------------------------------
# Fused kernel builder: per-chunk (all layers) LSTM recurrence + residual head.
# -----------------------------------------------------------------------------
def _make_fused_kernel(num_layers, tc, b_pad, h_pad, num_chunks):
    def kernel(*refs):
        # ---- unpack refs ----------------------------------------------------
        x_ref = refs[0]                                   # (Tc*Bp, Ip) bf16, time-major
        n_lyr = 3 * num_layers
        lyr = refs[1:1 + n_lyr]                           # per layer: wih, whh, bias
        wproj_ref, bproj_ref, wfc_ref, bfc_ref = refs[1 + n_lyr:5 + n_lyr]
        out_ref = refs[5 + n_lyr]                         # (Bp, Op) f32
        gx_ref, hseq_ref, state_ref = refs[6 + n_lyr:]
        # gx_ref   : (Tc*Bp, 4Hp) f32   pre-projected gates for this chunk
        # hseq_ref : (Tc*Bp, Hp)  bf16  layer output (next layer's input)
        # state_ref: (2*L, Bp, Hp) f32  persistent per-layer (h, c)

        chunk = pl.program_id(0)

        @pl.when(chunk == 0)
        def _init():
            state_ref[...] = jnp.zeros_like(state_ref)

        h_top = None
        for layer in range(num_layers):
            wih_ref = lyr[3 * layer + 0]                  # (in_pad, 4Hp) bf16
            whh_ref = lyr[3 * layer + 1]                  # (Hp, 4Hp)     bf16
            b_ref = lyr[3 * layer + 2]                    # (1, 4Hp)      f32

            # Hoisted input projection for the whole chunk: one MXU matmul.
            inp = x_ref[...] if layer == 0 else hseq_ref[...]     # bf16
            gx_ref[...] = (
                jnp.dot(inp, wih_ref[...], preferred_element_type=jnp.float32)
                + b_ref[...]
            )                                             # (Tc*Bp, 4Hp) f32

            # h/c carried as values through the chunk (no per-step VMEM refs).
            h = state_ref[2 * layer + 0]                  # (Bp, Hp) f32
            c = state_ref[2 * layer + 1]

            for t in range(tc):                           # chunk-bounded unroll
                row = t * b_pad
                gates = gx_ref[pl.ds(row, b_pad), :] + jnp.dot(
                    h.astype(jnp.bfloat16), whh_ref[...],
                    preferred_element_type=jnp.float32)   # (Bp, 4Hp) f32

                # Packed gate order [i, f, o, g]: one wide sigmoid, one tanh.
                ifo = jax.nn.sigmoid(gates[:, :3 * h_pad])
                g = jnp.tanh(gates[:, 3 * h_pad:])
                c = ifo[:, h_pad:2 * h_pad] * c + ifo[:, :h_pad] * g
                h = ifo[:, 2 * h_pad:] * jnp.tanh(c)

                hseq_ref[pl.ds(row, b_pad), :] = h.astype(jnp.bfloat16)

            state_ref[2 * layer + 0] = h
            state_ref[2 * layer + 1] = c
            h_top = h                                      # top layer's final h

        # ---- residual head on the final chunk --------------------------------
        @pl.when(chunk == num_chunks - 1)
        def _head():
            # TODO(synk): dropout(0.3) on h_T omitted (identity in eval mode).
            x_last = x_ref[pl.ds((tc - 1) * b_pad, b_pad), :]     # (Bp, Ip) bf16
            resid = (
                h_top
                + jnp.dot(x_last, wproj_ref[...],
                          preferred_element_type=jnp.float32)
                + bproj_ref[...]
            )                                                      # (Bp, Hp) f32
            out_ref[...] = (
                jnp.dot(resid.astype(jnp.bfloat16), wfc_ref[...],
                        preferred_element_type=jnp.float32)
                + bfc_ref[...]
            )                                                      # (Bp, Op) f32

    return kernel


# -----------------------------------------------------------------------------
# Parameter init (logical, PyTorch-equivalent layout: x @ W) and packing
# (gate reorder [i,f,g,o]->[i,f,o,g], lane/sublane padding, bf16 weights).
# -----------------------------------------------------------------------------
def init_params(key, input_size, hidden_size, num_layers, output_size, n_ahead):
    params = {"lstm": []}
    k = 1.0 / jnp.sqrt(hidden_size)
    for layer in range(num_layers):
        in_dim = input_size if layer == 0 else hidden_size
        key, k1, k2, k3, k4 = jax.random.split(key, 5)
        w_ih = jax.random.uniform(k1, (in_dim, 4 * hidden_size), jnp.float32, -k, k)
        w_hh = jax.random.uniform(k2, (hidden_size, 4 * hidden_size), jnp.float32, -k, k)
        b_ih = jax.random.uniform(k3, (4 * hidden_size,), jnp.float32, -k, k)
        b_hh = jax.random.uniform(k4, (4 * hidden_size,), jnp.float32, -k, k)
        params["lstm"].append(
            {"w_ih": w_ih, "w_hh": w_hh, "b": (b_ih + b_hh).reshape(1, -1)})
    key, k1, k2, k3, k4 = jax.random.split(key, 5)
    kp = 1.0 / jnp.sqrt(input_size)
    params["w_proj"] = jax.random.uniform(
        k1, (input_size, hidden_size), jnp.float32, -kp, kp)
    params["b_proj"] = jax.random.uniform(k2, (1, hidden_size), jnp.float32, -kp, kp)
    kf = 1.0 / jnp.sqrt(hidden_size)
    params["w_fc"] = jax.random.uniform(
        k3, (hidden_size, output_size * n_ahead), jnp.float32, -kf, kf)
    params["b_fc"] = jax.random.uniform(
        k4, (1, output_size * n_ahead), jnp.float32, -kf, kf)
    return params


_GATE_PERM = (0, 1, 3, 2)   # PyTorch [i, f, g, o] -> kernel [i, f, o, g]


def _pack_gate_cols(w, h, h_pad):
    """Reorder gate blocks to [i,f,o,g] and pad each to h_pad lanes."""
    rows = w.shape[0]
    w = w.reshape(rows, 4, h)[:, _GATE_PERM, :]
    w = jnp.pad(w, ((0, 0), (0, 0), (0, h_pad - h)))
    return w.reshape(rows, 4 * h_pad)


def pack_params(params, input_size, hidden_size):
    """Pad gate blocks to 128-lane multiples, pad contraction dims, reorder
    gates, and cast matmul weights to bf16 (biases stay f32).  Zero padding of
    the weight columns keeps padded hidden lanes of h/c exactly zero."""
    h = hidden_size
    hp = _round_up(h, 128)
    ip = _round_up(input_size, 128)

    packed = {"wih": [], "whh": [], "b": []}
    for layer, lp in enumerate(params["lstm"]):
        in_dim = input_size if layer == 0 else h
        in_pad = ip if layer == 0 else hp
        wih = _pack_gate_cols(lp["w_ih"], h, hp)
        wih = jnp.pad(wih, ((0, in_pad - in_dim), (0, 0))).astype(jnp.bfloat16)
        whh = _pack_gate_cols(lp["w_hh"], h, hp)
        whh = jnp.pad(whh, ((0, hp - h), (0, 0))).astype(jnp.bfloat16)
        b = lp["b"].reshape(4, h)[list(_GATE_PERM), :]
        b = jnp.pad(b, ((0, 0), (0, hp - h))).reshape(1, 4 * hp).astype(jnp.float32)
        packed["wih"].append(wih)
        packed["whh"].append(whh)
        packed["b"].append(b)

    out_dim = params["w_fc"].shape[1]
    op = _round_up(out_dim, 128)
    packed["wproj"] = jnp.pad(
        params["w_proj"], ((0, ip - input_size), (0, hp - h))).astype(jnp.bfloat16)
    packed["bproj"] = jnp.pad(
        params["b_proj"], ((0, 0), (0, hp - h))).astype(jnp.float32)
    packed["wfc"] = jnp.pad(
        params["w_fc"], ((0, hp - h), (0, op - out_dim))).astype(jnp.bfloat16)
    packed["bfc"] = jnp.pad(
        params["b_fc"], ((0, 0), (0, op - out_dim))).astype(jnp.float32)
    return packed


# -----------------------------------------------------------------------------
# Full module forward
# -----------------------------------------------------------------------------
@functools.partial(jax.jit,
                   static_argnames=("output_size", "n_ahead", "time_chunk"))
def residual_lstm_forward(x, packed, *, output_size, n_ahead, time_chunk=8):
    """x: (batch, seq, input_size) -> (batch, n_ahead, output_size)."""
    B, seq, in_dim = x.shape
    num_layers = len(packed["wih"])
    ip = packed["wih"][0].shape[0]          # padded input feature dim
    hp = packed["whh"][0].shape[0]          # padded hidden dim
    op = packed["wfc"].shape[1]             # padded fc output dim
    bp = _round_up(B, 16)                   # bf16 min sublane tile = 16

    tc = _pick_time_chunk(seq, time_chunk)
    num_chunks = seq // tc

    # time-major, pad batch/features, flatten to (seq*Bp, Ip) bf16.
    xt = jnp.transpose(x, (1, 0, 2))
    xt = jnp.pad(xt, ((0, 0), (0, bp - B), (0, ip - in_dim)))
    xt = xt.reshape(seq * bp, ip).astype(jnp.bfloat16)

    flat_inputs = [xt]
    in_specs = [pl.BlockSpec((tc * bp, ip), lambda c: (c, 0))]
    for l in range(num_layers):
        wih, whh, b = packed["wih"][l], packed["whh"][l], packed["b"][l]
        flat_inputs += [wih, whh, b]
        in_specs += [pl.BlockSpec(wih.shape, lambda c: (0, 0)),
                     pl.BlockSpec(whh.shape, lambda c: (0, 0)),
                     pl.BlockSpec(b.shape, lambda c: (0, 0))]
    for name in ("wproj", "bproj", "wfc", "bfc"):
        flat_inputs.append(packed[name])
        in_specs.append(pl.BlockSpec(packed[name].shape, lambda c: (0, 0)))

    # ---- VMEM budget + cost estimate ----------------------------------------
    scratch_bytes = (tc * bp * 4 * hp * 4        # gx (f32)
                     + tc * bp * hp * 2          # hseq (bf16)
                     + 2 * num_layers * bp * hp * 4)
    weight_bytes = sum(int(a.size) * a.dtype.itemsize for a in flat_inputs[1:])
    stream_bytes = 2 * tc * bp * ip * 2 + 2 * bp * op * 4   # x double-buffer + out
    vmem_limit = min(100 << 20,
                     max(32 << 20, 2 * (scratch_bytes + weight_bytes + stream_bytes)))

    flops = 0
    for l in range(num_layers):
        in_d = ip if l == 0 else hp
        flops += 2 * seq * bp * in_d * 4 * hp    # input projection
        flops += 2 * seq * bp * hp * 4 * hp      # recurrence
    flops += 2 * bp * ip * hp + 2 * bp * hp * op
    cost = pl.CostEstimate(
        flops=int(flops),
        transcendentals=int(num_layers * seq * bp * 5 * hp),
        bytes_accessed=int(xt.size * 2 + weight_bytes + bp * op * 4))

    kernel = _make_fused_kernel(num_layers, tc, bp, hp, num_chunks)
    out = pl.pallas_call(
        kernel,
        out_shape=jax.ShapeDtypeStruct((bp, op), jnp.float32),
        grid_spec=pltpu.PrefetchScalarGridSpec(
            num_scalar_prefetch=0,
            grid=(num_chunks,),
            in_specs=in_specs,
            out_specs=pl.BlockSpec((bp, op), lambda c: (0, 0)),
            scratch_shapes=[
                pltpu.VMEM((tc * bp, 4 * hp), jnp.float32),        # gx (chunk)
                pltpu.VMEM((tc * bp, hp), jnp.bfloat16),           # hseq (chunk)
                pltpu.VMEM((2 * num_layers, bp, hp), jnp.float32),  # (h, c) state
            ]),
        compiler_params=pltpu.CompilerParams(
            dimension_semantics=("arbitrary",),
            vmem_limit_bytes=int(vmem_limit)),
        cost_estimate=cost,
    )(*flat_inputs)

    out_total = output_size * n_ahead
    return out[:B, :out_total].reshape(B, n_ahead, output_size)


if __name__ == "__main__":
    batch, seq = 2, 8
    input_size, hidden_size, num_layers = 4, 32, 2
    output_size, n_ahead = 3, 2

    key = jax.random.PRNGKey(0)
    key, pkey, xkey = jax.random.split(key, 3)
    params = init_params(pkey, input_size, hidden_size, num_layers,
                         output_size, n_ahead)
    packed = pack_params(params, input_size, hidden_size)
    x = jax.random.normal(xkey, (batch, seq, input_size), jnp.float32)

    # time_chunk=4 -> 2 chunks: exercises the cross-chunk (h, c) state carry.
    out = residual_lstm_forward(x, packed, output_size=output_size,
                                n_ahead=n_ahead, time_chunk=4)
    out = jax.block_until_ready(out)
    assert out.shape == (batch, n_ahead, output_size), out.shape
    print("KERNEL_OK")
</pallas_src>

<mosaic_0001>
module attributes {stable_mosaic.version = 11 : i64} {
  func.func @kernel(%arg0: i32, %arg1: memref<64x128xbf16, #tpu.memory_space<vmem>>, %arg2: memref<128x512xbf16, #tpu.memory_space<vmem>>, %arg3: memref<128x512xbf16, #tpu.memory_space<vmem>>, %arg4: memref<1x512xf32, #tpu.memory_space<vmem>>, %arg5: memref<128x512xbf16, #tpu.memory_space<vmem>>, %arg6: memref<128x512xbf16, #tpu.memory_space<vmem>>, %arg7: memref<1x512xf32, #tpu.memory_space<vmem>>, %arg8: memref<128x128xbf16, #tpu.memory_space<vmem>>, %arg9: memref<1x128xf32, #tpu.memory_space<vmem>>, %arg10: memref<128x128xbf16, #tpu.memory_space<vmem>>, %arg11: memref<1x128xf32, #tpu.memory_space<vmem>>, %arg12: memref<16x128xf32, #tpu.memory_space<vmem>>, %arg13: memref<64x512xf32, #tpu.memory_space<vmem>>, %arg14: memref<64x128xbf16, #tpu.memory_space<vmem>>, %arg15: memref<4x16x128xf32, #tpu.memory_space<vmem>>) attributes {dimension_semantics = [#tpu.dimension_semantics<arbitrary>], iteration_bounds = array<i64: 2>, scalar_prefetch = 0 : i64, scratch_operands = 3 : i64, tpu.core_type = #tpu.core_type<tc>, window_params = [{transform_indices = @transform_0, window_bounds = array<i64: 64, 128>}, {pipeline_mode = #tpu.pipeline_mode<synchronous>, transform_indices = @transform_1, window_bounds = array<i64: 128, 512>}, {pipeline_mode = #tpu.pipeline_mode<synchronous>, transform_indices = @transform_2, window_bounds = array<i64: 128, 512>}, {pipeline_mode = #tpu.pipeline_mode<synchronous>, transform_indices = @transform_3, window_bounds = array<i64: 1, 512>}, {pipeline_mode = #tpu.pipeline_mode<synchronous>, transform_indices = @transform_4, window_bounds = array<i64: 128, 512>}, {pipeline_mode = #tpu.pipeline_mode<synchronous>, transform_indices = @transform_5, window_bounds = array<i64: 128, 512>}, {pipeline_mode = #tpu.pipeline_mode<synchronous>, transform_indices = @transform_6, window_bounds = array<i64: 1, 512>}, {pipeline_mode = #tpu.pipeline_mode<synchronous>, transform_indices = @transform_7, window_bounds = array<i64: 128, 128>}, {pipeline_mode = #tpu.pipeline_mode<synchronous>, transform_indices = @transform_8, window_bounds = array<i64: 1, 128>}, {pipeline_mode = #tpu.pipeline_mode<synchronous>, transform_indices = @transform_9, window_bounds = array<i64: 128, 128>}, {pipeline_mode = #tpu.pipeline_mode<synchronous>, transform_indices = @transform_10, window_bounds = array<i64: 1, 128>}, {pipeline_mode = #tpu.pipeline_mode<synchronous>, transform_indices = @transform_11, window_bounds = array<i64: 16, 128>}]} {
    %c0_i32 = arith.constant 0 : i32
    %0 = arith.cmpi eq, %arg0, %c0_i32 : i32
    %1 = arith.extui %0 : i1 to i32
    %c0_i32_0 = arith.constant 0 : i32
    %2 = arith.cmpi ne, %1, %c0_i32_0 : i32
    scf.if %2 {
      %cst_100 = arith.constant 0.000000e+00 : f32
      %224 = vector.broadcast %cst_100 : f32 to vector<4x16x128xf32>
      %c0_101 = arith.constant 0 : index
      %c0_102 = arith.constant 0 : index
      %c0_103 = arith.constant 0 : index
      %225 = vector.load %arg15[%c0_101, %c0_102, %c0_103] : memref<4x16x128xf32, #tpu.memory_space<vmem>>, vector<4x16x128xf32>
      tpu.vector_store %arg15[%c0_101, %c0_102, %c0_103], %224 {strides = array<i32>} : memref<4x16x128xf32, #tpu.memory_space<vmem>>, vector<4x16x128xf32>,
    } else {
    }
    %c0 = arith.constant 0 : index
    %c0_1 = arith.constant 0 : index
    %3 = vector.load %arg1[%c0, %c0_1] : memref<64x128xbf16, #tpu.memory_space<vmem>>, vector<64x128xbf16>
    %c0_2 = arith.constant 0 : index
    %c0_3 = arith.constant 0 : index
    %4 = vector.load %arg2[%c0_2, %c0_3] : memref<128x512xbf16, #tpu.memory_space<vmem>>, vector<128x512xbf16>
    %cst = arith.constant dense<0.000000e+00> : vector<64x512xf32>
    %5 = tpu.matmul %3, %4, %cst {dimension_numbers = #tpu.dot_dimension_numbers<[1], [0], [0], [1], [0, 0, 1, 1], [], []>} : vector<64x128xbf16>, vector<128x512xbf16>, vector<64x512xf32> -> vector<64x512xf32>
    %c0_4 = arith.constant 0 : index
    %c0_5 = arith.constant 0 : index
    %6 = vector.load %arg4[%c0_4, %c0_5] : memref<1x512xf32, #tpu.memory_space<vmem>>, vector<1x512xf32>
    %7 = vector.broadcast %6 : vector<1x512xf32> to vector<64x512xf32>
    %8 = arith.addf %5, %7 : vector<64x512xf32>
    %c0_6 = arith.constant 0 : index
    %c0_7 = arith.constant 0 : index
    %9 = vector.load %arg13[%c0_6, %c0_7] : memref<64x512xf32, #tpu.memory_space<vmem>>, vector<64x512xf32>
    tpu.vector_store %arg13[%c0_6, %c0_7], %8 {strides = array<i32>} : memref<64x512xf32, #tpu.memory_space<vmem>>, vector<64x512xf32>,
    %c0_8 = arith.constant 0 : index
    %c0_9 = arith.constant 0 : index
    %c0_10 = arith.constant 0 : index
    %10 = vector.load %arg15[%c0_8, %c0_9, %c0_10] : memref<4x16x128xf32, #tpu.memory_space<vmem>>, vector<1x16x128xf32>
    %11 = vector.shape_cast %10 : vector<1x16x128xf32> to vector<16x128xf32>
    %c1 = arith.constant 1 : index
    %c0_11 = arith.constant 0 : index
    %c0_12 = arith.constant 0 : index
    %12 = vector.load %arg15[%c1, %c0_11, %c0_12] : memref<4x16x128xf32, #tpu.memory_space<vmem>>, vector<1x16x128xf32>
    %13 = vector.shape_cast %12 : vector<1x16x128xf32> to vector<16x128xf32>
    %c0_13 = arith.constant 0 : index
    %c0_14 = arith.constant 0 : index
    %14 = vector.load %arg13[%c0_13, %c0_14] : memref<64x512xf32, #tpu.memory_space<vmem>>, vector<16x512xf32>
    %15 = arith.truncf %11 : vector<16x128xf32> to vector<16x128xbf16>
    %c0_15 = arith.constant 0 : index
    %c0_16 = arith.constant 0 : index
    %16 = vector.load %arg3[%c0_15, %c0_16] : memref<128x512xbf16, #tpu.memory_space<vmem>>, vector<128x512xbf16>
    %cst_17 = arith.constant dense<0.000000e+00> : vector<16x512xf32>
    %17 = tpu.matmul %15, %16, %cst_17 {dimension_numbers = #tpu.dot_dimension_numbers<[1], [0], [0], [1], [0, 0, 1, 1], [], []>} : vector<16x128xbf16>, vector<128x512xbf16>, vector<16x512xf32> -> vector<16x512xf32>
    %18 = arith.addf %14, %17 : vector<16x512xf32>
    %19 = vector.extract_strided_slice %18 {offsets = [0, 0], sizes = [16, 384], strides = [1, 1]} : vector<16x512xf32> to vector<16x384xf32>
    %20 = arith.negf %19 : vector<16x384xf32>
    %21 = math.exp %20 : vector<16x384xf32>
    %cst_18 = arith.constant 1.000000e+00 : f32
    %22 = vector.broadcast %cst_18 : f32 to vector<16x384xf32>
    %23 = arith.addf %22, %21 : vector<16x384xf32>
    %24 = arith.divf %22, %23 : vector<16x384xf32>
    %25 = vector.extract_strided_slice %18 {offsets = [0, 384], sizes = [16, 128], strides = [1, 1]} : vector<16x512xf32> to vector<16x128xf32>
    %26 = math.tanh %25 : vector<16x128xf32>
    %27 = vector.extract_strided_slice %24 {offsets = [0, 128], sizes = [16, 128], strides = [1, 1]} : vector<16x384xf32> to vector<16x128xf32>
    %28 = arith.mulf %27, %13 : vector<16x128xf32>
    %29 = vector.extract_strided_slice %24 {offsets = [0, 0], sizes = [16, 128], strides = [1, 1]} : vector<16x384xf32> to vector<16x128xf32>
    %30 = arith.mulf %29, %26 : vector<16x128xf32>
    %31 = arith.addf %28, %30 : vector<16x128xf32>
    %32 = vector.extract_strided_slice %24 {offsets = [0, 256], sizes = [16, 128], strides = [1, 1]} : vector<16x384xf32> to vector<16x128xf32>
    %33 = math.tanh %31 : vector<16x128xf32>
    %34 = arith.mulf %32, %33 : vector<16x128xf32>
    %35 = arith.truncf %34 : vector<16x128xf32> to vector<16x128xbf16>
    %c0_19 = arith.constant 0 : index
    %c0_20 = arith.constant 0 : index
    %36 = vector.load %arg14[%c0_19, %c0_20] : memref<64x128xbf16, #tpu.memory_space<vmem>>, vector<16x128xbf16>
    tpu.vector_store %arg14[%c0_19, %c0_20], %35 {strides = array<i32>} : memref<64x128xbf16, #tpu.memory_space<vmem>>, vector<16x128xbf16>,
    %c16 = arith.constant 16 : index
    %c0_21 = arith.constant 0 : index
    %37 = vector.load %arg13[%c16, %c0_21] : memref<64x512xf32, #tpu.memory_space<vmem>>, vector<16x512xf32>
    %38 = arith.truncf %34 : vector<16x128xf32> to vector<16x128xbf16>
    %c0_22 = arith.constant 0 : index
    %c0_23 = arith.constant 0 : index
    %39 = vector.load %arg3[%c0_22, %c0_23] : memref<128x512xbf16, #tpu.memory_space<vmem>>, vector<128x512xbf16>
    %cst_24 = arith.constant dense<0.000000e+00> : vector<16x512xf32>
    %40 = tpu.matmul %38, %39, %cst_24 {dimension_numbers = #tpu.dot_dimension_numbers<[1], [0], [0], [1], [0, 0, 1, 1], [], []>} : vector<16x128xbf16>, vector<128x512xbf16>, vector<16x512xf32> -> vector<16x512xf32>
    %41 = arith.addf %37, %40 : vector<16x512xf32>
    %42 = vector.extract_strided_slice %41 {offsets = [0, 0], sizes = [16, 384], strides = [1, 1]} : vector<16x512xf32> to vector<16x384xf32>
    %43 = arith.negf %42 : vector<16x384xf32>
    %44 = math.exp %43 : vector<16x384xf32>
    %cst_25 = arith.constant 1.000000e+00 : f32
    %45 = vector.broadcast %cst_25 : f32 to vector<16x384xf32>
    %46 = arith.addf %45, %44 : vector<16x384xf32>
    %47 = arith.divf %45, %46 : vector<16x384xf32>
    %48 = vector.extract_strided_slice %41 {offsets = [0, 384], sizes = [16, 128], strides = [1, 1]} : vector<16x512xf32> to vector<16x128xf32>
    %49 = math.tanh %48 : vector<16x128xf32>
    %50 = vector.extract_strided_slice %47 {offsets = [0, 128], sizes = [16, 128], strides = [1, 1]} : vector<16x384xf32> to vector<16x128xf32>
    %51 = arith.mulf %50, %31 : vector<16x128xf32>
    %52 = vector.extract_strided_slice %47 {offsets = [0, 0], sizes = [16, 128], strides = [1, 1]} : vector<16x384xf32> to vector<16x128xf32>
    %53 = arith.mulf %52, %49 : vector<16x128xf32>
    %54 = arith.addf %51, %53 : vector<16x128xf32>
    %55 = vector.extract_strided_slice %47 {offsets = [0, 256], sizes = [16, 128], strides = [1, 1]} : vector<16x384xf32> to vector<16x128xf32>
    %56 = math.tanh %54 : vector<16x128xf32>
    %57 = arith.mulf %55, %56 : vector<16x128xf32>
    %58 = arith.truncf %57 : vector<16x128xf32> to vector<16x128xbf16>
    %c16_26 = arith.constant 16 : index
    %c0_27 = arith.constant 0 : index
    %59 = vector.load %arg14[%c16_26, %c0_27] : memref<64x128xbf16, #tpu.memory_space<vmem>>, vector<16x128xbf16>
    tpu.vector_store %arg14[%c16_26, %c0_27], %58 {strides = array<i32>} : memref<64x128xbf16, #tpu.memory_space<vmem>>, vector<16x128xbf16>,
    %c32 = arith.constant 32 : index
    %c0_28 = arith.constant 0 : index
    %60 = vector.load %arg13[%c32, %c0_28] : memref<64x512xf32, #tpu.memory_space<vmem>>, vector<16x512xf32>
    %61 = arith.truncf %57 : vector<16x128xf32> to vector<16x128xbf16>
    %c0_29 = arith.constant 0 : index
    %c0_30 = arith.constant 0 : index
    %62 = vector.load %arg3[%c0_29, %c0_30] : memref<128x512xbf16, #tpu.memory_space<vmem>>, vector<128x512xbf16>
    %cst_31 = arith.constant dense<0.000000e+00> : vector<16x512xf32>
    %63 = tpu.matmul %61, %62, %cst_31 {dimension_numbers = #tpu.dot_dimension_numbers<[1], [0], [0], [1], [0, 0, 1, 1], [], []>} : vector<16x128xbf16>, vector<128x512xbf16>, vector<16x512xf32> -> vector<16x512xf32>
    %64 = arith.addf %60, %63 : vector<16x512xf32>
    %65 = vector.extract_strided_slice %64 {offsets = [0, 0], sizes = [16, 384], strides = [1, 1]} : vector<16x512xf32> to vector<16x384xf32>
    %66 = arith.negf %65 : vector<16x384xf32>
    %67 = math.exp %66 : vector<16x384xf32>
    %cst_32 = arith.constant 1.000000e+00 : f32
    %68 = vector.broadcast %cst_32 : f32 to vector<16x384xf32>
    %69 = arith.addf %68, %67 : vector<16x384xf32>
    %70 = arith.divf %68, %69 : vector<16x384xf32>
    %71 = vector.extract_strided_slice %64 {offsets = [0, 384], sizes = [16, 128], strides = [1, 1]} : vector<16x512xf32> to vector<16x128xf32>
    %72 = math.tanh %71 : vector<16x128xf32>
    %73 = vector.extract_strided_slice %70 {offsets = [0, 128], sizes = [16, 128], strides = [1, 1]} : vector<16x384xf32> to vector<16x128xf32>
    %74 = arith.mulf %73, %54 : vector<16x128xf32>
    %75 = vector.extract_strided_slice %70 {offsets = [0, 0], sizes = [16, 128], strides = [1, 1]} : vector<16x384xf32> to vector<16x128xf32>
    %76 = arith.mulf %75, %72 : vector<16x128xf32>
    %77 = arith.addf %74, %76 : vector<16x128xf32>
    %78 = vector.extract_strided_slice %70 {offsets = [0, 256], sizes = [16, 128], strides = [1, 1]} : vector<16x384xf32> to vector<16x128xf32>
    %79 = math.tanh %77 : vector<16x128xf32>
    %80 = arith.mulf %78, %79 : vector<16x128xf32>
    %81 = arith.truncf %80 : vector<16x128xf32> to vector<16x128xbf16>
    %c32_33 = arith.constant 32 : index
    %c0_34 = arith.constant 0 : index
    %82 = vector.load %arg14[%c32_33, %c0_34] : memref<64x128xbf16, #tpu.memory_space<vmem>>, vector<16x128xbf16>
    tpu.vector_store %arg14[%c32_33, %c0_34], %81 {strides = array<i32>} : memref<64x128xbf16, #tpu.memory_space<vmem>>, vector<16x128xbf16>,
    %c48 = arith.constant 48 : index
    %c0_35 = arith.constant 0 : index
    %83 = vector.load %arg13[%c48, %c0_35] : memref<64x512xf32, #tpu.memory_space<vmem>>, vector<16x512xf32>
    %84 = arith.truncf %80 : vector<16x128xf32> to vector<16x128xbf16>
    %c0_36 = arith.constant 0 : index
    %c0_37 = arith.constant 0 : index
    %85 = vector.load %arg3[%c0_36, %c0_37] : memref<128x512xbf16, #tpu.memory_space<vmem>>, vector<128x512xbf16>
    %cst_38 = arith.constant dense<0.000000e+00> : vector<16x512xf32>
    %86 = tpu.matmul %84, %85, %cst_38 {dimension_numbers = #tpu.dot_dimension_numbers<[1], [0], [0], [1], [0, 0, 1, 1], [], []>} : vector<16x128xbf16>, vector<128x512xbf16>, vector<16x512xf32> -> vector<16x512xf32>
    %87 = arith.addf %83, %86 : vector<16x512xf32>
    %88 = vector.extract_strided_slice %87 {offsets = [0, 0], sizes = [16, 384], strides = [1, 1]} : vector<16x512xf32> to vector<16x384xf32>
    %89 = arith.negf %88 : vector<16x384xf32>
    %90 = math.exp %89 : vector<16x384xf32>
    %cst_39 = arith.constant 1.000000e+00 : f32
    %91 = vector.broadcast %cst_39 : f32 to vector<16x384xf32>
    %92 = arith.addf %91, %90 : vector<16x384xf32>
    %93 = arith.divf %91, %92 : vector<16x384xf32>
    %94 = vector.extract_strided_slice %87 {offsets = [0, 384], sizes = [16, 128], strides = [1, 1]} : vector<16x512xf32> to vector<16x128xf32>
    %95 = math.tanh %94 : vector<16x128xf32>
    %96 = vector.extract_strided_slice %93 {offsets = [0, 128], sizes = [16, 128], strides = [1, 1]} : vector<16x384xf32> to vector<16x128xf32>
    %97 = arith.mulf %96, %77 : vector<16x128xf32>
    %98 = vector.extract_strided_slice %93 {offsets = [0, 0], sizes = [16, 128], strides = [1, 1]} : vector<16x384xf32> to vector<16x128xf32>
    %99 = arith.mulf %98, %95 : vector<16x128xf32>
    %100 = arith.addf %97, %99 : vector<16x128xf32>
    %101 = vector.extract_strided_slice %93 {offsets = [0, 256], sizes = [16, 128], strides = [1, 1]} : vector<16x384xf32> to vector<16x128xf32>
    %102 = math.tanh %100 : vector<16x128xf32>
    %103 = arith.mulf %101, %102 : vector<16x128xf32>
    %104 = arith.truncf %103 : vector<16x128xf32> to vector<16x128xbf16>
    %c48_40 = arith.constant 48 : index
    %c0_41 = arith.constant 0 : index
    %105 = vector.load %arg14[%c48_40, %c0_41] : memref<64x128xbf16, #tpu.memory_space<vmem>>, vector<16x128xbf16>
    tpu.vector_store %arg14[%c48_40, %c0_41], %104 {strides = array<i32>} : memref<64x128xbf16, #tpu.memory_space<vmem>>, vector<16x128xbf16>,
    %c0_42 = arith.constant 0 : index
    %c0_43 = arith.constant 0 : index
    %c0_44 = arith.constant 0 : index
    %106 = vector.load %arg15[%c0_42, %c0_43, %c0_44] : memref<4x16x128xf32, #tpu.memory_space<vmem>>, vector<1x16x128xf32>
    %107 = vector.shape_cast %106 : vector<1x16x128xf32> to vector<16x128xf32>
    %108 = vector.shape_cast %103 : vector<16x128xf32> to vector<1x16x128xf32>
    tpu.vector_store %arg15[%c0_42, %c0_43, %c0_44], %108 {strides = array<i32>} : memref<4x16x128xf32, #tpu.memory_space<vmem>>, vector<1x16x128xf32>,
    %c1_45 = arith.constant 1 : index
    %c0_46 = arith.constant 0 : index
    %c0_47 = arith.constant 0 : index
    %109 = vector.load %arg15[%c1_45, %c0_46, %c0_47] : memref<4x16x128xf32, #tpu.memory_space<vmem>>, vector<1x16x128xf32>
    %110 = vector.shape_cast %109 : vector<1x16x128xf32> to vector<16x128xf32>
    %111 = vector.shape_cast %100 : vector<16x128xf32> to vector<1x16x128xf32>
    tpu.vector_store %arg15[%c1_45, %c0_46, %c0_47], %111 {strides = array<i32>} : memref<4x16x128xf32, #tpu.memory_space<vmem>>, vector<1x16x128xf32>,
    %c0_48 = arith.constant 0 : index
    %c0_49 = arith.constant 0 : index
    %112 = vector.load %arg14[%c0_48, %c0_49] : memref<64x128xbf16, #tpu.memory_space<vmem>>, vector<64x128xbf16>
    %c0_50 = arith.constant 0 : index
    %c0_51 = arith.constant 0 : index
    %113 = vector.load %arg5[%c0_50, %c0_51] : memref<128x512xbf16, #tpu.memory_space<vmem>>, vector<128x512xbf16>
    %cst_52 = arith.constant dense<0.000000e+00> : vector<64x512xf32>
    %114 = tpu.matmul %112, %113, %cst_52 {dimension_numbers = #tpu.dot_dimension_numbers<[1], [0], [0], [1], [0, 0, 1, 1], [], []>} : vector<64x128xbf16>, vector<128x512xbf16>, vector<64x512xf32> -> vector<64x512xf32>
    %c0_53 = arith.constant 0 : index
    %c0_54 = arith.constant 0 : index
    %115 = vector.load %arg7[%c0_53, %c0_54] : memref<1x512xf32, #tpu.memory_space<vmem>>, vector<1x512xf32>
    %116 = vector.broadcast %115 : vector<1x512xf32> to vector<64x512xf32>
    %117 = arith.addf %114, %116 : vector<64x512xf32>
    %c0_55 = arith.constant 0 : index
    %c0_56 = arith.constant 0 : index
    %118 = vector.load %arg13[%c0_55, %c0_56] : memref<64x512xf32, #tpu.memory_space<vmem>>, vector<64x512xf32>
    tpu.vector_store %arg13[%c0_55, %c0_56], %117 {strides = array<i32>} : memref<64x512xf32, #tpu.memory_space<vmem>>, vector<64x512xf32>,
    %c2 = arith.constant 2 : index
    %c0_57 = arith.constant 0 : index
    %c0_58 = arith.constant 0 : index
    %119 = vector.load %arg15[%c2, %c0_57, %c0_58] : memref<4x16x128xf32, #tpu.memory_space<vmem>>, vector<1x16x128xf32>
    %120 = vector.shape_cast %119 : vector<1x16x128xf32> to vector<16x128xf32>
    %c3 = arith.constant 3 : index
    %c0_59 = arith.constant 0 : index
    %c0_60 = arith.constant 0 : index
    %121 = vector.load %arg15[%c3, %c0_59, %c0_60] : memref<4x16x128xf32, #tpu.memory_space<vmem>>, vector<1x16x128xf32>
    %122 = vector.shape_cast %121 : vector<1x16x128xf32> to vector<16x128xf32>
    %c0_61 = arith.constant 0 : index
    %c0_62 = arith.constant 0 : index
    %123 = vector.load %arg13[%c0_61, %c0_62] : memref<64x512xf32, #tpu.memory_space<vmem>>, vector<16x512xf32>
    %124 = arith.truncf %120 : vector<16x128xf32> to vector<16x128xbf16>
    %c0_63 = arith.constant 0 : index
    %c0_64 = arith.constant 0 : index
    %125 = vector.load %arg6[%c0_63, %c0_64] : memref<128x512xbf16, #tpu.memory_space<vmem>>, vector<128x512xbf16>
    %cst_65 = arith.constant dense<0.000000e+00> : vector<16x512xf32>
    %126 = tpu.matmul %124, %125, %cst_65 {dimension_numbers = #tpu.dot_dimension_numbers<[1], [0], [0], [1], [0, 0, 1, 1], [], []>} : vector<16x128xbf16>, vector<128x512xbf16>, vector<16x512xf32> -> vector<16x512xf32>
    %127 = arith.addf %123, %126 : vector<16x512xf32>
    %128 = vector.extract_strided_slice %127 {offsets = [0, 0], sizes = [16, 384], strides = [1, 1]} : vector<16x512xf32> to vector<16x384xf32>
    %129 = arith.negf %128 : vector<16x384xf32>
    %130 = math.exp %129 : vector<16x384xf32>
    %cst_66 = arith.constant 1.000000e+00 : f32
    %131 = vector.broadcast %cst_66 : f32 to vector<16x384xf32>
    %132 = arith.addf %131, %130 : vector<16x384xf32>
    %133 = arith.divf %131, %132 : vector<16x384xf32>
    %134 = vector.extract_strided_slice %127 {offsets = [0, 384], sizes = [16, 128], strides = [1, 1]} : vector<16x512xf32> to vector<16x128xf32>
    %135 = math.tanh %134 : vector<16x128xf32>
    %136 = vector.extract_strided_slice %133 {offsets = [0, 128], sizes = [16, 128], strides = [1, 1]} : vector<16x384xf32> to vector<16x128xf32>
    %137 = arith.mulf %136, %122 : vector<16x128xf32>
    %138 = vector.extract_strided_slice %133 {offsets = [0, 0], sizes = [16, 128], strides = [1, 1]} : vector<16x384xf32> to vector<16x128xf32>
    %139 = arith.mulf %138, %135 : vector<16x128xf32>
    %140 = arith.addf %137, %139 : vector<16x128xf32>
    %141 = vector.extract_strided_slice %133 {offsets = [0, 256], sizes = [16, 128], strides = [1, 1]} : vector<16x384xf32> to vector<16x128xf32>
    %142 = math.tanh %140 : vector<16x128xf32>
    %143 = arith.mulf %141, %142 : vector<16x128xf32>
    %144 = arith.truncf %143 : vector<16x128xf32> to vector<16x128xbf16>
    %c0_67 = arith.constant 0 : index
    %c0_68 = arith.constant 0 : index
    %145 = vector.load %arg14[%c0_67, %c0_68] : memref<64x128xbf16, #tpu.memory_space<vmem>>, vector<16x128xbf16>
    tpu.vector_store %arg14[%c0_67, %c0_68], %144 {strides = array<i32>} : memref<64x128xbf16, #tpu.memory_space<vmem>>, vector<16x128xbf16>,
    %c16_69 = arith.constant 16 : index
    %c0_70 = arith.constant 0 : index
    %146 = vector.load %arg13[%c16_69, %c0_70] : memref<64x512xf32, #tpu.memory_space<vmem>>, vector<16x512xf32>
    %147 = arith.truncf %143 : vector<16x128xf32> to vector<16x128xbf16>
    %c0_71 = arith.constant 0 : index
    %c0_72 = arith.constant 0 : index
    %148 = vector.load %arg6[%c0_71, %c0_72] : memref<128x512xbf16, #tpu.memory_space<vmem>>, vector<128x512xbf16>
    %cst_73 = arith.constant dense<0.000000e+00> : vector<16x512xf32>
    %149 = tpu.matmul %147, %148, %cst_73 {dimension_numbers = #tpu.dot_dimension_numbers<[1], [0], [0], [1], [0, 0, 1, 1], [], []>} : vector<16x128xbf16>, vector<128x512xbf16>, vector<16x512xf32> -> vector<16x512xf32>
    %150 = arith.addf %146, %149 : vector<16x512xf32>
    %151 = vector.extract_strided_slice %150 {offsets = [0, 0], sizes = [16, 384], strides = [1, 1]} : vector<16x512xf32> to vector<16x384xf32>
    %152 = arith.negf %151 : vector<16x384xf32>
    %153 = math.exp %152 : vector<16x384xf32>
    %cst_74 = arith.constant 1.000000e+00 : f32
    %154 = vector.broadcast %cst_74 : f32 to vector<16x384xf32>
    %155 = arith.addf %154, %153 : vector<16x384xf32>
    %156 = arith.divf %154, %155 : vector<16x384xf32>
    %157 = vector.extract_strided_slice %150 {offsets = [0, 384], sizes = [16, 128], strides = [1, 1]} : vector<16x512xf32> to vector<16x128xf32>
    %158 = math.tanh %157 : vector<16x128xf32>
    %159 = vector.extract_strided_slice %156 {offsets = [0, 128], sizes = [16, 128], strides = [1, 1]} : vector<16x384xf32> to vector<16x128xf32>
    %160 = arith.mulf %159, %140 : vector<16x128xf32>
    %161 = vector.extract_strided_slice %156 {offsets = [0, 0], sizes = [16, 128], strides = [1, 1]} : vector<16x384xf32> to vector<16x128xf32>
    %162 = arith.mulf %161, %158 : vector<16x128xf32>
    %163 = arith.addf %160, %162 : vector<16x128xf32>
    %164 = vector.extract_strided_slice %156 {offsets = [0, 256], sizes = [16, 128], strides = [1, 1]} : vector<16x384xf32> to vector<16x128xf32>
    %165 = math.tanh %163 : vector<16x128xf32>
    %166 = arith.mulf %164, %165 : vector<16x128xf32>
    %167 = arith.truncf %166 : vector<16x128xf32> to vector<16x128xbf16>
    %c16_75 = arith.constant 16 : index
    %c0_76 = arith.constant 0 : index
    %168 = vector.load %arg14[%c16_75, %c0_76] : memref<64x128xbf16, #tpu.memory_space<vmem>>, vector<16x128xbf16>
    tpu.vector_store %arg14[%c16_75, %c0_76], %167 {strides = array<i32>} : memref<64x128xbf16, #tpu.memory_space<vmem>>, vector<16x128xbf16>,
    %c32_77 = arith.constant 32 : index
    %c0_78 = arith.constant 0 : index
    %169 = vector.load %arg13[%c32_77, %c0_78] : memref<64x512xf32, #tpu.memory_space<vmem>>, vector<16x512xf32>
    %170 = arith.truncf %166 : vector<16x128xf32> to vector<16x128xbf16>
    %c0_79 = arith.constant 0 : index
    %c0_80 = arith.constant 0 : index
    %171 = vector.load %arg6[%c0_79, %c0_80] : memref<128x512xbf16, #tpu.memory_space<vmem>>, vector<128x512xbf16>
    %cst_81 = arith.constant dense<0.000000e+00> : vector<16x512xf32>
    %172 = tpu.matmul %170, %171, %cst_81 {dimension_numbers = #tpu.dot_dimension_numbers<[1], [0], [0], [1], [0, 0, 1, 1], [], []>} : vector<16x128xbf16>, vector<128x512xbf16>, vector<16x512xf32> -> vector<16x512xf32>
    %173 = arith.addf %169, %172 : vector<16x512xf32>
    %174 = vector.extract_strided_slice %173 {offsets = [0, 0], sizes = [16, 384], strides = [1, 1]} : vector<16x512xf32> to vector<16x384xf32>
    %175 = arith.negf %174 : vector<16x384xf32>
    %176 = math.exp %175 : vector<16x384xf32>
    %cst_82 = arith.constant 1.000000e+00 : f32
    %177 = vector.broadcast %cst_82 : f32 to vector<16x384xf32>
    %178 = arith.addf %177, %176 : vector<16x384xf32>
    %179 = arith.divf %177, %178 : vector<16x384xf32>
    %180 = vector.extract_strided_slice %173 {offsets = [0, 384], sizes = [16, 128], strides = [1, 1]} : vector<16x512xf32> to vector<16x128xf32>
    %181 = math.tanh %180 : vector<16x128xf32>
    %182 = vector.extract_strided_slice %179 {offsets = [0, 128], sizes = [16, 128], strides = [1, 1]} : vector<16x384xf32> to vector<16x128xf32>
    %183 = arith.mulf %182, %163 : vector<16x128xf32>
    %184 = vector.extract_strided_slice %179 {offsets = [0, 0], sizes = [16, 128], strides = [1, 1]} : vector<16x384xf32> to vector<16x128xf32>
    %185 = arith.mulf %184, %181 : vector<16x128xf32>
    %186 = arith.addf %183, %185 : vector<16x128xf32>
    %187 = vector.extract_strided_slice %179 {offsets = [0, 256], sizes = [16, 128], strides = [1, 1]} : vector<16x384xf32> to vector<16x128xf32>
    %188 = math.tanh %186 : vector<16x128xf32>
    %189 = arith.mulf %187, %188 : vector<16x128xf32>
    %190 = arith.truncf %189 : vector<16x128xf32> to vector<16x128xbf16>
    %c32_83 = arith.constant 32 : index
    %c0_84 = arith.constant 0 : index
    %191 = vector.load %arg14[%c32_83, %c0_84] : memref<64x128xbf16, #tpu.memory_space<vmem>>, vector<16x128xbf16>
    tpu.vector_store %arg14[%c32_83, %c0_84], %190 {strides = array<i32>} : memref<64x128xbf16, #tpu.memory_space<vmem>>, vector<16x128xbf16>,
    %c48_85 = arith.constant 48 : index
    %c0_86 = arith.constant 0 : index
    %192 = vector.load %arg13[%c48_85, %c0_86] : memref<64x512xf32, #tpu.memory_space<vmem>>, vector<16x512xf32>
    %193 = arith.truncf %189 : vector<16x128xf32> to vector<16x128xbf16>
    %c0_87 = arith.constant 0 : index
    %c0_88 = arith.constant 0 : index
    %194 = vector.load %arg6[%c0_87, %c0_88] : memref<128x512xbf16, #tpu.memory_space<vmem>>, vector<128x512xbf16>
    %cst_89 = arith.constant dense<0.000000e+00> : vector<16x512xf32>
    %195 = tpu.matmul %193, %194, %cst_89 {dimension_numbers = #tpu.dot_dimension_numbers<[1], [0], [0], [1], [0, 0, 1, 1], [], []>} : vector<16x128xbf16>, vector<128x512xbf16>, vector<16x512xf32> -> vector<16x512xf32>
    %196 = arith.addf %192, %195 : vector<16x512xf32>
    %197 = vector.extract_strided_slice %196 {offsets = [0, 0], sizes = [16, 384], strides = [1, 1]} : vector<16x512xf32> to vector<16x384xf32>
    %198 = arith.negf %197 : vector<16x384xf32>
    %199 = math.exp %198 : vector<16x384xf32>
    %cst_90 = arith.constant 1.000000e+00 : f32
    %200 = vector.broadcast %cst_90 : f32 to vector<16x384xf32>
    %201 = arith.addf %200, %199 : vector<16x384xf32>
    %202 = arith.divf %200, %201 : vector<16x384xf32>
    %203 = vector.extract_strided_slice %196 {offsets = [0, 384], sizes = [16, 128], strides = [1, 1]} : vector<16x512xf32> to vector<16x128xf32>
    %204 = math.tanh %203 : vector<16x128xf32>
    %205 = vector.extract_strided_slice %202 {offsets = [0, 128], sizes = [16, 128], strides = [1, 1]} : vector<16x384xf32> to vector<16x128xf32>
    %206 = arith.mulf %205, %186 : vector<16x128xf32>
    %207 = vector.extract_strided_slice %202 {offsets = [0, 0], sizes = [16, 128], strides = [1, 1]} : vector<16x384xf32> to vector<16x128xf32>
    %208 = arith.mulf %207, %204 : vector<16x128xf32>
    %209 = arith.addf %206, %208 : vector<16x128xf32>
    %210 = vector.extract_strided_slice %202 {offsets = [0, 256], sizes = [16, 128], strides = [1, 1]} : vector<16x384xf32> to vector<16x128xf32>
    %211 = math.tanh %209 : vector<16x128xf32>
    %212 = arith.mulf %210, %211 : vector<16x128xf32>
    %213 = arith.truncf %212 : vector<16x128xf32> to vector<16x128xbf16>
    %c48_91 = arith.constant 48 : index
    %c0_92 = arith.constant 0 : index
    %214 = vector.load %arg14[%c48_91, %c0_92] : memref<64x128xbf16, #tpu.memory_space<vmem>>, vector<16x128xbf16>
    tpu.vector_store %arg14[%c48_91, %c0_92], %213 {strides = array<i32>} : memref<64x128xbf16, #tpu.memory_space<vmem>>, vector<16x128xbf16>,
    %c2_93 = arith.constant 2 : index
    %c0_94 = arith.constant 0 : index
    %c0_95 = arith.constant 0 : index
    %215 = vector.load %arg15[%c2_93, %c0_94, %c0_95] : memref<4x16x128xf32, #tpu.memory_space<vmem>>, vector<1x16x128xf32>
    %216 = vector.shape_cast %215 : vector<1x16x128xf32> to vector<16x128xf32>
    %217 = vector.shape_cast %212 : vector<16x128xf32> to vector<1x16x128xf32>
    tpu.vector_store %arg15[%c2_93, %c0_94, %c0_95], %217 {strides = array<i32>} : memref<4x16x128xf32, #tpu.memory_space<vmem>>, vector<1x16x128xf32>,
    %c3_96 = arith.constant 3 : index
    %c0_97 = arith.constant 0 : index
    %c0_98 = arith.constant 0 : index
    %218 = vector.load %arg15[%c3_96, %c0_97, %c0_98] : memref<4x16x128xf32, #tpu.memory_space<vmem>>, vector<1x16x128xf32>
    %219 = vector.shape_cast %218 : vector<1x16x128xf32> to vector<16x128xf32>
    %220 = vector.shape_cast %209 : vector<16x128xf32> to vector<1x16x128xf32>
    tpu.vector_store %arg15[%c3_96, %c0_97, %c0_98], %220 {strides = array<i32>} : memref<4x16x128xf32, #tpu.memory_space<vmem>>, vector<1x16x128xf32>,
    %c1_i32 = arith.constant 1 : i32
    %221 = arith.cmpi eq, %arg0, %c1_i32 : i32
    %222 = arith.extui %221 : i1 to i32
    %c0_i32_99 = arith.constant 0 : i32
    %223 = arith.cmpi ne, %222, %c0_i32_99 : i32
    scf.if %223 {
      %c48_100 = arith.constant 48 : index
      %c0_101 = arith.constant 0 : index
      %224 = vector.load %arg1[%c48_100, %c0_101] : memref<64x128xbf16, #tpu.memory_space<vmem>>, vector<16x128xbf16>
      %c0_102 = arith.constant 0 : index
      %c0_103 = arith.constant 0 : index
      %225 = vector.load %arg8[%c0_102, %c0_103] : memref<128x128xbf16, #tpu.memory_space<vmem>>, vector<128x128xbf16>
      %cst_104 = arith.constant dense<0.000000e+00> : vector<16x128xf32>
      %226 = tpu.matmul %224, %225, %cst_104 {dimension_numbers = #tpu.dot_dimension_numbers<[1], [0], [0], [1], [0, 0, 1, 1], [], []>} : vector<16x128xbf16>, vector<128x128xbf16>, vector<16x128xf32> -> vector<16x128xf32>
      %227 = arith.addf %212, %226 : vector<16x128xf32>
      %c0_105 = arith.constant 0 : index
      %c0_106 = arith.constant 0 : index
      %228 = vector.load %arg9[%c0_105, %c0_106] : memref<1x128xf32, #tpu.memory_space<vmem>>, vector<1x128xf32>
      %229 = vector.broadcast %228 : vector<1x128xf32> to vector<16x128xf32>
      %230 = arith.addf %227, %229 : vector<16x128xf32>
      %231 = arith.truncf %230 : vector<16x128xf32> to vector<16x128xbf16>
      %c0_107 = arith.constant 0 : index
      %c0_108 = arith.constant 0 : index
      %232 = vector.load %arg10[%c0_107, %c0_108] : memref<128x128xbf16, #tpu.memory_space<vmem>>, vector<128x128xbf16>
      %cst_109 = arith.constant dense<0.000000e+00> : vector<16x128xf32>
      %233 = tpu.matmul %231, %232, %cst_109 {dimension_numbers = #tpu.dot_dimension_numbers<[1], [0], [0], [1], [0, 0, 1, 1], [], []>} : vector<16x128xbf16>, vector<128x128xbf16>, vector<16x128xf32> -> vector<16x128xf32>
      %c0_110 = arith.constant 0 : index
      %c0_111 = arith.constant 0 : index
      %234 = vector.load %arg11[%c0_110, %c0_111] : memref<1x128xf32, #tpu.memory_space<vmem>>, vector<1x128xf32>
      %235 = vector.broadcast %234 : vector<1x128xf32> to vector<16x128xf32>
      %236 = arith.addf %233, %235 : vector<16x128xf32>
      %c0_112 = arith.constant 0 : index
      %c0_113 = arith.constant 0 : index
      %237 = vector.load %arg12[%c0_112, %c0_113] : memref<16x128xf32, #tpu.memory_space<vmem>>, vector<16x128xf32>
      tpu.vector_store %arg12[%c0_112, %c0_113], %236 {strides = array<i32>} : memref<16x128xf32, #tpu.memory_space<vmem>>, vector<16x128xf32>,
    } else {
    }
    return
  }
  func.func @transform_0(%arg0: i32) -> (i32, i32) {
    %c0_i32 = arith.constant 0 : i32
    %c0_i32_0 = arith.constant 0 : i32
    return %arg0, %c0_i32 : i32, i32
  }
  func.func @transform_1(%arg0: i32) -> (i32, i32) {
    %c0_i32 = arith.constant 0 : i32
    %c0_i32_0 = arith.constant 0 : i32
    %c0_i32_1 = arith.constant 0 : i32
    return %c0_i32, %c0_i32_0 : i32, i32
  }
  func.func @transform_2(%arg0: i32) -> (i32, i32) {
    %c0_i32 = arith.constant 0 : i32
    %c0_i32_0 = arith.constant 0 : i32
    %c0_i32_1 = arith.constant 0 : i32
    return %c0_i32, %c0_i32_0 : i32, i32
  }
  func.func @transform_3(%arg0: i32) -> (i32, i32) {
    %c0_i32 = arith.constant 0 : i32
    %c0_i32_0 = arith.constant 0 : i32
    %c0_i32_1 = arith.constant 0 : i32
    return %c0_i32, %c0_i32_0 : i32, i32
  }
  func.func @transform_4(%arg0: i32) -> (i32, i32) {
    %c0_i32 = arith.constant 0 : i32
    %c0_i32_0 = arith.constant 0 : i32
    %c0_i32_1 = arith.constant 0 : i32
    return %c0_i32, %c0_i32_0 : i32, i32
  }
  func.func @transform_5(%arg0: i32) -> (i32, i32) {
    %c0_i32 = arith.constant 0 : i32
    %c0_i32_0 = arith.constant 0 : i32
    %c0_i32_1 = arith.constant 0 : i32
    return %c0_i32, %c0_i32_0 : i32, i32
  }
  func.func @transform_6(%arg0: i32) -> (i32, i32) {
    %c0_i32 = arith.constant 0 : i32
    %c0_i32_0 = arith.constant 0 : i32
    %c0_i32_1 = arith.constant 0 : i32
    return %c0_i32, %c0_i32_0 : i32, i32
  }
  func.func @transform_7(%arg0: i32) -> (i32, i32) {
    %c0_i32 = arith.constant 0 : i32
    %c0_i32_0 = arith.constant 0 : i32
    %c0_i32_1 = arith.constant 0 : i32
    return %c0_i32, %c0_i32_0 : i32, i32
  }
  func.func @transform_8(%arg0: i32) -> (i32, i32) {
    %c0_i32 = arith.constant 0 : i32
    %c0_i32_0 = arith.constant 0 : i32
    %c0_i32_1 = arith.constant 0 : i32
    return %c0_i32, %c0_i32_0 : i32, i32
  }
  func.func @transform_9(%arg0: i32) -> (i32, i32) {
    %c0_i32 = arith.constant 0 : i32
    %c0_i32_0 = arith.constant 0 : i32
    %c0_i32_1 = arith.constant 0 : i32
    return %c0_i32, %c0_i32_0 : i32, i32
  }
  func.func @transform_10(%arg0: i32) -> (i32, i32) {
    %c0_i32 = arith.constant 0 : i32
    %c0_i32_0 = arith.constant 0 : i32
    %c0_i32_1 = arith.constant 0 : i32
    return %c0_i32, %c0_i32_0 : i32, i32
  }
  func.func @transform_11(%arg0: i32) -> (i32, i32) {
    %c0_i32 = arith.constant 0 : i32
    %c0_i32_0 = arith.constant 0 : i32
    %c0_i32_1 = arith.constant 0 : i32
    return %c0_i32, %c0_i32_0 : i32, i32
  }
}

</mosaic_0001>

<llo_original>
// kernel: residual_lstm_forward.1
$region0: #{residual_lstm_forward.1}
  #allocation0 [shape = 'u32[]', space=smem, size = 0x4, offset = 0x4, fixed_abs, tag = 'smem constant byte address 0x4 - core index']
  #allocation1 [shape = 'u32[144,128]{1,0:T(1,128)}', space=vmem, size = 0x12000, scoped, tag = 'internal scratch']
  #allocation2 [shape = 'f32[64,512]{1,0:T(8,128)}', space=vmem, size = 0x20000, scoped, tag = 'scratch operand']
  #allocation3 [shape = 'bf16[64,128]{1,0:T(8,128)(2,1)}', space=vmem, size = 0x4000, scoped, tag = 'scratch operand']
  #allocation4 [shape = 'f32[4,16,128]{2,1,0:T(8,128)}', space=vmem, size = 0x8000, scoped, tag = 'scratch operand']
  %s0 = inlined_call_operand.vmem [shape: bf16[128,128], index: 0, kind: input, shape index: {}]
  %s1 = inlined_call_operand.hbm [shape: bf16[128,512], index: 1, kind: input, shape index: {}]
  %s2 = inlined_call_operand.hbm [shape: bf16[128,512], index: 2, kind: input, shape index: {}]
  %s3 = inlined_call_operand.vmem [shape: f32[1,512], index: 3, kind: input, shape index: {}]
  %s4 = inlined_call_operand.hbm [shape: bf16[128,512], index: 4, kind: input, shape index: {}]
  %s5 = inlined_call_operand.hbm [shape: bf16[128,512], index: 5, kind: input, shape index: {}]
  %s6 = inlined_call_operand.vmem [shape: f32[1,512], index: 6, kind: input, shape index: {}]
  %s7 = inlined_call_operand.vmem [shape: bf16[128,128], index: 7, kind: input, shape index: {}]
  %s8 = inlined_call_operand.vmem [shape: f32[1,128], index: 8, kind: input, shape index: {}]
  %s9 = inlined_call_operand.hbm [shape: bf16[128,128], index: 9, kind: input, shape index: {}]
  %s10 = inlined_call_operand.vmem [shape: f32[1,128], index: 10, kind: input, shape index: {}]
  %s11 = inlined_call_operand.vmem [shape: f32[16,128], index: 11, kind: output, shape index: {}]
  %s12 = sld [smem:[#allocation0]]
  $region105: #{residual_lstm_forward.1} parent=0
    _
  %s14 = ssub.s32 1, %s12
  %s15 = scalar_select 0, %s14, %s12
  $region1: #{residual_lstm_forward.1} parent=0
    #allocation5 [shape = 'u8[131072]{0}', space=vmem, size = 0x20000, scoped, tag = 'input window, operand 1, single buffered']
    #allocation6 [shape = 's32[2]{0}', space=sflag, size = 0x8, scoped, tag = 'scoped memory for residual_lstm_forward.1']
    #allocation7 [shape = 'u8[131072]{0}', space=vmem, size = 0x20000, scoped, tag = 'input window, operand 2, single buffered']
    #allocation8 [shape = 's32[1]{0}', space=sflag, size = 0x4, scoped, tag = 'scoped memory for residual_lstm_forward.1']
    #allocation9 [shape = 'u8[131072]{0}', space=vmem, size = 0x20000, scoped, tag = 'input window, operand 4, single buffered']
    #allocation10 [shape = 'u8[131072]{0}', space=vmem, size = 0x20000, scoped, tag = 'input window, operand 5, single buffered']
    #allocation11 [shape = 's32[1]{0}', space=sflag, size = 0x4, scoped, tag = 'scoped memory for residual_lstm_forward.1']
    #allocation12 [shape = 'u8[32768]{0}', space=vmem, size = 0x8000, scoped, tag = 'input window, operand 9, single buffered']
    %16 = vsyncpa [#allocation6], 0
    %17 = vsyncpa [#allocation8], 0
    %18 = vsyncpa [#allocation11], 0
    loop: start=0, step=1, limit=4
    $region2: #{residual_lstm_forward.1} parent=1 // loop_pre_header
      _
    $region3: #{residual_lstm_forward.1} parent=1 // loop_header
      %s20 = sphi 0, %s24
      %p21 = scmp.ge.s32.totalorder %s20, 4
      %s30 = sphi 0, %s32
      %s33 = sphi 0, %s30
      %s34 = sphi 0, %s33
      %s50 = sphi 0, %s34
      %s54 = sphi 0, %s54
      %s56 = sphi 0, %s54
      %s57 = sphi 0, %s56
      %s71 = sphi 0, %s57
      %s75 = sphi 0, %s75
      %s77 = sphi 0, %s75
      %s78 = sphi 0, %s77
      %s92 = sphi 0, %s78
      %s96 = sphi 0, %s96
      %s98 = sphi 0, %s96
      %s99 = sphi 0, %s98
      %s113 = sphi 0, %s99
      %s117 = sphi 0, %s117
      %s119 = sphi 0, %s117
      %s120 = sphi 0, %s119
      %s134 = sphi 0, %s120
      %s138 = sphi 0, %s138
      %s140 = sphi 0, %s138
      %s141 = sphi 0, %s140
      %s155 = sphi 0, %s141
      %s159 = sphi 0, %s159
      %s161 = sphi 0, %s159
      %s162 = sphi 0, %s161
      %s176 = sphi 0, %s162
      %s180 = sphi 0, %s180
      %s182 = sphi 0, %s180
      %s183 = sphi 0, %s182
      %s197 = sphi 0, %s183
      %s201 = sphi 0, %s201
      %s203 = sphi 0, %s201
      %s204 = sphi 0, %s203
      %s218 = sphi 0, %s204
      %s222 = sphi 0, %s222
      %s224 = sphi 0, %s222
      %s225 = sphi 0, %s224
      %s239 = sphi 0, %s225
      %s243 = sphi 0, %s243
      %s245 = sphi 0, %s243
      %s246 = sphi 0, %s245
      %s260 = sphi 0, %s246
      %s264 = sphi 0, %s264
      %s266 = sphi 0, %s264
      %s267 = sphi 0, %s266
      %s281 = sphi 0, %s267
    $region4: #{residual_lstm_forward.1} parent=1 // loop_header_branch
      %23 = sbr.rel (%p21) target = $region8
    $region5: #{residual_lstm_forward.1} parent=1 // loop_body
      %s25 = ssub.s32 %s20, 1
      %s26 = ssub.s32 %s20, 2
      %s27 = sadd.s32 %s20, 1
      %s28 = ssub.s32 %s20, %s27
      %p29 = scmp.eq.s32.totalorder %s28, 0
      %s31 = sadd.s32 %s30, 1
      %s32 = scalar_select %p29, %s30, %s31
      %p35 = pneg %p29
      %p36 = scmp.eq.s32.totalorder %s20, 1
      %p37 = por %p35, %p36
      %p38 = scmp.ne.s32.totalorder %s30, %s33
      %p39 = scmp.eq.s32.totalorder %s20, 0
      %p40 = por %p38, %p39
      %p41 = scmp.ne.s32.totalorder %s30, %s33
      %p42 = scmp.eq.s32.totalorder %s25, 1
      %p43 = por %p41, %p42
      %p44 = scmp.ne.s32.totalorder %s33, %s34
      %p45 = scmp.eq.s32.totalorder %s25, 0
      %p46 = por %p44, %p45
      %p47 = scmp.ne.s32.totalorder %s33, %s34
      %p48 = scmp.eq.s32.totalorder %s26, 1
      %p49 = por %p47, %p48
      %p51 = scmp.ne.s32.totalorder %s34, %s50
      %p52 = scmp.eq.s32.totalorder %s26, 0
      %p53 = por %p51, %p52
      %s55 = sadd.s32 %s54, 1
      %p58 = scmp.eq.s32.totalorder %s20, 1
      %p59 = scmp.ne.s32.totalorder %s54, %s56
      %p60 = scmp.eq.s32.totalorder %s20, 0
      %p61 = por %p59, %p60
      %p62 = scmp.ne.s32.totalorder %s54, %s56
      %p63 = scmp.eq.s32.totalorder %s25, 1
      %p64 = por %p62, %p63
      %p65 = scmp.ne.s32.totalorder %s56, %s57
      %p66 = scmp.eq.s32.totalorder %s25, 0
      %p67 = por %p65, %p66
      %p68 = scmp.ne.s32.totalorder %s56, %s57
      %p69 = scmp.eq.s32.totalorder %s26, 1
      %p70 = por %p68, %p69
      %p72 = scmp.ne.s32.totalorder %s57, %s71
      %p73 = scmp.eq.s32.totalorder %s26, 0
      %p74 = por %p72, %p73
      %s76 = sadd.s32 %s75, 1
      %p79 = scmp.eq.s32.totalorder %s20, 1
      %p80 = scmp.ne.s32.totalorder %s75, %s77
      %p81 = scmp.eq.s32.totalorder %s20, 0
      %p82 = por %p80, %p81
      %p83 = scmp.ne.s32.totalorder %s75, %s77
      %p84 = scmp.eq.s32.totalorder %s25, 1
      %p85 = por %p83, %p84
      %p86 = scmp.ne.s32.totalorder %s77, %s78
      %p87 = scmp.eq.s32.totalorder %s25, 0
      %p88 = por %p86, %p87
      %p89 = scmp.ne.s32.totalorder %s77, %s78
      %p90 = scmp.eq.s32.totalorder %s26, 1
      %p91 = por %p89, %p90
      %p93 = scmp.ne.s32.totalorder %s78, %s92
      %p94 = scmp.eq.s32.totalorder %s26, 0
      %p95 = por %p93, %p94
      %s97 = sadd.s32 %s96, 1
      %p100 = scmp.eq.s32.totalorder %s20, 1
      %p101 = scmp.ne.s32.totalorder %s96, %s98
      %p102 = scmp.eq.s32.totalorder %s20, 0
      %p103 = por %p101, %p102
      %p104 = scmp.ne.s32.totalorder %s96, %s98
      %p105 = scmp.eq.s32.totalorder %s25, 1
      %p106 = por %p104, %p105
      %p107 = scmp.ne.s32.totalorder %s98, %s99
      %p108 = scmp.eq.s32.totalorder %s25, 0
      %p109 = por %p107, %p108
      %p110 = scmp.ne.s32.totalorder %s98, %s99
      %p111 = scmp.eq.s32.totalorder %s26, 1
      %p112 = por %p110, %p111
      %p114 = scmp.ne.s32.totalorder %s99, %s113
      %p115 = scmp.eq.s32.totalorder %s26, 0
      %p116 = por %p114, %p115
      %s118 = sadd.s32 %s117, 1
      %p121 = scmp.eq.s32.totalorder %s20, 1
      %p122 = scmp.ne.s32.totalorder %s117, %s119
      %p123 = scmp.eq.s32.totalorder %s20, 0
      %p124 = por %p122, %p123
      %p125 = scmp.ne.s32.totalorder %s117, %s119
      %p126 = scmp.eq.s32.totalorder %s25, 1
      %p127 = por %p125, %p126
      %p128 = scmp.ne.s32.totalorder %s119, %s120
      %p129 = scmp.eq.s32.totalorder %s25, 0
      %p130 = por %p128, %p129
      %p131 = scmp.ne.s32.totalorder %s119, %s120
      %p132 = scmp.eq.s32.totalorder %s26, 1
      %p133 = por %p131, %p132
      %p135 = scmp.ne.s32.totalorder %s120, %s134
      %p136 = scmp.eq.s32.totalorder %s26, 0
      %p137 = por %p135, %p136
      %s139 = sadd.s32 %s138, 1
      %p142 = scmp.eq.s32.totalorder %s20, 1
      %p143 = scmp.ne.s32.totalorder %s138, %s140
      %p144 = scmp.eq.s32.totalorder %s20, 0
      %p145 = por %p143, %p144
      %p146 = scmp.ne.s32.totalorder %s138, %s140
      %p147 = scmp.eq.s32.totalorder %s25, 1
      %p148 = por %p146, %p147
      %p149 = scmp.ne.s32.totalorder %s140, %s141
      %p150 = scmp.eq.s32.totalorder %s25, 0
      %p151 = por %p149, %p150
      %p152 = scmp.ne.s32.totalorder %s140, %s141
      %p153 = scmp.eq.s32.totalorder %s26, 1
      %p154 = por %p152, %p153
      %p156 = scmp.ne.s32.totalorder %s141, %s155
      %p157 = scmp.eq.s32.totalorder %s26, 0
      %p158 = por %p156, %p157
      %s160 = sadd.s32 %s159, 1
      %p163 = scmp.eq.s32.totalorder %s20, 1
      %p164 = scmp.ne.s32.totalorder %s159, %s161
      %p165 = scmp.eq.s32.totalorder %s20, 0
      %p166 = por %p164, %p165
      %p167 = scmp.ne.s32.totalorder %s159, %s161
      %p168 = scmp.eq.s32.totalorder %s25, 1
      %p169 = por %p167, %p168
      %p170 = scmp.ne.s32.totalorder %s161, %s162
      %p171 = scmp.eq.s32.totalorder %s25, 0
      %p172 = por %p170, %p171
      %p173 = scmp.ne.s32.totalorder %s161, %s162
      %p174 = scmp.eq.s32.totalorder %s26, 1
      %p175 = por %p173, %p174
      %p177 = scmp.ne.s32.totalorder %s162, %s176
      %p178 = scmp.eq.s32.totalorder %s26, 0
      %p179 = por %p177, %p178
      %s181 = sadd.s32 %s180, 1
      %p184 = scmp.eq.s32.totalorder %s20, 1
      %p185 = scmp.ne.s32.totalorder %s180, %s182
      %p186 = scmp.eq.s32.totalorder %s20, 0
      %p187 = por %p185, %p186
      %p188 = scmp.ne.s32.totalorder %s180, %s182
      %p189 = scmp.eq.s32.totalorder %s25, 1
      %p190 = por %p188, %p189
      %p191 = scmp.ne.s32.totalorder %s182, %s183
      %p192 = scmp.eq.s32.totalorder %s25, 0
      %p193 = por %p191, %p192
      %p194 = scmp.ne.s32.totalorder %s182, %s183
      %p195 = scmp.eq.s32.totalorder %s26, 1
      %p196 = por %p194, %p195
      %p198 = scmp.ne.s32.totalorder %s183, %s197
      %p199 = scmp.eq.s32.totalorder %s26, 0
      %p200 = por %p198, %p199
      %s202 = sadd.s32 %s201, 1
      %p205 = scmp.eq.s32.totalorder %s20, 1
      %p206 = scmp.ne.s32.totalorder %s201, %s203
      %p207 = scmp.eq.s32.totalorder %s20, 0
      %p208 = por %p206, %p207
      %p209 = scmp.ne.s32.totalorder %s201, %s203
      %p210 = scmp.eq.s32.totalorder %s25, 1
      %p211 = por %p209, %p210
      %p212 = scmp.ne.s32.totalorder %s203, %s204
      %p213 = scmp.eq.s32.totalorder %s25, 0
      %p214 = por %p212, %p213
      %p215 = scmp.ne.s32.totalorder %s203, %s204
      %p216 = scmp.eq.s32.totalorder %s26, 1
      %p217 = por %p215, %p216
      %p219 = scmp.ne.s32.totalorder %s204, %s218
      %p220 = scmp.eq.s32.totalorder %s26, 0
      %p221 = por %p219, %p220
      %s223 = sadd.s32 %s222, 1
      %p226 = scmp.eq.s32.totalorder %s20, 1
      %p227 = scmp.ne.s32.totalorder %s222, %s224
      %p228 = scmp.eq.s32.totalorder %s20, 0
      %p229 = por %p227, %p228
      %p230 = scmp.ne.s32.totalorder %s222, %s224
      %p231 = scmp.eq.s32.totalorder %s25, 1
      %p232 = por %p230, %p231
      %p233 = scmp.ne.s32.totalorder %s224, %s225
      %p234 = scmp.eq.s32.totalorder %s25, 0
      %p235 = por %p233, %p234
      %p236 = scmp.ne.s32.totalorder %s224, %s225
      %p237 = scmp.eq.s32.totalorder %s26, 1
      %p238 = por %p236, %p237
      %p240 = scmp.ne.s32.totalorder %s225, %s239
      %p241 = scmp.eq.s32.totalorder %s26, 0
      %p242 = por %p240, %p241
      %s244 = sadd.s32 %s243, 1
      %p247 = scmp.eq.s32.totalorder %s20, 1
      %p248 = scmp.ne.s32.totalorder %s243, %s245
      %p249 = scmp.eq.s32.totalorder %s20, 0
      %p250 = por %p248, %p249
      %p251 = scmp.ne.s32.totalorder %s243, %s245
      %p252 = scmp.eq.s32.totalorder %s25, 1
      %p253 = por %p251, %p252
      %p254 = scmp.ne.s32.totalorder %s245, %s246
      %p255 = scmp.eq.s32.totalorder %s25, 0
      %p256 = por %p254, %p255
      %p257 = scmp.ne.s32.totalorder %s245, %s246
      %p258 = scmp.eq.s32.totalorder %s26, 1
      %p259 = por %p257, %p258
      %p261 = scmp.ne.s32.totalorder %s246, %s260
      %p262 = scmp.eq.s32.totalorder %s26, 0
      %p263 = por %p261, %p262
      %s265 = sadd.s32 %s264, 1
      %p268 = scmp.eq.s32.totalorder %s20, 1
      %p269 = scmp.ne.s32.totalorder %s264, %s266
      %p270 = scmp.eq.s32.totalorder %s20, 0
      %p271 = por %p269, %p270
      %p272 = scmp.ne.s32.totalorder %s264, %s266
      %p273 = scmp.eq.s32.totalorder %s25, 1
      %p274 = por %p272, %p273
      %p275 = scmp.ne.s32.totalorder %s266, %s267
      %p276 = scmp.eq.s32.totalorder %s25, 0
      %p277 = por %p275, %p276
      %p278 = scmp.ne.s32.totalorder %s266, %s267
      %p279 = scmp.eq.s32.totalorder %s26, 1
      %p280 = por %p278, %p279
      %p282 = scmp.ne.s32.totalorder %s267, %s281
      %p283 = scmp.eq.s32.totalorder %s26, 0
      %p284 = por %p282, %p283
      %p285 = scmp.le.s32.totalorder 1, %s20
      %p286 = scmp.lt.s32.totalorder %s20, 3
      %p287 = pnand %p285, %p286
      %p288 = pneg %p287
      // Predicated region
      $region9: #{residual_lstm_forward.1} parent=5 // pred_check
        _
      $region10: #{residual_lstm_forward.1} parent=5 // pred_check_branch
        %290 = sbr.rel (%p287) target = $region12
      $region11: #{residual_lstm_forward.1} parent=5 // pred_region
        %s291 = ssub.s32 %s20, 1
        // Predicated region
        $region13: #{residual_lstm_forward.1} parent=11 // pred_check
          %p292 = pneg %p67
        $region14: #{residual_lstm_forward.1} parent=11 // pred_check_branch
          %294 = sbr.rel (%p292) target = $region16
        $region15: #{residual_lstm_forward.1} parent=11 // pred_region
          %s296 = ssub.s32 4096, 4096
          %297 = vsyncadd [#allocation6], %s296
          %s298 = sshll.u32 [#allocation5], 4
          %s299 = int_to_ptr.vmem [resolvable:$true] %s298
          %304 = dma.hbm_to_vmem [thread:$0]  %s1, 4096, %s299, [#allocation6], 256, 256, 16
        $region16: #{residual_lstm_forward.1} parent=11 // pred_fallthru
          _
        // Predicated region
        $region17: #{residual_lstm_forward.1} parent=11 // pred_check
          %p305 = pneg %p88
        $region18: #{residual_lstm_forward.1} parent=11 // pred_check_branch
          %307 = sbr.rel (%p305) target = $region20
        $region19: #{residual_lstm_forward.1} parent=11 // pred_region
          %s309 = ssub.s32 4096, 4096
          %310 = vsyncadd [#allocation8], %s309
          %s311 = sshll.u32 [#allocation7], 4
          %s312 = int_to_ptr.vmem [resolvable:$true] %s311
          %317 = dma.hbm_to_vmem [thread:$0]  %s2, 4096, %s312, [#allocation8], 256, 256, 16
        $region20: #{residual_lstm_forward.1} parent=11 // pred_fallthru
          _
        // Predicated region
        $region21: #{residual_lstm_forward.1} parent=11 // pred_check
          %p318 = pneg %p109
        $region22: #{residual_lstm_forward.1} parent=11 // pred_check_branch
          %320 = sbr.rel (%p318) target = $region24
        $region23: #{residual_lstm_forward.1} parent=11 // pred_region
          _
        $region24: #{residual_lstm_forward.1} parent=11 // pred_fallthru
          _
        // Predicated region
        $region25: #{residual_lstm_forward.1} parent=11 // pred_check
          %p321 = pneg %p130
        $region26: #{residual_lstm_forward.1} parent=11 // pred_check_branch
          %323 = sbr.rel (%p321) target = $region28
        $region27: #{residual_lstm_forward.1} parent=11 // pred_region
          %s325 = ssub.s32 4096, 4096
          %326 = vsyncadd [#allocation8], %s325
          %s327 = sshll.u32 [#allocation9], 4
          %s328 = int_to_ptr.vmem [resolvable:$true] %s327
          %333 = dma.hbm_to_vmem [thread:$0]  %s4, 4096, %s328, [#allocation8], 256, 256, 16
        $region28: #{residual_lstm_forward.1} parent=11 // pred_fallthru
          _
        // Predicated region
        $region29: #{residual_lstm_forward.1} parent=11 // pred_check
          %p334 = pneg %p151
        $region30: #{residual_lstm_forward.1} parent=11 // pred_check_branch
          %336 = sbr.rel (%p334) target = $region32
        $region31: #{residual_lstm_forward.1} parent=11 // pred_region
          %s338 = ssub.s32 4096, 4096
          %339 = vsyncadd [#allocation11], %s338
          %s340 = sshll.u32 [#allocation10], 4
          %s341 = int_to_ptr.vmem [resolvable:$true] %s340
          %346 = dma.hbm_to_vmem [thread:$0]  %s5, 4096, %s341, [#allocation11], 256, 256, 16
        $region32: #{residual_lstm_forward.1} parent=11 // pred_fallthru
          _
        // Predicated region
        $region33: #{residual_lstm_forward.1} parent=11 // pred_check
          %p347 = pneg %p172
        $region34: #{residual_lstm_forward.1} parent=11 // pred_check_branch
          %349 = sbr.rel (%p347) target = $region36
        $region35: #{residual_lstm_forward.1} parent=11 // pred_region
          _
        $region36: #{residual_lstm_forward.1} parent=11 // pred_fallthru
          _
        // Predicated region
        $region37: #{residual_lstm_forward.1} parent=11 // pred_check
          %p350 = pneg %p193
        $region38: #{residual_lstm_forward.1} parent=11 // pred_check_branch
          %352 = sbr.rel (%p350) target = $region40
        $region39: #{residual_lstm_forward.1} parent=11 // pred_region
          _
        $region40: #{residual_lstm_forward.1} parent=11 // pred_fallthru
          _
        // Predicated region
        $region41: #{residual_lstm_forward.1} parent=11 // pred_check
          %p353 = pneg %p214
        $region42: #{residual_lstm_forward.1} parent=11 // pred_check_branch
          %355 = sbr.rel (%p353) target = $region44
        $region43: #{residual_lstm_forward.1} parent=11 // pred_region
          _
        $region44: #{residual_lstm_forward.1} parent=11 // pred_fallthru
          _
        // Predicated region
        $region45: #{residual_lstm_forward.1} parent=11 // pred_check
          %p356 = pneg %p235
        $region46: #{residual_lstm_forward.1} parent=11 // pred_check_branch
          %358 = sbr.rel (%p356) target = $region48
        $region47: #{residual_lstm_forward.1} parent=11 // pred_region
          %s360 = ssub.s32 1024, 1024
          %361 = vsyncadd [#allocation11], %s360
          %s362 = sshll.u32 [#allocation12], 4
          %s363 = int_to_ptr.vmem [resolvable:$true] %s362
          %368 = dma.hbm_to_vmem [thread:$0]  %s9, 1024, %s363, [#allocation11], 64, 64, 4
        $region48: #{residual_lstm_forward.1} parent=11 // pred_fallthru
          _
        // Predicated region
        $region49: #{residual_lstm_forward.1} parent=11 // pred_check
          %p369 = pneg %p256
        $region50: #{residual_lstm_forward.1} parent=11 // pred_check_branch
          %371 = sbr.rel (%p369) target = $region52
        $region51: #{residual_lstm_forward.1} parent=11 // pred_region
          _
        $region52: #{residual_lstm_forward.1} parent=11 // pred_fallthru
          _
      $region12: #{residual_lstm_forward.1} parent=5 // pred_fallthru
        _
      %p372 = scmp.lt.s32.totalorder %s20, 2
      // Predicated region
      $region53: #{residual_lstm_forward.1} parent=5 // pred_check
        %p373 = pneg %p372
      $region54: #{residual_lstm_forward.1} parent=5 // pred_check_branch
        %375 = sbr.rel (%p373) target = $region56
      $region55: #{residual_lstm_forward.1} parent=5 // pred_region
        // Predicated region
        $region57: #{residual_lstm_forward.1} parent=55 // pred_check
          %p376 = pneg %p40
        $region58: #{residual_lstm_forward.1} parent=55 // pred_check_branch
          %378 = sbr.rel (%p376) target = $region60
        $region59: #{residual_lstm_forward.1} parent=55 // pred_region
          %s379 = smul.u32 8, %s20
          %p380 = scmp.lt.s32.totalorder %s379, 15
          %s381 = scalar_select %p380, %s379, 15
          %s382 = smul.addr %s381, 4
          %s383 = scalar_lea.vmem %s0, %s382
          %s384 = smul.u32 8, %s20
        $region60: #{residual_lstm_forward.1} parent=55 // pred_fallthru
          _
      $region56: #{residual_lstm_forward.1} parent=5 // pred_fallthru
        _
      %p385 = scmp.le.s32.totalorder 1, %s20
      %p386 = scmp.lt.s32.totalorder %s20, 3
      %p387 = pnand %p385, %p386
      %p388 = pneg %p387
      // Predicated region
      $region61: #{residual_lstm_forward.1} parent=5 // pred_check
        _
      $region62: #{residual_lstm_forward.1} parent=5 // pred_check_branch
        %390 = sbr.rel (%p387) target = $region64
      $region63: #{residual_lstm_forward.1} parent=5 // pred_region
        %s391 = ssub.s32 %s20, 1
        // Predicated region
        $region65: #{residual_lstm_forward.1} parent=63 // pred_check
          %p392 = pneg %p67
        $region66: #{residual_lstm_forward.1} parent=63 // pred_check_branch
          %394 = sbr.rel (%p392) target = $region68
        $region67: #{residual_lstm_forward.1} parent=63 // pred_region
          %395 = dma.done [#allocation6], 4096
        $region68: #{residual_lstm_forward.1} parent=63 // pred_fallthru
          _
        // Predicated region
        $region69: #{residual_lstm_forward.1} parent=63 // pred_check
          %p396 = pneg %p88
        $region70: #{residual_lstm_forward.1} parent=63 // pred_check_branch
          %398 = sbr.rel (%p396) target = $region72
        $region71: #{residual_lstm_forward.1} parent=63 // pred_region
          %399 = dma.done [#allocation8], 4096
        $region72: #{residual_lstm_forward.1} parent=63 // pred_fallthru
          _
        // Predicated region
        $region73: #{residual_lstm_forward.1} parent=63 // pred_check
          %p400 = pneg %p130
        $region74: #{residual_lstm_forward.1} parent=63 // pred_check_branch
          %402 = sbr.rel (%p400) target = $region76
        $region75: #{residual_lstm_forward.1} parent=63 // pred_region
          %403 = dma.done [#allocation8], 4096
        $region76: #{residual_lstm_forward.1} parent=63 // pred_fallthru
          _
        // Predicated region
        $region77: #{residual_lstm_forward.1} parent=63 // pred_check
          %p404 = pneg %p151
        $region78: #{residual_lstm_forward.1} parent=63 // pred_check_branch
          %406 = sbr.rel (%p404) target = $region80
        $region79: #{residual_lstm_forward.1} parent=63 // pred_region
          %407 = dma.done [#allocation11], 4096
        $region80: #{residual_lstm_forward.1} parent=63 // pred_fallthru
          _
        // Predicated region
        $region81: #{residual_lstm_forward.1} parent=63 // pred_check
          %p408 = pneg %p235
        $region82: #{residual_lstm_forward.1} parent=63 // pred_check_branch
          %410 = sbr.rel (%p408) target = $region84
        $region83: #{residual_lstm_forward.1} parent=63 // pred_region
          %411 = dma.done [#allocation11], 1024
        $region84: #{residual_lstm_forward.1} parent=63 // pred_fallthru
          _
        %s412 = smul.u32 8, %s25
        %p413 = scmp.lt.s32.totalorder %s412, 15
        %s414 = scalar_select %p413, %s412, 15
        %s415 = smul.addr %s414, 4
        %s416 = scalar_lea.vmem %s0, %s415
        %p417 = pneg %p46
        %p418 = pneg %p43
        %p419 = pneg %p67
        %p420 = pneg %p64
        %p421 = pneg %p88
        %p422 = pneg %p85
        %p423 = pneg %p109
        %p424 = pneg %p106
        %p425 = pneg %p130
        %p426 = pneg %p127
        %p427 = pneg %p151
        %p428 = pneg %p148
        %p429 = pneg %p172
        %p430 = pneg %p169
        %p431 = pneg %p193
        %p432 = pneg %p190
        %p433 = pneg %p214
        %p434 = pneg %p211
        %p435 = pneg %p235
        %p436 = pneg %p232
        %p437 = pneg %p256
        %p438 = pneg %p253
        %p439 = pneg %p277
        %p440 = pneg %p274
        %s441 = smul.u32 8, %s25
        %p442 = scmp.lt.s32.totalorder %s441, 15
        %s443 = scalar_select %p442, %s441, 15
        %s444 = smul.addr %s443, 4
        %s445 = scalar_lea.vmem %s0, %s444
        %s446 = smul.u32 8, %s25
        %p448 = scmp.eq.s32.totalorder %s25, 0
        // Predicated region
        $region85: #{residual_lstm_forward.1} parent=63 // pred_check
          %p449 = pneg %p448
        $region86: #{residual_lstm_forward.1} parent=63 // pred_check_branch
          %451 = sbr.rel (%p449) target = $region88
        $region87: #{residual_lstm_forward.1} parent=63 // pred_region
          %452 = vst [vmem:[#allocation4] sm:$0xff] 0.0
          %453 = vst [vmem:[#allocation4 + $0x8] sm:$0xff] 0.0
          %454 = vst [vmem:[#allocation4 + $0x10] sm:$0xff] 0.0
          %455 = vst [vmem:[#allocation4 + $0x18] sm:$0xff] 0.0
          %456 = vst [vmem:[#allocation4 + $0x20] sm:$0xff] 0.0
          %457 = vst [vmem:[#allocation4 + $0x28] sm:$0xff] 0.0
          %458 = vst [vmem:[#allocation4 + $0x30] sm:$0xff] 0.0
          %459 = vst [vmem:[#allocation4 + $0x38] sm:$0xff] 0.0
        $region88: #{residual_lstm_forward.1} parent=63 // pred_fallthru
          _
        %v460 = vld [vmem:[%s445] sm:$0xf]
        %v461 = vld [vmem:[%s445 + $0x4] sm:$0xf]
        %v462 = vld [vmem:[%s445 + $0x8] sm:$0xf]
        %v463 = vld [vmem:[%s445 + $0xc] sm:$0xf]
        %v464 = vld [vmem:[%s445 + $0x10] sm:$0xf]
        %v465 = vld [vmem:[%s445 + $0x14] sm:$0xf]
        %v466 = vld [vmem:[%s445 + $0x18] sm:$0xf]
        %v467 = vld [vmem:[%s445 + $0x1c] sm:$0xf]
        %v468 = vld [vmem:[#allocation5] sm:$0xff]
        %v469 = vld [vmem:[#allocation5 + $0x8] sm:$0xff]
        %v470 = vld [vmem:[#allocation5 + $0x10] sm:$0xff]
        %v471 = vld [vmem:[#allocation5 + $0x18] sm:$0xff]
        %v472 = vld [vmem:[#allocation5 + $0x20] sm:$0xff]
        %v473 = vld [vmem:[#allocation5 + $0x28] sm:$0xff]
        %v474 = vld [vmem:[#allocation5 + $0x30] sm:$0xff]
        %v475 = vld [vmem:[#allocation5 + $0x38] sm:$0xff]
        %v476 = vld [vmem:[#allocation5 + $0x40] sm:$0xff]
        %v477 = vld [vmem:[#allocation5 + $0x48] sm:$0xff]
        %v478 = vld [vmem:[#allocation5 + $0x50] sm:$0xff]
        %v479 = vld [vmem:[#allocation5 + $0x58] sm:$0xff]
        %v480 = vld [vmem:[#allocation5 + $0x60] sm:$0xff]
        %v481 = vld [vmem:[#allocation5 + $0x68] sm:$0xff]
        %v482 = vld [vmem:[#allocation5 + $0x70] sm:$0xff]
        %v483 = vld [vmem:[#allocation5 + $0x78] sm:$0xff]
        %v484 = vld [vmem:[#allocation5 + $0x80] sm:$0xff]
        %v485 = vld [vmem:[#allocation5 + $0x88] sm:$0xff]
        %v486 = vld [vmem:[#allocation5 + $0x90] sm:$0xff]
        %v487 = vld [vmem:[#allocation5 + $0x98] sm:$0xff]
        %v488 = vld [vmem:[#allocation5 + $0xa0] sm:$0xff]
        %v489 = vld [vmem:[#allocation5 + $0xa8] sm:$0xff]
        %v490 = vld [vmem:[#allocation5 + $0xb0] sm:$0xff]
        %v491 = vld [vmem:[#allocation5 + $0xb8] sm:$0xff]
        %v492 = vld [vmem:[#allocation5 + $0xc0] sm:$0xff]
        %v493 = vld [vmem:[#allocation5 + $0xc8] sm:$0xff]
        %v494 = vld [vmem:[#allocation5 + $0xd0] sm:$0xff]
        %v495 = vld [vmem:[#allocation5 + $0xd8] sm:$0xff]
        %v496 = vld [vmem:[#allocation5 + $0xe0] sm:$0xff]
        %v497 = vld [vmem:[#allocation5 + $0xe8] sm:$0xff]
        %v498 = vld [vmem:[#allocation5 + $0xf0] sm:$0xff]
        %v499 = vld [vmem:[#allocation5 + $0xf8] sm:$0xff]
        %v500 = vld [vmem:[%s3] sm:$0xf]
        %v502 = vlaneseq
        %v503 = vshrl.u32 %v502, 7
        %v504 = vsub.s32 0, %v503
        %v505 = vrot.slane %v500, %v504
        %v506 = vlaneseq
        %v507 = vshrl.u32 %v506, 7
        %v508 = vsub.s32 1, %v507
        %v509 = vrot.slane %v500, %v508
        %v510 = vlaneseq
        %v511 = vshrl.u32 %v510, 7
        %v512 = vsub.s32 2, %v511
        %v513 = vrot.slane %v500, %v512
        %v514 = vlaneseq
        %v515 = vshrl.u32 %v514, 7
        %v516 = vsub.s32 3, %v515
        %v517 = vrot.slane %v500, %v516
        %v530 = vunpack.c.l.b16 %v460
        %v531 = vunpack.c.l.b16 %v461
        %v532 = vunpack.c.l.b16 %v462
        %v533 = vunpack.c.l.b16 %v463
        %v534 = vunpack.c.l.b16 %v464
        %v535 = vunpack.c.l.b16 %v465
        %v536 = vunpack.c.l.b16 %v466
        %v537 = vunpack.c.l.b16 %v467
        %v538 = vpack.c.b16 %v531, %v530
        %v539 = vpack.c.b16 %v533, %v532
        %v540 = vpack.c.b16 %v535, %v534
        %v541 = vpack.c.b16 %v537, %v536
        %v578 = vunpack.c.l.b16 %v468
        %v579 = vunpack.c.h.b16 %v468
        %v580 = vunpack.c.l.b16 %v469
        %v581 = vunpack.c.h.b16 %v469
        %v582 = vunpack.c.l.b16 %v470
        %v583 = vunpack.c.h.b16 %v470
        %v584 = vunpack.c.l.b16 %v471
        %v585 = vunpack.c.h.b16 %v471
        %v586 = vunpack.c.l.b16 %v472
        %v587 = vunpack.c.h.b16 %v472
        %v588 = vunpack.c.l.b16 %v473
        %v589 = vunpack.c.h.b16 %v473
        %v590 = vunpack.c.l.b16 %v474
        %v591 = vunpack.c.h.b16 %v474
        %v592 = vunpack.c.l.b16 %v475
        %v593 = vunpack.c.h.b16 %v475
        %v594 = vunpack.c.l.b16 %v476
        %v595 = vunpack.c.h.b16 %v476
        %v596 = vunpack.c.l.b16 %v477
        %v597 = vunpack.c.h.b16 %v477
        %v598 = vunpack.c.l.b16 %v478
        %v599 = vunpack.c.h.b16 %v478
        %v600 = vunpack.c.l.b16 %v479
        %v601 = vunpack.c.h.b16 %v479
        %v602 = vunpack.c.l.b16 %v480
        %v603 = vunpack.c.h.b16 %v480
        %v604 = vunpack.c.l.b16 %v481
        %v605 = vunpack.c.h.b16 %v481
        %v606 = vunpack.c.l.b16 %v482
        %v607 = vunpack.c.h.b16 %v482
        %v608 = vunpack.c.l.b16 %v483
        %v609 = vunpack.c.h.b16 %v483
        %v610 = vunpack.c.l.b16 %v484
        %v611 = vunpack.c.h.b16 %v484
        %v612 = vunpack.c.l.b16 %v485
        %v613 = vunpack.c.h.b16 %v485
        %v614 = vunpack.c.l.b16 %v486
        %v615 = vunpack.c.h.b16 %v486
        %v616 = vunpack.c.l.b16 %v487
        %v617 = vunpack.c.h.b16 %v487
        %v618 = vunpack.c.l.b16 %v488
        %v619 = vunpack.c.h.b16 %v488
        %v620 = vunpack.c.l.b16 %v489
        %v621 = vunpack.c.h.b16 %v489
        %v622 = vunpack.c.l.b16 %v490
        %v623 = vunpack.c.h.b16 %v490
        %v624 = vunpack.c.l.b16 %v491
        %v625 = vunpack.c.h.b16 %v491
        %v626 = vunpack.c.l.b16 %v492
        %v627 = vunpack.c.h.b16 %v492
        %v628 = vunpack.c.l.b16 %v493
        %v629 = vunpack.c.h.b16 %v493
        %v630 = vunpack.c.l.b16 %v494
        %v631 = vunpack.c.h.b16 %v494
        %v632 = vunpack.c.l.b16 %v495
        %v633 = vunpack.c.h.b16 %v495
        %v634 = vunpack.c.l.b16 %v496
        %v635 = vunpack.c.h.b16 %v496
        %v636 = vunpack.c.l.b16 %v497
        %v637 = vunpack.c.h.b16 %v497
        %v638 = vunpack.c.l.b16 %v498
        %v639 = vunpack.c.h.b16 %v498
        %v640 = vunpack.c.l.b16 %v499
        %v641 = vunpack.c.h.b16 %v499
        %v642 = vpack.c.b16 %v582, %v578
        %v643 = vpack.c.b16 %v583, %v579
        %v644 = vpack.c.b16 %v584, %v580
        %v645 = vpack.c.b16 %v585, %v581
        %v646 = vpack.c.b16 %v590, %v586
        %v647 = vpack.c.b16 %v591, %v587
        %v648 = vpack.c.b16 %v592, %v588
        %v649 = vpack.c.b16 %v593, %v589
        %v650 = vpack.c.b16 %v598, %v594
        %v651 = vpack.c.b16 %v599, %v595
        %v652 = vpack.c.b16 %v600, %v596
        %v653 = vpack.c.b16 %v601, %v597
        %v654 = vpack.c.b16 %v606, %v602
        %v655 = vpack.c.b16 %v607, %v603
        %v656 = vpack.c.b16 %v608, %v604
        %v657 = vpack.c.b16 %v609, %v605
        %v658 = vpack.c.b16 %v614, %v610
        %v659 = vpack.c.b16 %v615, %v611
        %v660 = vpack.c.b16 %v616, %v612
        %v661 = vpack.c.b16 %v617, %v613
        %v662 = vpack.c.b16 %v622, %v618
        %v663 = vpack.c.b16 %v623, %v619
        %v664 = vpack.c.b16 %v624, %v620
        %v665 = vpack.c.b16 %v625, %v621
        %v666 = vpack.c.b16 %v630, %v626
        %v667 = vpack.c.b16 %v631, %v627
        %v668 = vpack.c.b16 %v632, %v628
        %v669 = vpack.c.b16 %v633, %v629
        %v670 = vpack.c.b16 %v638, %v634
        %v671 = vpack.c.b16 %v639, %v635
        %v672 = vpack.c.b16 %v640, %v636
        %v673 = vpack.c.b16 %v641, %v637
        %706 = vmatprep.subr.bf16.mxu0 %v671
        %707 = vmatpush1.bf16.msra.mxu0 %v670
        %708 = vmatprep.subr.bf16.mxu0 %v667
        %709 = vmatpush1.bf16.msra.mxu0 %v666
        %710 = vmatprep.subr.bf16.mxu0 %v663
        %711 = vmatpush1.bf16.msra.mxu0 %v662
        %712 = vmatprep.subr.bf16.mxu0 %v659
        %713 = vmatpush1.bf16.msra.mxu0 %v658
        %714 = vmatprep.subr.bf16.mxu0 %v655
        %715 = vmatpush1.bf16.msra.mxu0 %v654
        %716 = vmatprep.subr.bf16.mxu0 %v651
        %717 = vmatpush1.bf16.msra.mxu0 %v650
        %718 = vmatprep.subr.bf16.mxu0 %v647
        %719 = vmatpush1.bf16.msra.mxu0 %v646
        %720 = vmatprep.subr.bf16.mxu0 %v643
        %721 = vmatpush1.bf16.msra.mxu0 %v642
        %722 = vmatprep.subr.bf16.mxu0 0
        %723 = vmatpush2.bf16.msra.mxu0 0
        %724 = vmatprep.subr.bf16.mxu0 0
        %725 = vmatpush2.bf16.msra.mxu0 0
        %726 = vmatprep.subr.bf16.mxu0 0
        %727 = vmatpush2.bf16.msra.mxu0 0
        %728 = vmatprep.subr.bf16.mxu0 0
        %729 = vmatpush2.bf16.msra.mxu0 0
        %730 = vmatprep.subr.bf16.mxu0 0
        %731 = vmatpush2.bf16.msra.mxu0 0
        %732 = vmatprep.subr.bf16.mxu0 0
        %733 = vmatpush2.bf16.msra.mxu0 0
        %734 = vmatprep.subr.bf16.mxu0 0
        %735 = vmatpush2.bf16.msra.mxu0 0
        %736 = vmatprep.subr.bf16.mxu0 0
        %737 = vmatpush2.bf16.msra.mxu0 0
        %738 = vmatprep.mubr.bf16.mxu0 0
        %739 = vmatmul.mubr.bf16.gmra.mxu0 %v538
        %v740 = vpop.f32.mrf.mxu0
        %v741 = vadd.f32 %v505, %v740
        %v742 = vpop.f32.mrf.mxu0
        %v743 = vadd.f32 %v509, %v742
        %v744 = vpop.f32.mrf.mxu0
        %v745 = vadd.f32 %v505, %v744
        %v746 = vpop.f32.mrf.mxu0
        %v747 = vadd.f32 %v509, %v746
        %748 = vmatprep.mubr.bf16.mxu0 0
        %749 = vmatmul.mubr.bf16.gmra.mxu0 %v539
        %v750 = vpop.f32.mrf.mxu0
        %v751 = vadd.f32 %v505, %v750
        %v752 = vpop.f32.mrf.mxu0
        %v753 = vadd.f32 %v509, %v752
        %v754 = vpop.f32.mrf.mxu0
        %v755 = vadd.f32 %v505, %v754
        %v756 = vpop.f32.mrf.mxu0
        %v757 = vadd.f32 %v509, %v756
        %758 = vmatprep.mubr.bf16.mxu0 0
        %759 = vmatmul.mubr.bf16.gmra.mxu0 %v540
        %v760 = vpop.f32.mrf.mxu0
        %v761 = vadd.f32 %v505, %v760
        %v762 = vpop.f32.mrf.mxu0
        %v763 = vadd.f32 %v509, %v762
        %v764 = vpop.f32.mrf.mxu0
        %v765 = vadd.f32 %v505, %v764
        %v766 = vpop.f32.mrf.mxu0
        %v767 = vadd.f32 %v509, %v766
        %768 = vmatprep.mubr.bf16.mxu0 0
        %769 = vmatmul.mubr.bf16.gmra.mxu0 %v541
        %v770 = vpop.f32.mrf.mxu0
        %v771 = vadd.f32 %v505, %v770
        %v772 = vpop.f32.mrf.mxu0
        %v773 = vadd.f32 %v509, %v772
        %v774 = vpop.f32.mrf.mxu0
        %v775 = vadd.f32 %v505, %v774
        %v776 = vpop.f32.mrf.mxu0
        %v777 = vadd.f32 %v509, %v776
        %778 = vdwg.mxu0
        %779 = vmatprep.subr.bf16.mxu0 %v673
        %780 = vmatpush1.bf16.msra.mxu0 %v672
        %781 = vmatprep.subr.bf16.mxu0 %v669
        %782 = vmatpush1.bf16.msra.mxu0 %v668
        %783 = vmatprep.subr.bf16.mxu0 %v665
        %784 = vmatpush1.bf16.msra.mxu0 %v664
        %785 = vmatprep.subr.bf16.mxu0 %v661
        %786 = vmatpush1.bf16.msra.mxu0 %v660
        %787 = vmatprep.subr.bf16.mxu0 %v657
        %788 = vmatpush1.bf16.msra.mxu0 %v656
        %789 = vmatprep.subr.bf16.mxu0 %v653
        %790 = vmatpush1.bf16.msra.mxu0 %v652
        %791 = vmatprep.subr.bf16.mxu0 %v649
        %792 = vmatpush1.bf16.msra.mxu0 %v648
        %793 = vmatprep.subr.bf16.mxu0 %v645
        %794 = vmatpush1.bf16.msra.mxu0 %v644
        %795 = vmatprep.subr.bf16.mxu0 0
        %796 = vmatpush2.bf16.msra.mxu0 0
        %797 = vmatprep.subr.bf16.mxu0 0
        %798 = vmatpush2.bf16.msra.mxu0 0
        %799 = vmatprep.subr.bf16.mxu0 0
        %800 = vmatpush2.bf16.msra.mxu0 0
        %801 = vmatprep.subr.bf16.mxu0 0
        %802 = vmatpush2.bf16.msra.mxu0 0
        %803 = vmatprep.subr.bf16.mxu0 0
        %804 = vmatpush2.bf16.msra.mxu0 0
        %805 = vmatprep.subr.bf16.mxu0 0
        %806 = vmatpush2.bf16.msra.mxu0 0
        %807 = vmatprep.subr.bf16.mxu0 0
        %808 = vmatpush2.bf16.msra.mxu0 0
        %809 = vmatprep.subr.bf16.mxu0 0
        %810 = vmatpush2.bf16.msra.mxu0 0
        %811 = vmatprep.mubr.bf16.mxu0 0
        %812 = vmatmul.mubr.bf16.gmra.mxu0 %v538
        %v813 = vpop.f32.mrf.mxu0
        %v814 = vadd.f32 %v513, %v813
        %v815 = vpop.f32.mrf.mxu0
        %v816 = vadd.f32 %v517, %v815
        %v817 = vpop.f32.mrf.mxu0
        %v818 = vadd.f32 %v513, %v817
        %v819 = vpop.f32.mrf.mxu0
        %v820 = vadd.f32 %v517, %v819
        %821 = vmatprep.mubr.bf16.mxu0 0
        %822 = vmatmul.mubr.bf16.gmra.mxu0 %v539
        %v823 = vpop.f32.mrf.mxu0
        %v824 = vadd.f32 %v513, %v823
        %v825 = vpop.f32.mrf.mxu0
        %v826 = vadd.f32 %v517, %v825
        %v827 = vpop.f32.mrf.mxu0
        %v828 = vadd.f32 %v513, %v827
        %v829 = vpop.f32.mrf.mxu0
        %v830 = vadd.f32 %v517, %v829
        %831 = vmatprep.mubr.bf16.mxu0 0
        %832 = vmatmul.mubr.bf16.gmra.mxu0 %v540
        %v833 = vpop.f32.mrf.mxu0
        %v834 = vadd.f32 %v513, %v833
        %v835 = vpop.f32.mrf.mxu0
        %v836 = vadd.f32 %v517, %v835
        %v837 = vpop.f32.mrf.mxu0
        %v838 = vadd.f32 %v513, %v837
        %v839 = vpop.f32.mrf.mxu0
        %v840 = vadd.f32 %v517, %v839
        %841 = vmatprep.mubr.bf16.mxu0 0
        %842 = vmatmul.mubr.bf16.gmra.mxu0 %v541
        %v843 = vpop.f32.mrf.mxu0
        %v844 = vadd.f32 %v513, %v843
        %v845 = vpop.f32.mrf.mxu0
        %v846 = vadd.f32 %v517, %v845
        %v847 = vpop.f32.mrf.mxu0
        %v848 = vadd.f32 %v513, %v847
        %v849 = vpop.f32.mrf.mxu0
        %v850 = vadd.f32 %v517, %v849
        %851 = vdwg.mxu0
        %852 = vst [vmem:[#allocation2] sm:$0xff] %v741
        %853 = vst [vmem:[#allocation2 + $0x8] sm:$0xff] %v743
        %854 = vst [vmem:[#allocation2 + $0x10] sm:$0xff] %v814
        %855 = vst [vmem:[#allocation2 + $0x18] sm:$0xff] %v816
        %856 = vst [vmem:[#allocation2 + $0x20] sm:$0xff] %v745
        %857 = vst [vmem:[#allocation2 + $0x28] sm:$0xff] %v747
        %858 = vst [vmem:[#allocation2 + $0x30] sm:$0xff] %v818
        %859 = vst [vmem:[#allocation2 + $0x38] sm:$0xff] %v820
        %860 = vst [vmem:[#allocation2 + $0x40] sm:$0xff] %v751
        %861 = vst [vmem:[#allocation2 + $0x48] sm:$0xff] %v753
        %862 = vst [vmem:[#allocation2 + $0x50] sm:$0xff] %v824
        %863 = vst [vmem:[#allocation2 + $0x58] sm:$0xff] %v826
        %864 = vst [vmem:[#allocation2 + $0x60] sm:$0xff] %v755
        %865 = vst [vmem:[#allocation2 + $0x68] sm:$0xff] %v757
        %866 = vst [vmem:[#allocation2 + $0x70] sm:$0xff] %v828
        %867 = vst [vmem:[#allocation2 + $0x78] sm:$0xff] %v830
        %868 = vst [vmem:[#allocation2 + $0x80] sm:$0xff] %v761
        %869 = vst [vmem:[#allocation2 + $0x88] sm:$0xff] %v763
        %870 = vst [vmem:[#allocation2 + $0x90] sm:$0xff] %v834
        %871 = vst [vmem:[#allocation2 + $0x98] sm:$0xff] %v836
        %872 = vst [vmem:[#allocation2 + $0xa0] sm:$0xff] %v765
        %873 = vst [vmem:[#allocation2 + $0xa8] sm:$0xff] %v767
        %874 = vst [vmem:[#allocation2 + $0xb0] sm:$0xff] %v838
        %875 = vst [vmem:[#allocation2 + $0xb8] sm:$0xff] %v840
        %876 = vst [vmem:[#allocation2 + $0xc0] sm:$0xff] %v771
        %877 = vst [vmem:[#allocation2 + $0xc8] sm:$0xff] %v773
        %878 = vst [vmem:[#allocation2 + $0xd0] sm:$0xff] %v844
        %879 = vst [vmem:[#allocation2 + $0xd8] sm:$0xff] %v846
        %880 = vst [vmem:[#allocation2 + $0xe0] sm:$0xff] %v775
        %881 = vst [vmem:[#allocation2 + $0xe8] sm:$0xff] %v777
        %882 = vst [vmem:[#allocation2 + $0xf0] sm:$0xff] %v848
        %883 = vst [vmem:[#allocation2 + $0xf8] sm:$0xff] %v850
        %v884 = vld [vmem:[#allocation4] sm:$0xff]
        %v885 = vld [vmem:[#allocation4 + $0x8] sm:$0xff]
        %s886 = scalar_lea.vmem [#allocation4], 16
        %v887 = vld [vmem:[%s886] sm:$0xff]
        %v888 = vld [vmem:[%s886 + $0x8] sm:$0xff]
        %v889 = vld [vmem:[#allocation2] sm:$0xff]
        %v890 = vld [vmem:[#allocation2 + $0x8] sm:$0xff]
        %v891 = vld [vmem:[#allocation2 + $0x10] sm:$0xff]
        %v892 = vld [vmem:[#allocation2 + $0x18] sm:$0xff]
        %v893 = vld [vmem:[#allocation2 + $0x20] sm:$0xff]
        %v894 = vld [vmem:[#allocation2 + $0x28] sm:$0xff]
        %v895 = vld [vmem:[#allocation2 + $0x30] sm:$0xff]
        %v896 = vld [vmem:[#allocation2 + $0x38] sm:$0xff]
        %v897 = vpack.c.bf16 %v885, %v884
        %v898 = vld [vmem:[#allocation7] sm:$0xff]
        %v899 = vld [vmem:[#allocation7 + $0x8] sm:$0xff]
        %v900 = vld [vmem:[#allocation7 + $0x10] sm:$0xff]
        %v901 = vld [vmem:[#allocation7 + $0x18] sm:$0xff]
        %v902 = vld [vmem:[#allocation7 + $0x20] sm:$0xff]
        %v903 = vld [vmem:[#allocation7 + $0x28] sm:$0xff]
        %v904 = vld [vmem:[#allocation7 + $0x30] sm:$0xff]
        %v905 = vld [vmem:[#allocation7 + $0x38] sm:$0xff]
        %v906 = vld [vmem:[#allocation7 + $0x40] sm:$0xff]
        %v907 = vld [vmem:[#allocation7 + $0x48] sm:$0xff]
        %v908 = vld [vmem:[#allocation7 + $0x50] sm:$0xff]
        %v909 = vld [vmem:[#allocation7 + $0x58] sm:$0xff]
        %v910 = vld [vmem:[#allocation7 + $0x60] sm:$0xff]
        %v911 = vld [vmem:[#allocation7 + $0x68] sm:$0xff]
        %v912 = vld [vmem:[#allocation7 + $0x70] sm:$0xff]
        %v913 = vld [vmem:[#allocation7 + $0x78] sm:$0xff]
        %v914 = vld [vmem:[#allocation7 + $0x80] sm:$0xff]
        %v915 = vld [vmem:[#allocation7 + $0x88] sm:$0xff]
        %v916 = vld [vmem:[#allocation7 + $0x90] sm:$0xff]
        %v917 = vld [vmem:[#allocation7 + $0x98] sm:$0xff]
        %v918 = vld [vmem:[#allocation7 + $0xa0] sm:$0xff]
        %v919 = vld [vmem:[#allocation7 + $0xa8] sm:$0xff]
        %v920 = vld [vmem:[#allocation7 + $0xb0] sm:$0xff]
        %v921 = vld [vmem:[#allocation7 + $0xb8] sm:$0xff]
        %v922 = vld [vmem:[#allocation7 + $0xc0] sm:$0xff]
        %v923 = vld [vmem:[#allocation7 + $0xc8] sm:$0xff]
        %v924 = vld [vmem:[#allocation7 + $0xd0] sm:$0xff]
        %v925 = vld [vmem:[#allocation7 + $0xd8] sm:$0xff]
        %v926 = vld [vmem:[#allocation7 + $0xe0] sm:$0xff]
        %v927 = vld [vmem:[#allocation7 + $0xe8] sm:$0xff]
        %v928 = vld [vmem:[#allocation7 + $0xf0] sm:$0xff]
        %v929 = vld [vmem:[#allocation7 + $0xf8] sm:$0xff]
        %v962 = vunpack.c.l.b16 %v898
        %v963 = vunpack.c.h.b16 %v898
        %v964 = vunpack.c.l.b16 %v899
        %v965 = vunpack.c.h.b16 %v899
        %v966 = vunpack.c.l.b16 %v900
        %v967 = vunpack.c.h.b16 %v900
        %v968 = vunpack.c.l.b16 %v901
        %v969 = vunpack.c.h.b16 %v901
        %v970 = vunpack.c.l.b16 %v902
        %v971 = vunpack.c.h.b16 %v902
        %v972 = vunpack.c.l.b16 %v903
        %v973 = vunpack.c.h.b16 %v903
        %v974 = vunpack.c.l.b16 %v904
        %v975 = vunpack.c.h.b16 %v904
        %v976 = vunpack.c.l.b16 %v905
        %v977 = vunpack.c.h.b16 %v905
        %v978 = vunpack.c.l.b16 %v906
        %v979 = vunpack.c.h.b16 %v906
        %v980 = vunpack.c.l.b16 %v907
        %v981 = vunpack.c.h.b16 %v907
        %v982 = vunpack.c.l.b16 %v908
        %v983 = vunpack.c.h.b16 %v908
        %v984 = vunpack.c.l.b16 %v909
        %v985 = vunpack.c.h.b16 %v909
        %v986 = vunpack.c.l.b16 %v910
        %v987 = vunpack.c.h.b16 %v910
        %v988 = vunpack.c.l.b16 %v911
        %v989 = vunpack.c.h.b16 %v911
        %v990 = vunpack.c.l.b16 %v912
        %v991 = vunpack.c.h.b16 %v912
        %v992 = vunpack.c.l.b16 %v913
        %v993 = vunpack.c.h.b16 %v913
        %v994 = vunpack.c.l.b16 %v914
        %v995 = vunpack.c.h.b16 %v914
        %v996 = vunpack.c.l.b16 %v915
        %v997 = vunpack.c.h.b16 %v915
        %v998 = vunpack.c.l.b16 %v916
        %v999 = vunpack.c.h.b16 %v916
        %v1000 = vunpack.c.l.b16 %v917
        %v1001 = vunpack.c.h.b16 %v917
        %v1002 = vunpack.c.l.b16 %v918
        %v1003 = vunpack.c.h.b16 %v918
        %v1004 = vunpack.c.l.b16 %v919
        %v1005 = vunpack.c.h.b16 %v919
        %v1006 = vunpack.c.l.b16 %v920
        %v1007 = vunpack.c.h.b16 %v920
        %v1008 = vunpack.c.l.b16 %v921
        %v1009 = vunpack.c.h.b16 %v921
        %v1010 = vunpack.c.l.b16 %v922
        %v1011 = vunpack.c.h.b16 %v922
        %v1012 = vunpack.c.l.b16 %v923
        %v1013 = vunpack.c.h.b16 %v923
        %v1014 = vunpack.c.l.b16 %v924
        %v1015 = vunpack.c.h.b16 %v924
        %v1016 = vunpack.c.l.b16 %v925
        %v1017 = vunpack.c.h.b16 %v925
        %v1018 = vunpack.c.l.b16 %v926
        %v1019 = vunpack.c.h.b16 %v926
        %v1020 = vunpack.c.l.b16 %v927
        %v1021 = vunpack.c.h.b16 %v927
        %v1022 = vunpack.c.l.b16 %v928
        %v1023 = vunpack.c.h.b16 %v928
        %v1024 = vunpack.c.l.b16 %v929
        %v1025 = vunpack.c.h.b16 %v929
        %v1026 = vpack.c.b16 %v966, %v962
        %v1027 = vpack.c.b16 %v967, %v963
        %v1028 = vpack.c.b16 %v968, %v964
        %v1029 = vpack.c.b16 %v969, %v965
        %v1030 = vpack.c.b16 %v974, %v970
        %v1031 = vpack.c.b16 %v975, %v971
        %v1032 = vpack.c.b16 %v976, %v972
        %v1033 = vpack.c.b16 %v977, %v973
        %v1034 = vpack.c.b16 %v982, %v978
        %v1035 = vpack.c.b16 %v983, %v979
        %v1036 = vpack.c.b16 %v984, %v980
        %v1037 = vpack.c.b16 %v985, %v981
        %v1038 = vpack.c.b16 %v990, %v986
        %v1039 = vpack.c.b16 %v991, %v987
        %v1040 = vpack.c.b16 %v992, %v988
        %v1041 = vpack.c.b16 %v993, %v989
        %v1042 = vpack.c.b16 %v998, %v994
        %v1043 = vpack.c.b16 %v999, %v995
        %v1044 = vpack.c.b16 %v1000, %v996
        %v1045 = vpack.c.b16 %v1001, %v997
        %v1046 = vpack.c.b16 %v1006, %v1002
        %v1047 = vpack.c.b16 %v1007, %v1003
        %v1048 = vpack.c.b16 %v1008, %v1004
        %v1049 = vpack.c.b16 %v1009, %v1005
        %v1050 = vpack.c.b16 %v1014, %v1010
        %v1051 = vpack.c.b16 %v1015, %v1011
        %v1052 = vpack.c.b16 %v1016, %v1012
        %v1053 = vpack.c.b16 %v1017, %v1013
        %v1054 = vpack.c.b16 %v1022, %v1018
        %v1055 = vpack.c.b16 %v1023, %v1019
        %v1056 = vpack.c.b16 %v1024, %v1020
        %v1057 = vpack.c.b16 %v1025, %v1021
        %1090 = vmatprep.subr.bf16.mxu0 %v1055
        %1091 = vmatpush1.bf16.msra.mxu0 %v1054
        %1092 = vmatprep.subr.bf16.mxu0 %v1051
        %1093 = vmatpush1.bf16.msra.mxu0 %v1050
        %1094 = vmatprep.subr.bf16.mxu0 %v1047
        %1095 = vmatpush1.bf16.msra.mxu0 %v1046
        %1096 = vmatprep.subr.bf16.mxu0 %v1043
        %1097 = vmatpush1.bf16.msra.mxu0 %v1042
        %1098 = vmatprep.subr.bf16.mxu0 %v1039
        %1099 = vmatpush1.bf16.msra.mxu0 %v1038
        %1100 = vmatprep.subr.bf16.mxu0 %v1035
        %1101 = vmatpush1.bf16.msra.mxu0 %v1034
        %1102 = vmatprep.subr.bf16.mxu0 %v1031
        %1103 = vmatpush1.bf16.msra.mxu0 %v1030
        %1104 = vmatprep.subr.bf16.mxu0 %v1027
        %1105 = vmatpush1.bf16.msra.mxu0 %v1026
        %1106 = vmatprep.subr.bf16.mxu0 0
        %1107 = vmatpush2.bf16.msra.mxu0 0
        %1108 = vmatprep.subr.bf16.mxu0 0
        %1109 = vmatpush2.bf16.msra.mxu0 0
        %1110 = vmatprep.subr.bf16.mxu0 0
        %1111 = vmatpush2.bf16.msra.mxu0 0
        %1112 = vmatprep.subr.bf16.mxu0 0
        %1113 = vmatpush2.bf16.msra.mxu0 0
        %1114 = vmatprep.subr.bf16.mxu0 0
        %1115 = vmatpush2.bf16.msra.mxu0 0
        %1116 = vmatprep.subr.bf16.mxu0 0
        %1117 = vmatpush2.bf16.msra.mxu0 0
        %1118 = vmatprep.subr.bf16.mxu0 0
        %1119 = vmatpush2.bf16.msra.mxu0 0
        %1120 = vmatprep.subr.bf16.mxu0 0
        %1121 = vmatpush2.bf16.msra.mxu0 0
        %1122 = vmatprep.mubr.bf16.mxu0 0
        %1123 = vmatmul.mubr.bf16.gmra.mxu0 %v897
        %v1124 = vpop.f32.mrf.mxu0
        %v1125 = vadd.f32 0.0, %v1124
        %v1126 = vpop.f32.mrf.mxu0
        %v1127 = vadd.f32 0.0, %v1126
        %v1128 = vpop.f32.mrf.mxu0
        %v1129 = vadd.f32 0.0, %v1128
        %v1130 = vpop.f32.mrf.mxu0
        %v1131 = vadd.f32 0.0, %v1130
        %1132 = vdwg.mxu0
        %1133 = vmatprep.subr.bf16.mxu0 %v1057
        %1134 = vmatpush1.bf16.msra.mxu0 %v1056
        %1135 = vmatprep.subr.bf16.mxu0 %v1053
        %1136 = vmatpush1.bf16.msra.mxu0 %v1052
        %1137 = vmatprep.subr.bf16.mxu0 %v1049
        %1138 = vmatpush1.bf16.msra.mxu0 %v1048
        %1139 = vmatprep.subr.bf16.mxu0 %v1045
        %1140 = vmatpush1.bf16.msra.mxu0 %v1044
        %1141 = vmatprep.subr.bf16.mxu0 %v1041
        %1142 = vmatpush1.bf16.msra.mxu0 %v1040
        %1143 = vmatprep.subr.bf16.mxu0 %v1037
        %1144 = vmatpush1.bf16.msra.mxu0 %v1036
        %1145 = vmatprep.subr.bf16.mxu0 %v1033
        %1146 = vmatpush1.bf16.msra.mxu0 %v1032
        %1147 = vmatprep.subr.bf16.mxu0 %v1029
        %1148 = vmatpush1.bf16.msra.mxu0 %v1028
        %1149 = vmatprep.subr.bf16.mxu0 0
        %1150 = vmatpush2.bf16.msra.mxu0 0
        %1151 = vmatprep.subr.bf16.mxu0 0
        %1152 = vmatpush2.bf16.msra.mxu0 0
        %1153 = vmatprep.subr.bf16.mxu0 0
        %1154 = vmatpush2.bf16.msra.mxu0 0
        %1155 = vmatprep.subr.bf16.mxu0 0
        %1156 = vmatpush2.bf16.msra.mxu0 0
        %1157 = vmatprep.subr.bf16.mxu0 0
        %1158 = vmatpush2.bf16.msra.mxu0 0
        %1159 = vmatprep.subr.bf16.mxu0 0
        %1160 = vmatpush2.bf16.msra.mxu0 0
        %1161 = vmatprep.subr.bf16.mxu0 0
        %1162 = vmatpush2.bf16.msra.mxu0 0
        %1163 = vmatprep.subr.bf16.mxu0 0
        %1164 = vmatpush2.bf16.msra.mxu0 0
        %1165 = vmatprep.mubr.bf16.mxu0 0
        %1166 = vmatmul.mubr.bf16.gmra.mxu0 %v897
        %v1167 = vpop.f32.mrf.mxu0
        %v1168 = vadd.f32 0.0, %v1167
        %v1169 = vpop.f32.mrf.mxu0
        %v1170 = vadd.f32 0.0, %v1169
        %v1171 = vpop.f32.mrf.mxu0
        %v1172 = vadd.f32 0.0, %v1171
        %v1173 = vpop.f32.mrf.mxu0
        %v1174 = vadd.f32 0.0, %v1173
        %1175 = vdwg.mxu0
        %v1176 = vadd.f32 %v889, %v1125
        %v1177 = vadd.f32 %v890, %v1127
        %v1178 = vadd.f32 %v891, %v1168
        %v1179 = vadd.f32 %v892, %v1170
        %v1180 = vadd.f32 %v893, %v1129
        %v1181 = vadd.f32 %v894, %v1131
        %v1182 = vadd.f32 %v895, %v1172
        %v1183 = vadd.f32 %v896, %v1174
        %v1184 = vxor.u32 %v1176, 2147483648
        %v1185 = vxor.u32 %v1177, 2147483648
        %v1186 = vxor.u32 %v1178, 2147483648
        %v1187 = vxor.u32 %v1180, 2147483648
        %v1188 = vxor.u32 %v1181, 2147483648
        %v1189 = vxor.u32 %v1182, 2147483648
        %v1190 = vmul.f32 %v1184, 1.442695
        %v1191 = vpow.pop %v1190
        %v1192 = vmul.f32 %v1185, 1.442695
        %v1193 = vpow.pop %v1192
        %v1194 = vmul.f32 %v1186, 1.442695
        %v1195 = vpow.pop %v1194
        %v1196 = vmul.f32 %v1187, 1.442695
        %v1197 = vpow.pop %v1196
        %v1198 = vmul.f32 %v1188, 1.442695
        %v1199 = vpow.pop %v1198
        %v1200 = vmul.f32 %v1189, 1.442695
        %v1201 = vpow.pop %v1200
        %v1202 = vadd.f32 %v1191, 1.0
        %v1203 = vadd.f32 %v1193, 1.0
        %v1204 = vadd.f32 %v1195, 1.0
        %v1205 = vadd.f32 %v1197, 1.0
        %v1206 = vadd.f32 %v1199, 1.0
        %v1207 = vadd.f32 %v1201, 1.0
        %v1208 = vrcp.pop %v1202
        %v1209 = vmul.f32 1.0, %v1208
        %v1210 = vrcp.pop %v1203
        %v1211 = vmul.f32 1.0, %v1210
        %v1212 = vrcp.pop %v1204
        %v1213 = vmul.f32 1.0, %v1212
        %v1214 = vrcp.pop %v1205
        %v1215 = vmul.f32 1.0, %v1214
        %v1216 = vrcp.pop %v1206
        %v1217 = vmul.f32 1.0, %v1216
        %v1218 = vrcp.pop %v1207
        %v1219 = vmul.f32 1.0, %v1218
        %v1220 = vtanh.pop %v1179
        %v1221 = vtanh.pop %v1183
        %v1222 = vmul.f32 %v1211, %v887
        %v1223 = vmul.f32 %v1217, %v888
        %v1224 = vmul.f32 %v1209, %v1220
        %v1225 = vmul.f32 %v1215, %v1221
        %v1226 = vadd.f32 %v1222, %v1224
        %v1227 = vadd.f32 %v1223, %v1225
        %v1228 = vtanh.pop %v1226
        %v1229 = vtanh.pop %v1227
        %v1230 = vmul.f32 %v1213, %v1228
        %v1231 = vmul.f32 %v1219, %v1229
        %v1232 = vpack.c.bf16 %v1231, %v1230
        %v1234 = vunpack.c.l.b16 %v1232
        %v1235 = vunpack.c.h.b16 %v1232
        %v1236 = vpack.c.b16 %v1234, %v1234
        %v1237 = vpack.c.b16 %v1235, %v1235
        %1240 = vst [vmem:[#allocation3] sm:$0xf] %v1236
        %1241 = vst [vmem:[#allocation3 + $0x4] sm:$0xf] %v1237
        %v1242 = vld [vmem:[#allocation2 + $0x40] sm:$0xff]
        %v1243 = vld [vmem:[#allocation2 + $0x48] sm:$0xff]
        %v1244 = vld [vmem:[#allocation2 + $0x50] sm:$0xff]
        %v1245 = vld [vmem:[#allocation2 + $0x58] sm:$0xff]
        %v1246 = vld [vmem:[#allocation2 + $0x60] sm:$0xff]
        %v1247 = vld [vmem:[#allocation2 + $0x68] sm:$0xff]
        %v1248 = vld [vmem:[#allocation2 + $0x70] sm:$0xff]
        %v1249 = vld [vmem:[#allocation2 + $0x78] sm:$0xff]
        %v1250 = vld [vmem:[#allocation7] sm:$0xff]
        %v1251 = vld [vmem:[#allocation7 + $0x8] sm:$0xff]
        %v1252 = vld [vmem:[#allocation7 + $0x10] sm:$0xff]
        %v1253 = vld [vmem:[#allocation7 + $0x18] sm:$0xff]
        %v1254 = vld [vmem:[#allocation7 + $0x20] sm:$0xff]
        %v1255 = vld [vmem:[#allocation7 + $0x28] sm:$0xff]
        %v1256 = vld [vmem:[#allocation7 + $0x30] sm:$0xff]
        %v1257 = vld [vmem:[#allocation7 + $0x38] sm:$0xff]
        %v1258 = vld [vmem:[#allocation7 + $0x40] sm:$0xff]
        %v1259 = vld [vmem:[#allocation7 + $0x48] sm:$0xff]
        %v1260 = vld [vmem:[#allocation7 + $0x50] sm:$0xff]
        %v1261 = vld [vmem:[#allocation7 + $0x58] sm:$0xff]
        %v1262 = vld [vmem:[#allocation7 + $0x60] sm:$0xff]
        %v1263 = vld [vmem:[#allocation7 + $0x68] sm:$0xff]
        %v1264 = vld [vmem:[#allocation7 + $0x70] sm:$0xff]
        %v1265 = vld [vmem:[#allocation7 + $0x78] sm:$0xff]
        %v1266 = vld [vmem:[#allocation7 + $0x80] sm:$0xff]
        %v1267 = vld [vmem:[#allocation7 + $0x88] sm:$0xff]
        %v1268 = vld [vmem:[#allocation7 + $0x90] sm:$0xff]
        %v1269 = vld [vmem:[#allocation7 + $0x98] sm:$0xff]
        %v1270 = vld [vmem:[#allocation7 + $0xa0] sm:$0xff]
        %v1271 = vld [vmem:[#allocation7 + $0xa8] sm:$0xff]
        %v1272 = vld [vmem:[#allocation7 + $0xb0] sm:$0xff]
        %v1273 = vld [vmem:[#allocation7 + $0xb8] sm:$0xff]
        %v1274 = vld [vmem:[#allocation7 + $0xc0] sm:$0xff]
        %v1275 = vld [vmem:[#allocation7 + $0xc8] sm:$0xff]
        %v1276 = vld [vmem:[#allocation7 + $0xd0] sm:$0xff]
        %v1277 = vld [vmem:[#allocation7 + $0xd8] sm:$0xff]
        %v1278 = vld [vmem:[#allocation7 + $0xe0] sm:$0xff]
        %v1279 = vld [vmem:[#allocation7 + $0xe8] sm:$0xff]
        %v1280 = vld [vmem:[#allocation7 + $0xf0] sm:$0xff]
        %v1281 = vld [vmem:[#allocation7 + $0xf8] sm:$0xff]
        %v1314 = vunpack.c.l.b16 %v1250
        %v1315 = vunpack.c.h.b16 %v1250
        %v1316 = vunpack.c.l.b16 %v1251
        %v1317 = vunpack.c.h.b16 %v1251
        %v1318 = vunpack.c.l.b16 %v1252
        %v1319 = vunpack.c.h.b16 %v1252
        %v1320 = vunpack.c.l.b16 %v1253
        %v1321 = vunpack.c.h.b16 %v1253
        %v1322 = vunpack.c.l.b16 %v1254
        %v1323 = vunpack.c.h.b16 %v1254
        %v1324 = vunpack.c.l.b16 %v1255
        %v1325 = vunpack.c.h.b16 %v1255
        %v1326 = vunpack.c.l.b16 %v1256
        %v1327 = vunpack.c.h.b16 %v1256
        %v1328 = vunpack.c.l.b16 %v1257
        %v1329 = vunpack.c.h.b16 %v1257
        %v1330 = vunpack.c.l.b16 %v1258
        %v1331 = vunpack.c.h.b16 %v1258
        %v1332 = vunpack.c.l.b16 %v1259
        %v1333 = vunpack.c.h.b16 %v1259
        %v1334 = vunpack.c.l.b16 %v1260
        %v1335 = vunpack.c.h.b16 %v1260
        %v1336 = vunpack.c.l.b16 %v1261
        %v1337 = vunpack.c.h.b16 %v1261
        %v1338 = vunpack.c.l.b16 %v1262
        %v1339 = vunpack.c.h.b16 %v1262
        %v1340 = vunpack.c.l.b16 %v1263
        %v1341 = vunpack.c.h.b16 %v1263
        %v1342 = vunpack.c.l.b16 %v1264
        %v1343 = vunpack.c.h.b16 %v1264
        %v1344 = vunpack.c.l.b16 %v1265
        %v1345 = vunpack.c.h.b16 %v1265
        %v1346 = vunpack.c.l.b16 %v1266
        %v1347 = vunpack.c.h.b16 %v1266
        %v1348 = vunpack.c.l.b16 %v1267
        %v1349 = vunpack.c.h.b16 %v1267
        %v1350 = vunpack.c.l.b16 %v1268
        %v1351 = vunpack.c.h.b16 %v1268
        %v1352 = vunpack.c.l.b16 %v1269
        %v1353 = vunpack.c.h.b16 %v1269
        %v1354 = vunpack.c.l.b16 %v1270
        %v1355 = vunpack.c.h.b16 %v1270
        %v1356 = vunpack.c.l.b16 %v1271
        %v1357 = vunpack.c.h.b16 %v1271
        %v1358 = vunpack.c.l.b16 %v1272
        %v1359 = vunpack.c.h.b16 %v1272
        %v1360 = vunpack.c.l.b16 %v1273
        %v1361 = vunpack.c.h.b16 %v1273
        %v1362 = vunpack.c.l.b16 %v1274
        %v1363 = vunpack.c.h.b16 %v1274
        %v1364 = vunpack.c.l.b16 %v1275
        %v1365 = vunpack.c.h.b16 %v1275
        %v1366 = vunpack.c.l.b16 %v1276
        %v1367 = vunpack.c.h.b16 %v1276
        %v1368 = vunpack.c.l.b16 %v1277
        %v1369 = vunpack.c.h.b16 %v1277
        %v1370 = vunpack.c.l.b16 %v1278
        %v1371 = vunpack.c.h.b16 %v1278
        %v1372 = vunpack.c.l.b16 %v1279
        %v1373 = vunpack.c.h.b16 %v1279
        %v1374 = vunpack.c.l.b16 %v1280
        %v1375 = vunpack.c.h.b16 %v1280
        %v1376 = vunpack.c.l.b16 %v1281
        %v1377 = vunpack.c.h.b16 %v1281
        %v1378 = vpack.c.b16 %v1318, %v1314
        %v1379 = vpack.c.b16 %v1319, %v1315
        %v1380 = vpack.c.b16 %v1320, %v1316
        %v1381 = vpack.c.b16 %v1321, %v1317
        %v1382 = vpack.c.b16 %v1326, %v1322
        %v1383 = vpack.c.b16 %v1327, %v1323
        %v1384 = vpack.c.b16 %v1328, %v1324
        %v1385 = vpack.c.b16 %v1329, %v1325
        %v1386 = vpack.c.b16 %v1334, %v1330
        %v1387 = vpack.c.b16 %v1335, %v1331
        %v1388 = vpack.c.b16 %v1336, %v1332
        %v1389 = vpack.c.b16 %v1337, %v1333
        %v1390 = vpack.c.b16 %v1342, %v1338
        %v1391 = vpack.c.b16 %v1343, %v1339
        %v1392 = vpack.c.b16 %v1344, %v1340
        %v1393 = vpack.c.b16 %v1345, %v1341
        %v1394 = vpack.c.b16 %v1350, %v1346
        %v1395 = vpack.c.b16 %v1351, %v1347
        %v1396 = vpack.c.b16 %v1352, %v1348
        %v1397 = vpack.c.b16 %v1353, %v1349
        %v1398 = vpack.c.b16 %v1358, %v1354
        %v1399 = vpack.c.b16 %v1359, %v1355
        %v1400 = vpack.c.b16 %v1360, %v1356
        %v1401 = vpack.c.b16 %v1361, %v1357
        %v1402 = vpack.c.b16 %v1366, %v1362
        %v1403 = vpack.c.b16 %v1367, %v1363
        %v1404 = vpack.c.b16 %v1368, %v1364
        %v1405 = vpack.c.b16 %v1369, %v1365
        %v1406 = vpack.c.b16 %v1374, %v1370
        %v1407 = vpack.c.b16 %v1375, %v1371
        %v1408 = vpack.c.b16 %v1376, %v1372
        %v1409 = vpack.c.b16 %v1377, %v1373
        %1442 = vmatprep.subr.bf16.mxu0 %v1407
        %1443 = vmatpush1.bf16.msra.mxu0 %v1406
        %1444 = vmatprep.subr.bf16.mxu0 %v1403
        %1445 = vmatpush1.bf16.msra.mxu0 %v1402
        %1446 = vmatprep.subr.bf16.mxu0 %v1399
        %1447 = vmatpush1.bf16.msra.mxu0 %v1398
        %1448 = vmatprep.subr.bf16.mxu0 %v1395
        %1449 = vmatpush1.bf16.msra.mxu0 %v1394
        %1450 = vmatprep.subr.bf16.mxu0 %v1391
        %1451 = vmatpush1.bf16.msra.mxu0 %v1390
        %1452 = vmatprep.subr.bf16.mxu0 %v1387
        %1453 = vmatpush1.bf16.msra.mxu0 %v1386
        %1454 = vmatprep.subr.bf16.mxu0 %v1383
        %1455 = vmatpush1.bf16.msra.mxu0 %v1382
        %1456 = vmatprep.subr.bf16.mxu0 %v1379
        %1457 = vmatpush1.bf16.msra.mxu0 %v1378
        %1458 = vmatprep.subr.bf16.mxu0 0
        %1459 = vmatpush2.bf16.msra.mxu0 0
        %1460 = vmatprep.subr.bf16.mxu0 0
        %1461 = vmatpush2.bf16.msra.mxu0 0
        %1462 = vmatprep.subr.bf16.mxu0 0
        %1463 = vmatpush2.bf16.msra.mxu0 0
        %1464 = vmatprep.subr.bf16.mxu0 0
        %1465 = vmatpush2.bf16.msra.mxu0 0
        %1466 = vmatprep.subr.bf16.mxu0 0
        %1467 = vmatpush2.bf16.msra.mxu0 0
        %1468 = vmatprep.subr.bf16.mxu0 0
        %1469 = vmatpush2.bf16.msra.mxu0 0
        %1470 = vmatprep.subr.bf16.mxu0 0
        %1471 = vmatpush2.bf16.msra.mxu0 0
        %1472 = vmatprep.subr.bf16.mxu0 0
        %1473 = vmatpush2.bf16.msra.mxu0 0
        %1474 = vmatprep.mubr.bf16.mxu0 0
        %1475 = vmatmul.mubr.bf16.gmra.mxu0 %v1232
        %v1476 = vpop.f32.mrf.mxu0
        %v1477 = vadd.f32 0.0, %v1476
        %v1478 = vpop.f32.mrf.mxu0
        %v1479 = vadd.f32 0.0, %v1478
        %v1480 = vpop.f32.mrf.mxu0
        %v1481 = vadd.f32 0.0, %v1480
        %v1482 = vpop.f32.mrf.mxu0
        %v1483 = vadd.f32 0.0, %v1482
        %1484 = vdwg.mxu0
        %1485 = vmatprep.subr.bf16.mxu0 %v1409
        %1486 = vmatpush1.bf16.msra.mxu0 %v1408
        %1487 = vmatprep.subr.bf16.mxu0 %v1405
        %1488 = vmatpush1.bf16.msra.mxu0 %v1404
        %1489 = vmatprep.subr.bf16.mxu0 %v1401
        %1490 = vmatpush1.bf16.msra.mxu0 %v1400
        %1491 = vmatprep.subr.bf16.mxu0 %v1397
        %1492 = vmatpush1.bf16.msra.mxu0 %v1396
        %1493 = vmatprep.subr.bf16.mxu0 %v1393
        %1494 = vmatpush1.bf16.msra.mxu0 %v1392
        %1495 = vmatprep.subr.bf16.mxu0 %v1389
        %1496 = vmatpush1.bf16.msra.mxu0 %v1388
        %1497 = vmatprep.subr.bf16.mxu0 %v1385
        %1498 = vmatpush1.bf16.msra.mxu0 %v1384
        %1499 = vmatprep.subr.bf16.mxu0 %v1381
        %1500 = vmatpush1.bf16.msra.mxu0 %v1380
        %1501 = vmatprep.subr.bf16.mxu0 0
        %1502 = vmatpush2.bf16.msra.mxu0 0
        %1503 = vmatprep.subr.bf16.mxu0 0
        %1504 = vmatpush2.bf16.msra.mxu0 0
        %1505 = vmatprep.subr.bf16.mxu0 0
        %1506 = vmatpush2.bf16.msra.mxu0 0
        %1507 = vmatprep.subr.bf16.mxu0 0
        %1508 = vmatpush2.bf16.msra.mxu0 0
        %1509 = vmatprep.subr.bf16.mxu0 0
        %1510 = vmatpush2.bf16.msra.mxu0 0
        %1511 = vmatprep.subr.bf16.mxu0 0
        %1512 = vmatpush2.bf16.msra.mxu0 0
        %1513 = vmatprep.subr.bf16.mxu0 0
        %1514 = vmatpush2.bf16.msra.mxu0 0
        %1515 = vmatprep.subr.bf16.mxu0 0
        %1516 = vmatpush2.bf16.msra.mxu0 0
        %1517 = vmatprep.mubr.bf16.mxu0 0
        %1518 = vmatmul.mubr.bf16.gmra.mxu0 %v1232
        %v1519 = vpop.f32.mrf.mxu0
        %v1520 = vadd.f32 0.0, %v1519
        %v1521 = vpop.f32.mrf.mxu0
        %v1522 = vadd.f32 0.0, %v1521
        %v1523 = vpop.f32.mrf.mxu0
        %v1524 = vadd.f32 0.0, %v1523
        %v1525 = vpop.f32.mrf.mxu0
        %v1526 = vadd.f32 0.0, %v1525
        %1527 = vdwg.mxu0
        %v1528 = vadd.f32 %v1242, %v1477
        %v1529 = vadd.f32 %v1243, %v1479
        %v1530 = vadd.f32 %v1244, %v1520
        %v1531 = vadd.f32 %v1245, %v1522
        %v1532 = vadd.f32 %v1246, %v1481
        %v1533 = vadd.f32 %v1247, %v1483
        %v1534 = vadd.f32 %v1248, %v1524
        %v1535 = vadd.f32 %v1249, %v1526
        %v1536 = vxor.u32 %v1528, 2147483648
        %v1537 = vxor.u32 %v1529, 2147483648
        %v1538 = vxor.u32 %v1530, 2147483648
        %v1539 = vxor.u32 %v1532, 2147483648
        %v1540 = vxor.u32 %v1533, 2147483648
        %v1541 = vxor.u32 %v1534, 2147483648
        %v1542 = vmul.f32 %v1536, 1.442695
        %v1543 = vpow.pop %v1542
        %v1544 = vmul.f32 %v1537, 1.442695
        %v1545 = vpow.pop %v1544
        %v1546 = vmul.f32 %v1538, 1.442695
        %v1547 = vpow.pop %v1546
        %v1548 = vmul.f32 %v1539, 1.442695
        %v1549 = vpow.pop %v1548
        %v1550 = vmul.f32 %v1540, 1.442695
        %v1551 = vpow.pop %v1550
        %v1552 = vmul.f32 %v1541, 1.442695
        %v1553 = vpow.pop %v1552
        %v1554 = vadd.f32 %v1543, 1.0
        %v1555 = vadd.f32 %v1545, 1.0
        %v1556 = vadd.f32 %v1547, 1.0
        %v1557 = vadd.f32 %v1549, 1.0
        %v1558 = vadd.f32 %v1551, 1.0
        %v1559 = vadd.f32 %v1553, 1.0
        %v1560 = vrcp.pop %v1554
        %v1561 = vmul.f32 1.0, %v1560
        %v1562 = vrcp.pop %v1555
        %v1563 = vmul.f32 1.0, %v1562
        %v1564 = vrcp.pop %v1556
        %v1565 = vmul.f32 1.0, %v1564
        %v1566 = vrcp.pop %v1557
        %v1567 = vmul.f32 1.0, %v1566
        %v1568 = vrcp.pop %v1558
        %v1569 = vmul.f32 1.0, %v1568
        %v1570 = vrcp.pop %v1559
        %v1571 = vmul.f32 1.0, %v1570
        %v1572 = vtanh.pop %v1531
        %v1573 = vtanh.pop %v1535
        %v1574 = vmul.f32 %v1563, %v1226
        %v1575 = vmul.f32 %v1569, %v1227
        %v1576 = vmul.f32 %v1561, %v1572
        %v1577 = vmul.f32 %v1567, %v1573
        %v1578 = vadd.f32 %v1574, %v1576
        %v1579 = vadd.f32 %v1575, %v1577
        %v1580 = vtanh.pop %v1578
        %v1581 = vtanh.pop %v1579
        %v1582 = vmul.f32 %v1565, %v1580
        %v1583 = vmul.f32 %v1571, %v1581
        %v1584 = vpack.c.bf16 %v1583, %v1582
        %v1586 = vunpack.c.l.b16 %v1584
        %v1587 = vunpack.c.h.b16 %v1584
        %v1588 = vpack.c.b16 %v1586, %v1586
        %v1589 = vpack.c.b16 %v1587, %v1587
        %1592 = vst [vmem:[#allocation3 + $0x8] sm:$0xf] %v1588
        %1593 = vst [vmem:[#allocation3 + $0xc] sm:$0xf] %v1589
        %v1594 = vld [vmem:[#allocation2 + $0x80] sm:$0xff]
        %v1595 = vld [vmem:[#allocation2 + $0x88] sm:$0xff]
        %v1596 = vld [vmem:[#allocation2 + $0x90] sm:$0xff]
        %v1597 = vld [vmem:[#allocation2 + $0x98] sm:$0xff]
        %v1598 = vld [vmem:[#allocation2 + $0xa0] sm:$0xff]
        %v1599 = vld [vmem:[#allocation2 + $0xa8] sm:$0xff]
        %v1600 = vld [vmem:[#allocation2 + $0xb0] sm:$0xff]
        %v1601 = vld [vmem:[#allocation2 + $0xb8] sm:$0xff]
        %v1602 = vld [vmem:[#allocation7] sm:$0xff]
        %v1603 = vld [vmem:[#allocation7 + $0x8] sm:$0xff]
        %v1604 = vld [vmem:[#allocation7 + $0x10] sm:$0xff]
        %v1605 = vld [vmem:[#allocation7 + $0x18] sm:$0xff]
        %v1606 = vld [vmem:[#allocation7 + $0x20] sm:$0xff]
        %v1607 = vld [vmem:[#allocation7 + $0x28] sm:$0xff]
        %v1608 = vld [vmem:[#allocation7 + $0x30] sm:$0xff]
        %v1609 = vld [vmem:[#allocation7 + $0x38] sm:$0xff]
        %v1610 = vld [vmem:[#allocation7 + $0x40] sm:$0xff]
        %v1611 = vld [vmem:[#allocation7 + $0x48] sm:$0xff]
        %v1612 = vld [vmem:[#allocation7 + $0x50] sm:$0xff]
        %v1613 = vld [vmem:[#allocation7 + $0x58] sm:$0xff]
        %v1614 = vld [vmem:[#allocation7 + $0x60] sm:$0xff]
        %v1615 = vld [vmem:[#allocation7 + $0x68] sm:$0xff]
        %v1616 = vld [vmem:[#allocation7 + $0x70] sm:$0xff]
        %v1617 = vld [vmem:[#allocation7 + $0x78] sm:$0xff]
        %v1618 = vld [vmem:[#allocation7 + $0x80] sm:$0xff]
        %v1619 = vld [vmem:[#allocation7 + $0x88] sm:$0xff]
        %v1620 = vld [vmem:[#allocation7 + $0x90] sm:$0xff]
        %v1621 = vld [vmem:[#allocation7 + $0x98] sm:$0xff]
        %v1622 = vld [vmem:[#allocation7 + $0xa0] sm:$0xff]
        %v1623 = vld [vmem:[#allocation7 + $0xa8] sm:$0xff]
        %v1624 = vld [vmem:[#allocation7 + $0xb0] sm:$0xff]
        %v1625 = vld [vmem:[#allocation7 + $0xb8] sm:$0xff]
        %v1626 = vld [vmem:[#allocation7 + $0xc0] sm:$0xff]
        %v1627 = vld [vmem:[#allocation7 + $0xc8] sm:$0xff]
        %v1628 = vld [vmem:[#allocation7 + $0xd0] sm:$0xff]
        %v1629 = vld [vmem:[#allocation7 + $0xd8] sm:$0xff]
        %v1630 = vld [vmem:[#allocation7 + $0xe0] sm:$0xff]
        %v1631 = vld [vmem:[#allocation7 + $0xe8] sm:$0xff]
        %v1632 = vld [vmem:[#allocation7 + $0xf0] sm:$0xff]
        %v1633 = vld [vmem:[#allocation7 + $0xf8] sm:$0xff]
        %v1666 = vunpack.c.l.b16 %v1602
        %v1667 = vunpack.c.h.b16 %v1602
        %v1668 = vunpack.c.l.b16 %v1603
        %v1669 = vunpack.c.h.b16 %v1603
        %v1670 = vunpack.c.l.b16 %v1604
        %v1671 = vunpack.c.h.b16 %v1604
        %v1672 = vunpack.c.l.b16 %v1605
        %v1673 = vunpack.c.h.b16 %v1605
        %v1674 = vunpack.c.l.b16 %v1606
        %v1675 = vunpack.c.h.b16 %v1606
        %v1676 = vunpack.c.l.b16 %v1607
        %v1677 = vunpack.c.h.b16 %v1607
        %v1678 = vunpack.c.l.b16 %v1608
        %v1679 = vunpack.c.h.b16 %v1608
        %v1680 = vunpack.c.l.b16 %v1609
        %v1681 = vunpack.c.h.b16 %v1609
        %v1682 = vunpack.c.l.b16 %v1610
        %v1683 = vunpack.c.h.b16 %v1610
        %v1684 = vunpack.c.l.b16 %v1611
        %v1685 = vunpack.c.h.b16 %v1611
        %v1686 = vunpack.c.l.b16 %v1612
        %v1687 = vunpack.c.h.b16 %v1612
        %v1688 = vunpack.c.l.b16 %v1613
        %v1689 = vunpack.c.h.b16 %v1613
        %v1690 = vunpack.c.l.b16 %v1614
        %v1691 = vunpack.c.h.b16 %v1614
        %v1692 = vunpack.c.l.b16 %v1615
        %v1693 = vunpack.c.h.b16 %v1615
        %v1694 = vunpack.c.l.b16 %v1616
        %v1695 = vunpack.c.h.b16 %v1616
        %v1696 = vunpack.c.l.b16 %v1617
        %v1697 = vunpack.c.h.b16 %v1617
        %v1698 = vunpack.c.l.b16 %v1618
        %v1699 = vunpack.c.h.b16 %v1618
        %v1700 = vunpack.c.l.b16 %v1619
        %v1701 = vunpack.c.h.b16 %v1619
        %v1702 = vunpack.c.l.b16 %v1620
        %v1703 = vunpack.c.h.b16 %v1620
        %v1704 = vunpack.c.l.b16 %v1621
        %v1705 = vunpack.c.h.b16 %v1621
        %v1706 = vunpack.c.l.b16 %v1622
        %v1707 = vunpack.c.h.b16 %v1622
        %v1708 = vunpack.c.l.b16 %v1623
        %v1709 = vunpack.c.h.b16 %v1623
        %v1710 = vunpack.c.l.b16 %v1624
        %v1711 = vunpack.c.h.b16 %v1624
        %v1712 = vunpack.c.l.b16 %v1625
        %v1713 = vunpack.c.h.b16 %v1625
        %v1714 = vunpack.c.l.b16 %v1626
        %v1715 = vunpack.c.h.b16 %v1626
        %v1716 = vunpack.c.l.b16 %v1627
        %v1717 = vunpack.c.h.b16 %v1627
        %v1718 = vunpack.c.l.b16 %v1628
        %v1719 = vunpack.c.h.b16 %v1628
        %v1720 = vunpack.c.l.b16 %v1629
        %v1721 = vunpack.c.h.b16 %v1629
        %v1722 = vunpack.c.l.b16 %v1630
        %v1723 = vunpack.c.h.b16 %v1630
        %v1724 = vunpack.c.l.b16 %v1631
        %v1725 = vunpack.c.h.b16 %v1631
        %v1726 = vunpack.c.l.b16 %v1632
        %v1727 = vunpack.c.h.b16 %v1632
        %v1728 = vunpack.c.l.b16 %v1633
        %v1729 = vunpack.c.h.b16 %v1633
        %v1730 = vpack.c.b16 %v1670, %v1666
        %v1731 = vpack.c.b16 %v1671, %v1667
        %v1732 = vpack.c.b16 %v1672, %v1668
        %v1733 = vpack.c.b16 %v1673, %v1669
        %v1734 = vpack.c.b16 %v1678, %v1674
        %v1735 = vpack.c.b16 %v1679, %v1675
        %v1736 = vpack.c.b16 %v1680, %v1676
        %v1737 = vpack.c.b16 %v1681, %v1677
        %v1738 = vpack.c.b16 %v1686, %v1682
        %v1739 = vpack.c.b16 %v1687, %v1683
        %v1740 = vpack.c.b16 %v1688, %v1684
        %v1741 = vpack.c.b16 %v1689, %v1685
        %v1742 = vpack.c.b16 %v1694, %v1690
        %v1743 = vpack.c.b16 %v1695, %v1691
        %v1744 = vpack.c.b16 %v1696, %v1692
        %v1745 = vpack.c.b16 %v1697, %v1693
        %v1746 = vpack.c.b16 %v1702, %v1698
        %v1747 = vpack.c.b16 %v1703, %v1699
        %v1748 = vpack.c.b16 %v1704, %v1700
        %v1749 = vpack.c.b16 %v1705, %v1701
        %v1750 = vpack.c.b16 %v1710, %v1706
        %v1751 = vpack.c.b16 %v1711, %v1707
        %v1752 = vpack.c.b16 %v1712, %v1708
        %v1753 = vpack.c.b16 %v1713, %v1709
        %v1754 = vpack.c.b16 %v1718, %v1714
        %v1755 = vpack.c.b16 %v1719, %v1715
        %v1756 = vpack.c.b16 %v1720, %v1716
        %v1757 = vpack.c.b16 %v1721, %v1717
        %v1758 = vpack.c.b16 %v1726, %v1722
        %v1759 = vpack.c.b16 %v1727, %v1723
        %v1760 = vpack.c.b16 %v1728, %v1724
        %v1761 = vpack.c.b16 %v1729, %v1725
        %1794 = vmatprep.subr.bf16.mxu0 %v1759
        %1795 = vmatpush1.bf16.msra.mxu0 %v1758
        %1796 = vmatprep.subr.bf16.mxu0 %v1755
        %1797 = vmatpush1.bf16.msra.mxu0 %v1754
        %1798 = vmatprep.subr.bf16.mxu0 %v1751
        %1799 = vmatpush1.bf16.msra.mxu0 %v1750
        %1800 = vmatprep.subr.bf16.mxu0 %v1747
        %1801 = vmatpush1.bf16.msra.mxu0 %v1746
        %1802 = vmatprep.subr.bf16.mxu0 %v1743
        %1803 = vmatpush1.bf16.msra.mxu0 %v1742
        %1804 = vmatprep.subr.bf16.mxu0 %v1739
        %1805 = vmatpush1.bf16.msra.mxu0 %v1738
        %1806 = vmatprep.subr.bf16.mxu0 %v1735
        %1807 = vmatpush1.bf16.msra.mxu0 %v1734
        %1808 = vmatprep.subr.bf16.mxu0 %v1731
        %1809 = vmatpush1.bf16.msra.mxu0 %v1730
        %1810 = vmatprep.subr.bf16.mxu0 0
        %1811 = vmatpush2.bf16.msra.mxu0 0
        %1812 = vmatprep.subr.bf16.mxu0 0
        %1813 = vmatpush2.bf16.msra.mxu0 0
        %1814 = vmatprep.subr.bf16.mxu0 0
        %1815 = vmatpush2.bf16.msra.mxu0 0
        %1816 = vmatprep.subr.bf16.mxu0 0
        %1817 = vmatpush2.bf16.msra.mxu0 0
        %1818 = vmatprep.subr.bf16.mxu0 0
        %1819 = vmatpush2.bf16.msra.mxu0 0
        %1820 = vmatprep.subr.bf16.mxu0 0
        %1821 = vmatpush2.bf16.msra.mxu0 0
        %1822 = vmatprep.subr.bf16.mxu0 0
        %1823 = vmatpush2.bf16.msra.mxu0 0
        %1824 = vmatprep.subr.bf16.mxu0 0
        %1825 = vmatpush2.bf16.msra.mxu0 0
        %1826 = vmatprep.mubr.bf16.mxu0 0
        %1827 = vmatmul.mubr.bf16.gmra.mxu0 %v1584
        %v1828 = vpop.f32.mrf.mxu0
        %v1829 = vadd.f32 0.0, %v1828
        %v1830 = vpop.f32.mrf.mxu0
        %v1831 = vadd.f32 0.0, %v1830
        %v1832 = vpop.f32.mrf.mxu0
        %v1833 = vadd.f32 0.0, %v1832
        %v1834 = vpop.f32.mrf.mxu0
        %v1835 = vadd.f32 0.0, %v1834
        %1836 = vdwg.mxu0
        %1837 = vmatprep.subr.bf16.mxu0 %v1761
        %1838 = vmatpush1.bf16.msra.mxu0 %v1760
        %1839 = vmatprep.subr.bf16.mxu0 %v1757
        %1840 = vmatpush1.bf16.msra.mxu0 %v1756
        %1841 = vmatprep.subr.bf16.mxu0 %v1753
        %1842 = vmatpush1.bf16.msra.mxu0 %v1752
        %1843 = vmatprep.subr.bf16.mxu0 %v1749
        %1844 = vmatpush1.bf16.msra.mxu0 %v1748
        %1845 = vmatprep.subr.bf16.mxu0 %v1745
        %1846 = vmatpush1.bf16.msra.mxu0 %v1744
        %1847 = vmatprep.subr.bf16.mxu0 %v1741
        %1848 = vmatpush1.bf16.msra.mxu0 %v1740
        %1849 = vmatprep.subr.bf16.mxu0 %v1737
        %1850 = vmatpush1.bf16.msra.mxu0 %v1736
        %1851 = vmatprep.subr.bf16.mxu0 %v1733
        %1852 = vmatpush1.bf16.msra.mxu0 %v1732
        %1853 = vmatprep.subr.bf16.mxu0 0
        %1854 = vmatpush2.bf16.msra.mxu0 0
        %1855 = vmatprep.subr.bf16.mxu0 0
        %1856 = vmatpush2.bf16.msra.mxu0 0
        %1857 = vmatprep.subr.bf16.mxu0 0
        %1858 = vmatpush2.bf16.msra.mxu0 0
        %1859 = vmatprep.subr.bf16.mxu0 0
        %1860 = vmatpush2.bf16.msra.mxu0 0
        %1861 = vmatprep.subr.bf16.mxu0 0
        %1862 = vmatpush2.bf16.msra.mxu0 0
        %1863 = vmatprep.subr.bf16.mxu0 0
        %1864 = vmatpush2.bf16.msra.mxu0 0
        %1865 = vmatprep.subr.bf16.mxu0 0
        %1866 = vmatpush2.bf16.msra.mxu0 0
        %1867 = vmatprep.subr.bf16.mxu0 0
        %1868 = vmatpush2.bf16.msra.mxu0 0
        %1869 = vmatprep.mubr.bf16.mxu0 0
        %1870 = vmatmul.mubr.bf16.gmra.mxu0 %v1584
        %v1871 = vpop.f32.mrf.mxu0
        %v1872 = vadd.f32 0.0, %v1871
        %v1873 = vpop.f32.mrf.mxu0
        %v1874 = vadd.f32 0.0, %v1873
        %v1875 = vpop.f32.mrf.mxu0
        %v1876 = vadd.f32 0.0, %v1875
        %v1877 = vpop.f32.mrf.mxu0
        %v1878 = vadd.f32 0.0, %v1877
        %1879 = vdwg.mxu0
        %v1880 = vadd.f32 %v1594, %v1829
        %v1881 = vadd.f32 %v1595, %v1831
        %v1882 = vadd.f32 %v1596, %v1872
        %v1883 = vadd.f32 %v1597, %v1874
        %v1884 = vadd.f32 %v1598, %v1833
        %v1885 = vadd.f32 %v1599, %v1835
        %v1886 = vadd.f32 %v1600, %v1876
        %v1887 = vadd.f32 %v1601, %v1878
        %v1888 = vxor.u32 %v1880, 2147483648
        %v1889 = vxor.u32 %v1881, 2147483648
        %v1890 = vxor.u32 %v1882, 2147483648
        %v1891 = vxor.u32 %v1884, 2147483648
        %v1892 = vxor.u32 %v1885, 2147483648
        %v1893 = vxor.u32 %v1886, 2147483648
        %v1894 = vmul.f32 %v1888, 1.442695
        %v1895 = vpow.pop %v1894
        %v1896 = vmul.f32 %v1889, 1.442695
        %v1897 = vpow.pop %v1896
        %v1898 = vmul.f32 %v1890, 1.442695
        %v1899 = vpow.pop %v1898
        %v1900 = vmul.f32 %v1891, 1.442695
        %v1901 = vpow.pop %v1900
        %v1902 = vmul.f32 %v1892, 1.442695
        %v1903 = vpow.pop %v1902
        %v1904 = vmul.f32 %v1893, 1.442695
        %v1905 = vpow.pop %v1904
        %v1906 = vadd.f32 %v1895, 1.0
        %v1907 = vadd.f32 %v1897, 1.0
        %v1908 = vadd.f32 %v1899, 1.0
        %v1909 = vadd.f32 %v1901, 1.0
        %v1910 = vadd.f32 %v1903, 1.0
        %v1911 = vadd.f32 %v1905, 1.0
        %v1912 = vrcp.pop %v1906
        %v1913 = vmul.f32 1.0, %v1912
        %v1914 = vrcp.pop %v1907
        %v1915 = vmul.f32 1.0, %v1914
        %v1916 = vrcp.pop %v1908
        %v1917 = vmul.f32 1.0, %v1916
        %v1918 = vrcp.pop %v1909
        %v1919 = vmul.f32 1.0, %v1918
        %v1920 = vrcp.pop %v1910
        %v1921 = vmul.f32 1.0, %v1920
        %v1922 = vrcp.pop %v1911
        %v1923 = vmul.f32 1.0, %v1922
        %v1924 = vtanh.pop %v1883
        %v1925 = vtanh.pop %v1887
        %v1926 = vmul.f32 %v1915, %v1578
        %v1927 = vmul.f32 %v1921, %v1579
        %v1928 = vmul.f32 %v1913, %v1924
        %v1929 = vmul.f32 %v1919, %v1925
        %v1930 = vadd.f32 %v1926, %v1928
        %v1931 = vadd.f32 %v1927, %v1929
        %v1932 = vtanh.pop %v1930
        %v1933 = vtanh.pop %v1931
        %v1934 = vmul.f32 %v1917, %v1932
        %v1935 = vmul.f32 %v1923, %v1933
        %v1936 = vpack.c.bf16 %v1935, %v1934
        %v1938 = vunpack.c.l.b16 %v1936
        %v1939 = vunpack.c.h.b16 %v1936
        %v1940 = vpack.c.b16 %v1938, %v1938
        %v1941 = vpack.c.b16 %v1939, %v1939
        %1944 = vst [vmem:[#allocation3 + $0x10] sm:$0xf] %v1940
        %1945 = vst [vmem:[#allocation3 + $0x14] sm:$0xf] %v1941
        %v1946 = vld [vmem:[#allocation2 + $0xc0] sm:$0xff]
        %v1947 = vld [vmem:[#allocation2 + $0xc8] sm:$0xff]
        %v1948 = vld [vmem:[#allocation2 + $0xd0] sm:$0xff]
        %v1949 = vld [vmem:[#allocation2 + $0xd8] sm:$0xff]
        %v1950 = vld [vmem:[#allocation2 + $0xe0] sm:$0xff]
        %v1951 = vld [vmem:[#allocation2 + $0xe8] sm:$0xff]
        %v1952 = vld [vmem:[#allocation2 + $0xf0] sm:$0xff]
        %v1953 = vld [vmem:[#allocation2 + $0xf8] sm:$0xff]
        %v1954 = vld [vmem:[#allocation7] sm:$0xff]
        %v1955 = vld [vmem:[#allocation7 + $0x8] sm:$0xff]
        %v1956 = vld [vmem:[#allocation7 + $0x10] sm:$0xff]
        %v1957 = vld [vmem:[#allocation7 + $0x18] sm:$0xff]
        %v1958 = vld [vmem:[#allocation7 + $0x20] sm:$0xff]
        %v1959 = vld [vmem:[#allocation7 + $0x28] sm:$0xff]
        %v1960 = vld [vmem:[#allocation7 + $0x30] sm:$0xff]
        %v1961 = vld [vmem:[#allocation7 + $0x38] sm:$0xff]
        %v1962 = vld [vmem:[#allocation7 + $0x40] sm:$0xff]
        %v1963 = vld [vmem:[#allocation7 + $0x48] sm:$0xff]
        %v1964 = vld [vmem:[#allocation7 + $0x50] sm:$0xff]
        %v1965 = vld [vmem:[#allocation7 + $0x58] sm:$0xff]
        %v1966 = vld [vmem:[#allocation7 + $0x60] sm:$0xff]
        %v1967 = vld [vmem:[#allocation7 + $0x68] sm:$0xff]
        %v1968 = vld [vmem:[#allocation7 + $0x70] sm:$0xff]
        %v1969 = vld [vmem:[#allocation7 + $0x78] sm:$0xff]
        %v1970 = vld [vmem:[#allocation7 + $0x80] sm:$0xff]
        %v1971 = vld [vmem:[#allocation7 + $0x88] sm:$0xff]
        %v1972 = vld [vmem:[#allocation7 + $0x90] sm:$0xff]
        %v1973 = vld [vmem:[#allocation7 + $0x98] sm:$0xff]
        %v1974 = vld [vmem:[#allocation7 + $0xa0] sm:$0xff]
        %v1975 = vld [vmem:[#allocation7 + $0xa8] sm:$0xff]
        %v1976 = vld [vmem:[#allocation7 + $0xb0] sm:$0xff]
        %v1977 = vld [vmem:[#allocation7 + $0xb8] sm:$0xff]
        %v1978 = vld [vmem:[#allocation7 + $0xc0] sm:$0xff]
        %v1979 = vld [vmem:[#allocation7 + $0xc8] sm:$0xff]
        %v1980 = vld [vmem:[#allocation7 + $0xd0] sm:$0xff]
        %v1981 = vld [vmem:[#allocation7 + $0xd8] sm:$0xff]
        %v1982 = vld [vmem:[#allocation7 + $0xe0] sm:$0xff]
        %v1983 = vld [vmem:[#allocation7 + $0xe8] sm:$0xff]
        %v1984 = vld [vmem:[#allocation7 + $0xf0] sm:$0xff]
        %v1985 = vld [vmem:[#allocation7 + $0xf8] sm:$0xff]
        %v2018 = vunpack.c.l.b16 %v1954
        %v2019 = vunpack.c.h.b16 %v1954
        %v2020 = vunpack.c.l.b16 %v1955
        %v2021 = vunpack.c.h.b16 %v1955
        %v2022 = vunpack.c.l.b16 %v1956
        %v2023 = vunpack.c.h.b16 %v1956
        %v2024 = vunpack.c.l.b16 %v1957
        %v2025 = vunpack.c.h.b16 %v1957
        %v2026 = vunpack.c.l.b16 %v1958
        %v2027 = vunpack.c.h.b16 %v1958
        %v2028 = vunpack.c.l.b16 %v1959
        %v2029 = vunpack.c.h.b16 %v1959
        %v2030 = vunpack.c.l.b16 %v1960
        %v2031 = vunpack.c.h.b16 %v1960
        %v2032 = vunpack.c.l.b16 %v1961
        %v2033 = vunpack.c.h.b16 %v1961
        %v2034 = vunpack.c.l.b16 %v1962
        %v2035 = vunpack.c.h.b16 %v1962
        %v2036 = vunpack.c.l.b16 %v1963
        %v2037 = vunpack.c.h.b16 %v1963
        %v2038 = vunpack.c.l.b16 %v1964
        %v2039 = vunpack.c.h.b16 %v1964
        %v2040 = vunpack.c.l.b16 %v1965
        %v2041 = vunpack.c.h.b16 %v1965
        %v2042 = vunpack.c.l.b16 %v1966
        %v2043 = vunpack.c.h.b16 %v1966
        %v2044 = vunpack.c.l.b16 %v1967
        %v2045 = vunpack.c.h.b16 %v1967
        %v2046 = vunpack.c.l.b16 %v1968
        %v2047 = vunpack.c.h.b16 %v1968
        %v2048 = vunpack.c.l.b16 %v1969
        %v2049 = vunpack.c.h.b16 %v1969
        %v2050 = vunpack.c.l.b16 %v1970
        %v2051 = vunpack.c.h.b16 %v1970
        %v2052 = vunpack.c.l.b16 %v1971
        %v2053 = vunpack.c.h.b16 %v1971
        %v2054 = vunpack.c.l.b16 %v1972
        %v2055 = vunpack.c.h.b16 %v1972
        %v2056 = vunpack.c.l.b16 %v1973
        %v2057 = vunpack.c.h.b16 %v1973
        %v2058 = vunpack.c.l.b16 %v1974
        %v2059 = vunpack.c.h.b16 %v1974
        %v2060 = vunpack.c.l.b16 %v1975
        %v2061 = vunpack.c.h.b16 %v1975
        %v2062 = vunpack.c.l.b16 %v1976
        %v2063 = vunpack.c.h.b16 %v1976
        %v2064 = vunpack.c.l.b16 %v1977
        %v2065 = vunpack.c.h.b16 %v1977
        %v2066 = vunpack.c.l.b16 %v1978
        %v2067 = vunpack.c.h.b16 %v1978
        %v2068 = vunpack.c.l.b16 %v1979
        %v2069 = vunpack.c.h.b16 %v1979
        %v2070 = vunpack.c.l.b16 %v1980
        %v2071 = vunpack.c.h.b16 %v1980
        %v2072 = vunpack.c.l.b16 %v1981
        %v2073 = vunpack.c.h.b16 %v1981
        %v2074 = vunpack.c.l.b16 %v1982
        %v2075 = vunpack.c.h.b16 %v1982
        %v2076 = vunpack.c.l.b16 %v1983
        %v2077 = vunpack.c.h.b16 %v1983
        %v2078 = vunpack.c.l.b16 %v1984
        %v2079 = vunpack.c.h.b16 %v1984
        %v2080 = vunpack.c.l.b16 %v1985
        %v2081 = vunpack.c.h.b16 %v1985
        %v2082 = vpack.c.b16 %v2022, %v2018
        %v2083 = vpack.c.b16 %v2023, %v2019
        %v2084 = vpack.c.b16 %v2024, %v2020
        %v2085 = vpack.c.b16 %v2025, %v2021
        %v2086 = vpack.c.b16 %v2030, %v2026
        %v2087 = vpack.c.b16 %v2031, %v2027
        %v2088 = vpack.c.b16 %v2032, %v2028
        %v2089 = vpack.c.b16 %v2033, %v2029
        %v2090 = vpack.c.b16 %v2038, %v2034
        %v2091 = vpack.c.b16 %v2039, %v2035
        %v2092 = vpack.c.b16 %v2040, %v2036
        %v2093 = vpack.c.b16 %v2041, %v2037
        %v2094 = vpack.c.b16 %v2046, %v2042
        %v2095 = vpack.c.b16 %v2047, %v2043
        %v2096 = vpack.c.b16 %v2048, %v2044
        %v2097 = vpack.c.b16 %v2049, %v2045
        %v2098 = vpack.c.b16 %v2054, %v2050
        %v2099 = vpack.c.b16 %v2055, %v2051
        %v2100 = vpack.c.b16 %v2056, %v2052
        %v2101 = vpack.c.b16 %v2057, %v2053
        %v2102 = vpack.c.b16 %v2062, %v2058
        %v2103 = vpack.c.b16 %v2063, %v2059
        %v2104 = vpack.c.b16 %v2064, %v2060
        %v2105 = vpack.c.b16 %v2065, %v2061
        %v2106 = vpack.c.b16 %v2070, %v2066
        %v2107 = vpack.c.b16 %v2071, %v2067
        %v2108 = vpack.c.b16 %v2072, %v2068
        %v2109 = vpack.c.b16 %v2073, %v2069
        %v2110 = vpack.c.b16 %v2078, %v2074
        %v2111 = vpack.c.b16 %v2079, %v2075
        %v2112 = vpack.c.b16 %v2080, %v2076
        %v2113 = vpack.c.b16 %v2081, %v2077
        %2146 = vmatprep.subr.bf16.mxu0 %v2111
        %2147 = vmatpush1.bf16.msra.mxu0 %v2110
        %2148 = vmatprep.subr.bf16.mxu0 %v2107
        %2149 = vmatpush1.bf16.msra.mxu0 %v2106
        %2150 = vmatprep.subr.bf16.mxu0 %v2103
        %2151 = vmatpush1.bf16.msra.mxu0 %v2102
        %2152 = vmatprep.subr.bf16.mxu0 %v2099
        %2153 = vmatpush1.bf16.msra.mxu0 %v2098
        %2154 = vmatprep.subr.bf16.mxu0 %v2095
        %2155 = vmatpush1.bf16.msra.mxu0 %v2094
        %2156 = vmatprep.subr.bf16.mxu0 %v2091
        %2157 = vmatpush1.bf16.msra.mxu0 %v2090
        %2158 = vmatprep.subr.bf16.mxu0 %v2087
        %2159 = vmatpush1.bf16.msra.mxu0 %v2086
        %2160 = vmatprep.subr.bf16.mxu0 %v2083
        %2161 = vmatpush1.bf16.msra.mxu0 %v2082
        %2162 = vmatprep.subr.bf16.mxu0 0
        %2163 = vmatpush2.bf16.msra.mxu0 0
        %2164 = vmatprep.subr.bf16.mxu0 0
        %2165 = vmatpush2.bf16.msra.mxu0 0
        %2166 = vmatprep.subr.bf16.mxu0 0
        %2167 = vmatpush2.bf16.msra.mxu0 0
        %2168 = vmatprep.subr.bf16.mxu0 0
        %2169 = vmatpush2.bf16.msra.mxu0 0
        %2170 = vmatprep.subr.bf16.mxu0 0
        %2171 = vmatpush2.bf16.msra.mxu0 0
        %2172 = vmatprep.subr.bf16.mxu0 0
        %2173 = vmatpush2.bf16.msra.mxu0 0
        %2174 = vmatprep.subr.bf16.mxu0 0
        %2175 = vmatpush2.bf16.msra.mxu0 0
        %2176 = vmatprep.subr.bf16.mxu0 0
        %2177 = vmatpush2.bf16.msra.mxu0 0
        %2178 = vmatprep.mubr.bf16.mxu0 0
        %2179 = vmatmul.mubr.bf16.gmra.mxu0 %v1936
        %v2180 = vpop.f32.mrf.mxu0
        %v2181 = vadd.f32 0.0, %v2180
        %v2182 = vpop.f32.mrf.mxu0
        %v2183 = vadd.f32 0.0, %v2182
        %v2184 = vpop.f32.mrf.mxu0
        %v2185 = vadd.f32 0.0, %v2184
        %v2186 = vpop.f32.mrf.mxu0
        %v2187 = vadd.f32 0.0, %v2186
        %2188 = vdwg.mxu0
        %2189 = vmatprep.subr.bf16.mxu0 %v2113
        %2190 = vmatpush1.bf16.msra.mxu0 %v2112
        %2191 = vmatprep.subr.bf16.mxu0 %v2109
        %2192 = vmatpush1.bf16.msra.mxu0 %v2108
        %2193 = vmatprep.subr.bf16.mxu0 %v2105
        %2194 = vmatpush1.bf16.msra.mxu0 %v2104
        %2195 = vmatprep.subr.bf16.mxu0 %v2101
        %2196 = vmatpush1.bf16.msra.mxu0 %v2100
        %2197 = vmatprep.subr.bf16.mxu0 %v2097
        %2198 = vmatpush1.bf16.msra.mxu0 %v2096
        %2199 = vmatprep.subr.bf16.mxu0 %v2093
        %2200 = vmatpush1.bf16.msra.mxu0 %v2092
        %2201 = vmatprep.subr.bf16.mxu0 %v2089
        %2202 = vmatpush1.bf16.msra.mxu0 %v2088
        %2203 = vmatprep.subr.bf16.mxu0 %v2085
        %2204 = vmatpush1.bf16.msra.mxu0 %v2084
        %2205 = vmatprep.subr.bf16.mxu0 0
        %2206 = vmatpush2.bf16.msra.mxu0 0
        %2207 = vmatprep.subr.bf16.mxu0 0
        %2208 = vmatpush2.bf16.msra.mxu0 0
        %2209 = vmatprep.subr.bf16.mxu0 0
        %2210 = vmatpush2.bf16.msra.mxu0 0
        %2211 = vmatprep.subr.bf16.mxu0 0
        %2212 = vmatpush2.bf16.msra.mxu0 0
        %2213 = vmatprep.subr.bf16.mxu0 0
        %2214 = vmatpush2.bf16.msra.mxu0 0
        %2215 = vmatprep.subr.bf16.mxu0 0
        %2216 = vmatpush2.bf16.msra.mxu0 0
        %2217 = vmatprep.subr.bf16.mxu0 0
        %2218 = vmatpush2.bf16.msra.mxu0 0
        %2219 = vmatprep.subr.bf16.mxu0 0
        %2220 = vmatpush2.bf16.msra.mxu0 0
        %2221 = vmatprep.mubr.bf16.mxu0 0
        %2222 = vmatmul.mubr.bf16.gmra.mxu0 %v1936
        %v2223 = vpop.f32.mrf.mxu0
        %v2224 = vadd.f32 0.0, %v2223
        %v2225 = vpop.f32.mrf.mxu0
        %v2226 = vadd.f32 0.0, %v2225
        %v2227 = vpop.f32.mrf.mxu0
        %v2228 = vadd.f32 0.0, %v2227
        %v2229 = vpop.f32.mrf.mxu0
        %v2230 = vadd.f32 0.0, %v2229
        %2231 = vdwg.mxu0
        %v2232 = vadd.f32 %v1946, %v2181
        %v2233 = vadd.f32 %v1947, %v2183
        %v2234 = vadd.f32 %v1948, %v2224
        %v2235 = vadd.f32 %v1949, %v2226
        %v2236 = vadd.f32 %v1950, %v2185
        %v2237 = vadd.f32 %v1951, %v2187
        %v2238 = vadd.f32 %v1952, %v2228
        %v2239 = vadd.f32 %v1953, %v2230
        %v2240 = vxor.u32 %v2232, 2147483648
        %v2241 = vxor.u32 %v2233, 2147483648
        %v2242 = vxor.u32 %v2234, 2147483648
        %v2243 = vxor.u32 %v2236, 2147483648
        %v2244 = vxor.u32 %v2237, 2147483648
        %v2245 = vxor.u32 %v2238, 2147483648
        %v2246 = vmul.f32 %v2240, 1.442695
        %v2247 = vpow.pop %v2246
        %v2248 = vmul.f32 %v2241, 1.442695
        %v2249 = vpow.pop %v2248
        %v2250 = vmul.f32 %v2242, 1.442695
        %v2251 = vpow.pop %v2250
        %v2252 = vmul.f32 %v2243, 1.442695
        %v2253 = vpow.pop %v2252
        %v2254 = vmul.f32 %v2244, 1.442695
        %v2255 = vpow.pop %v2254
        %v2256 = vmul.f32 %v2245, 1.442695
        %v2257 = vpow.pop %v2256
        %v2258 = vadd.f32 %v2247, 1.0
        %v2259 = vadd.f32 %v2249, 1.0
        %v2260 = vadd.f32 %v2251, 1.0
        %v2261 = vadd.f32 %v2253, 1.0
        %v2262 = vadd.f32 %v2255, 1.0
        %v2263 = vadd.f32 %v2257, 1.0
        %v2264 = vrcp.pop %v2258
        %v2265 = vmul.f32 1.0, %v2264
        %v2266 = vrcp.pop %v2259
        %v2267 = vmul.f32 1.0, %v2266
        %v2268 = vrcp.pop %v2260
        %v2269 = vmul.f32 1.0, %v2268
        %v2270 = vrcp.pop %v2261
        %v2271 = vmul.f32 1.0, %v2270
        %v2272 = vrcp.pop %v2262
        %v2273 = vmul.f32 1.0, %v2272
        %v2274 = vrcp.pop %v2263
        %v2275 = vmul.f32 1.0, %v2274
        %v2276 = vtanh.pop %v2235
        %v2277 = vtanh.pop %v2239
        %v2278 = vmul.f32 %v2267, %v1930
        %v2279 = vmul.f32 %v2273, %v1931
        %v2280 = vmul.f32 %v2265, %v2276
        %v2281 = vmul.f32 %v2271, %v2277
        %v2282 = vadd.f32 %v2278, %v2280
        %v2283 = vadd.f32 %v2279, %v2281
        %v2284 = vtanh.pop %v2282
        %v2285 = vtanh.pop %v2283
        %v2286 = vmul.f32 %v2269, %v2284
        %v2287 = vmul.f32 %v2275, %v2285
        %v2288 = vpack.c.bf16 %v2287, %v2286
        %v2290 = vunpack.c.l.b16 %v2288
        %v2291 = vunpack.c.h.b16 %v2288
        %v2292 = vpack.c.b16 %v2290, %v2290
        %v2293 = vpack.c.b16 %v2291, %v2291
        %2296 = vst [vmem:[#allocation3 + $0x18] sm:$0xf] %v2292
        %2297 = vst [vmem:[#allocation3 + $0x1c] sm:$0xf] %v2293
        %2298 = vst [vmem:[#allocation4] sm:$0xff] %v2286
        %2299 = vst [vmem:[#allocation4 + $0x8] sm:$0xff] %v2287
        %2300 = vst [vmem:[%s886] sm:$0xff] %v2282
        %2301 = vst [vmem:[%s886 + $0x8] sm:$0xff] %v2283
        %v2302 = vld [vmem:[#allocation3] sm:$0xf]
        %v2303 = vld [vmem:[#allocation3 + $0x4] sm:$0xf]
        %v2304 = vld [vmem:[#allocation3 + $0x8] sm:$0xf]
        %v2305 = vld [vmem:[#allocation3 + $0xc] sm:$0xf]
        %v2306 = vld [vmem:[#allocation3 + $0x10] sm:$0xf]
        %v2307 = vld [vmem:[#allocation3 + $0x14] sm:$0xf]
        %v2308 = vld [vmem:[#allocation3 + $0x18] sm:$0xf]
        %v2309 = vld [vmem:[#allocation3 + $0x1c] sm:$0xf]
        %v2310 = vld [vmem:[#allocation9] sm:$0xff]
        %v2311 = vld [vmem:[#allocation9 + $0x8] sm:$0xff]
        %v2312 = vld [vmem:[#allocation9 + $0x10] sm:$0xff]
        %v2313 = vld [vmem:[#allocation9 + $0x18] sm:$0xff]
        %v2314 = vld [vmem:[#allocation9 + $0x20] sm:$0xff]
        %v2315 = vld [vmem:[#allocation9 + $0x28] sm:$0xff]
        %v2316 = vld [vmem:[#allocation9 + $0x30] sm:$0xff]
        %v2317 = vld [vmem:[#allocation9 + $0x38] sm:$0xff]
        %v2318 = vld [vmem:[#allocation9 + $0x40] sm:$0xff]
        %v2319 = vld [vmem:[#allocation9 + $0x48] sm:$0xff]
        %v2320 = vld [vmem:[#allocation9 + $0x50] sm:$0xff]
        %v2321 = vld [vmem:[#allocation9 + $0x58] sm:$0xff]
        %v2322 = vld [vmem:[#allocation9 + $0x60] sm:$0xff]
        %v2323 = vld [vmem:[#allocation9 + $0x68] sm:$0xff]
        %v2324 = vld [vmem:[#allocation9 + $0x70] sm:$0xff]
        %v2325 = vld [vmem:[#allocation9 + $0x78] sm:$0xff]
        %v2326 = vld [vmem:[#allocation9 + $0x80] sm:$0xff]
        %v2327 = vld [vmem:[#allocation9 + $0x88] sm:$0xff]
        %v2328 = vld [vmem:[#allocation9 + $0x90] sm:$0xff]
        %v2329 = vld [vmem:[#allocation9 + $0x98] sm:$0xff]
        %v2330 = vld [vmem:[#allocation9 + $0xa0] sm:$0xff]
        %v2331 = vld [vmem:[#allocation9 + $0xa8] sm:$0xff]
        %v2332 = vld [vmem:[#allocation9 + $0xb0] sm:$0xff]
        %v2333 = vld [vmem:[#allocation9 + $0xb8] sm:$0xff]
        %v2334 = vld [vmem:[#allocation9 + $0xc0] sm:$0xff]
        %v2335 = vld [vmem:[#allocation9 + $0xc8] sm:$0xff]
        %v2336 = vld [vmem:[#allocation9 + $0xd0] sm:$0xff]
        %v2337 = vld [vmem:[#allocation9 + $0xd8] sm:$0xff]
        %v2338 = vld [vmem:[#allocation9 + $0xe0] sm:$0xff]
        %v2339 = vld [vmem:[#allocation9 + $0xe8] sm:$0xff]
        %v2340 = vld [vmem:[#allocation9 + $0xf0] sm:$0xff]
        %v2341 = vld [vmem:[#allocation9 + $0xf8] sm:$0xff]
        %v2342 = vld [vmem:[%s6] sm:$0xf]
        %v2344 = vlaneseq
        %v2345 = vshrl.u32 %v2344, 7
        %v2346 = vsub.s32 0, %v2345
        %v2347 = vrot.slane %v2342, %v2346
        %v2348 = vlaneseq
        %v2349 = vshrl.u32 %v2348, 7
        %v2350 = vsub.s32 1, %v2349
        %v2351 = vrot.slane %v2342, %v2350
        %v2352 = vlaneseq
        %v2353 = vshrl.u32 %v2352, 7
        %v2354 = vsub.s32 2, %v2353
        %v2355 = vrot.slane %v2342, %v2354
        %v2356 = vlaneseq
        %v2357 = vshrl.u32 %v2356, 7
        %v2358 = vsub.s32 3, %v2357
        %v2359 = vrot.slane %v2342, %v2358
        %v2372 = vunpack.c.l.b16 %v2302
        %v2373 = vunpack.c.l.b16 %v2303
        %v2374 = vunpack.c.l.b16 %v2304
        %v2375 = vunpack.c.l.b16 %v2305
        %v2376 = vunpack.c.l.b16 %v2306
        %v2377 = vunpack.c.l.b16 %v2307
        %v2378 = vunpack.c.l.b16 %v2308
        %v2379 = vunpack.c.l.b16 %v2309
        %v2380 = vpack.c.b16 %v2373, %v2372
        %v2381 = vpack.c.b16 %v2375, %v2374
        %v2382 = vpack.c.b16 %v2377, %v2376
        %v2383 = vpack.c.b16 %v2379, %v2378
        %v2420 = vunpack.c.l.b16 %v2310
        %v2421 = vunpack.c.h.b16 %v2310
        %v2422 = vunpack.c.l.b16 %v2311
        %v2423 = vunpack.c.h.b16 %v2311
        %v2424 = vunpack.c.l.b16 %v2312
        %v2425 = vunpack.c.h.b16 %v2312
        %v2426 = vunpack.c.l.b16 %v2313
        %v2427 = vunpack.c.h.b16 %v2313
        %v2428 = vunpack.c.l.b16 %v2314
        %v2429 = vunpack.c.h.b16 %v2314
        %v2430 = vunpack.c.l.b16 %v2315
        %v2431 = vunpack.c.h.b16 %v2315
        %v2432 = vunpack.c.l.b16 %v2316
        %v2433 = vunpack.c.h.b16 %v2316
        %v2434 = vunpack.c.l.b16 %v2317
        %v2435 = vunpack.c.h.b16 %v2317
        %v2436 = vunpack.c.l.b16 %v2318
        %v2437 = vunpack.c.h.b16 %v2318
        %v2438 = vunpack.c.l.b16 %v2319
        %v2439 = vunpack.c.h.b16 %v2319
        %v2440 = vunpack.c.l.b16 %v2320
        %v2441 = vunpack.c.h.b16 %v2320
        %v2442 = vunpack.c.l.b16 %v2321
        %v2443 = vunpack.c.h.b16 %v2321
        %v2444 = vunpack.c.l.b16 %v2322
        %v2445 = vunpack.c.h.b16 %v2322
        %v2446 = vunpack.c.l.b16 %v2323
        %v2447 = vunpack.c.h.b16 %v2323
        %v2448 = vunpack.c.l.b16 %v2324
        %v2449 = vunpack.c.h.b16 %v2324
        %v2450 = vunpack.c.l.b16 %v2325
        %v2451 = vunpack.c.h.b16 %v2325
        %v2452 = vunpack.c.l.b16 %v2326
        %v2453 = vunpack.c.h.b16 %v2326
        %v2454 = vunpack.c.l.b16 %v2327
        %v2455 = vunpack.c.h.b16 %v2327
        %v2456 = vunpack.c.l.b16 %v2328
        %v2457 = vunpack.c.h.b16 %v2328
        %v2458 = vunpack.c.l.b16 %v2329
        %v2459 = vunpack.c.h.b16 %v2329
        %v2460 = vunpack.c.l.b16 %v2330
        %v2461 = vunpack.c.h.b16 %v2330
        %v2462 = vunpack.c.l.b16 %v2331
        %v2463 = vunpack.c.h.b16 %v2331
        %v2464 = vunpack.c.l.b16 %v2332
        %v2465 = vunpack.c.h.b16 %v2332
        %v2466 = vunpack.c.l.b16 %v2333
        %v2467 = vunpack.c.h.b16 %v2333
        %v2468 = vunpack.c.l.b16 %v2334
        %v2469 = vunpack.c.h.b16 %v2334
        %v2470 = vunpack.c.l.b16 %v2335
        %v2471 = vunpack.c.h.b16 %v2335
        %v2472 = vunpack.c.l.b16 %v2336
        %v2473 = vunpack.c.h.b16 %v2336
        %v2474 = vunpack.c.l.b16 %v2337
        %v2475 = vunpack.c.h.b16 %v2337
        %v2476 = vunpack.c.l.b16 %v2338
        %v2477 = vunpack.c.h.b16 %v2338
        %v2478 = vunpack.c.l.b16 %v2339
        %v2479 = vunpack.c.h.b16 %v2339
        %v2480 = vunpack.c.l.b16 %v2340
        %v2481 = vunpack.c.h.b16 %v2340
        %v2482 = vunpack.c.l.b16 %v2341
        %v2483 = vunpack.c.h.b16 %v2341
        %v2484 = vpack.c.b16 %v2424, %v2420
        %v2485 = vpack.c.b16 %v2425, %v2421
        %v2486 = vpack.c.b16 %v2426, %v2422
        %v2487 = vpack.c.b16 %v2427, %v2423
        %v2488 = vpack.c.b16 %v2432, %v2428
        %v2489 = vpack.c.b16 %v2433, %v2429
        %v2490 = vpack.c.b16 %v2434, %v2430
        %v2491 = vpack.c.b16 %v2435, %v2431
        %v2492 = vpack.c.b16 %v2440, %v2436
        %v2493 = vpack.c.b16 %v2441, %v2437
        %v2494 = vpack.c.b16 %v2442, %v2438
        %v2495 = vpack.c.b16 %v2443, %v2439
        %v2496 = vpack.c.b16 %v2448, %v2444
        %v2497 = vpack.c.b16 %v2449, %v2445
        %v2498 = vpack.c.b16 %v2450, %v2446
        %v2499 = vpack.c.b16 %v2451, %v2447
        %v2500 = vpack.c.b16 %v2456, %v2452
        %v2501 = vpack.c.b16 %v2457, %v2453
        %v2502 = vpack.c.b16 %v2458, %v2454
        %v2503 = vpack.c.b16 %v2459, %v2455
        %v2504 = vpack.c.b16 %v2464, %v2460
        %v2505 = vpack.c.b16 %v2465, %v2461
        %v2506 = vpack.c.b16 %v2466, %v2462
        %v2507 = vpack.c.b16 %v2467, %v2463
        %v2508 = vpack.c.b16 %v2472, %v2468
        %v2509 = vpack.c.b16 %v2473, %v2469
        %v2510 = vpack.c.b16 %v2474, %v2470
        %v2511 = vpack.c.b16 %v2475, %v2471
        %v2512 = vpack.c.b16 %v2480, %v2476
        %v2513 = vpack.c.b16 %v2481, %v2477
        %v2514 = vpack.c.b16 %v2482, %v2478
        %v2515 = vpack.c.b16 %v2483, %v2479
        %2548 = vmatprep.subr.bf16.mxu0 %v2513
        %2549 = vmatpush1.bf16.msra.mxu0 %v2512
        %2550 = vmatprep.subr.bf16.mxu0 %v2509
        %2551 = vmatpush1.bf16.msra.mxu0 %v2508
        %2552 = vmatprep.subr.bf16.mxu0 %v2505
        %2553 = vmatpush1.bf16.msra.mxu0 %v2504
        %2554 = vmatprep.subr.bf16.mxu0 %v2501
        %2555 = vmatpush1.bf16.msra.mxu0 %v2500
        %2556 = vmatprep.subr.bf16.mxu0 %v2497
        %2557 = vmatpush1.bf16.msra.mxu0 %v2496
        %2558 = vmatprep.subr.bf16.mxu0 %v2493
        %2559 = vmatpush1.bf16.msra.mxu0 %v2492
        %2560 = vmatprep.subr.bf16.mxu0 %v2489
        %2561 = vmatpush1.bf16.msra.mxu0 %v2488
        %2562 = vmatprep.subr.bf16.mxu0 %v2485
        %2563 = vmatpush1.bf16.msra.mxu0 %v2484
        %2564 = vmatprep.subr.bf16.mxu0 0
        %2565 = vmatpush2.bf16.msra.mxu0 0
        %2566 = vmatprep.subr.bf16.mxu0 0
        %2567 = vmatpush2.bf16.msra.mxu0 0
        %2568 = vmatprep.subr.bf16.mxu0 0
        %2569 = vmatpush2.bf16.msra.mxu0 0
        %2570 = vmatprep.subr.bf16.mxu0 0
        %2571 = vmatpush2.bf16.msra.mxu0 0
        %2572 = vmatprep.subr.bf16.mxu0 0
        %2573 = vmatpush2.bf16.msra.mxu0 0
        %2574 = vmatprep.subr.bf16.mxu0 0
        %2575 = vmatpush2.bf16.msra.mxu0 0
        %2576 = vmatprep.subr.bf16.mxu0 0
        %2577 = vmatpush2.bf16.msra.mxu0 0
        %2578 = vmatprep.subr.bf16.mxu0 0
        %2579 = vmatpush2.bf16.msra.mxu0 0
        %2580 = vmatprep.mubr.bf16.mxu0 0
        %2581 = vmatmul.mubr.bf16.gmra.mxu0 %v2380
        %v2582 = vpop.f32.mrf.mxu0
        %v2583 = vadd.f32 %v2347, %v2582
        %v2584 = vpop.f32.mrf.mxu0
        %v2585 = vadd.f32 %v2351, %v2584
        %v2586 = vpop.f32.mrf.mxu0
        %v2587 = vadd.f32 %v2347, %v2586
        %v2588 = vpop.f32.mrf.mxu0
        %v2589 = vadd.f32 %v2351, %v2588
        %2590 = vmatprep.mubr.bf16.mxu0 0
        %2591 = vmatmul.mubr.bf16.gmra.mxu0 %v2381
        %v2592 = vpop.f32.mrf.mxu0
        %v2593 = vadd.f32 %v2347, %v2592
        %v2594 = vpop.f32.mrf.mxu0
        %v2595 = vadd.f32 %v2351, %v2594
        %v2596 = vpop.f32.mrf.mxu0
        %v2597 = vadd.f32 %v2347, %v2596
        %v2598 = vpop.f32.mrf.mxu0
        %v2599 = vadd.f32 %v2351, %v2598
        %2600 = vmatprep.mubr.bf16.mxu0 0
        %2601 = vmatmul.mubr.bf16.gmra.mxu0 %v2382
        %v2602 = vpop.f32.mrf.mxu0
        %v2603 = vadd.f32 %v2347, %v2602
        %v2604 = vpop.f32.mrf.mxu0
        %v2605 = vadd.f32 %v2351, %v2604
        %v2606 = vpop.f32.mrf.mxu0
        %v2607 = vadd.f32 %v2347, %v2606
        %v2608 = vpop.f32.mrf.mxu0
        %v2609 = vadd.f32 %v2351, %v2608
        %2610 = vmatprep.mubr.bf16.mxu0 0
        %2611 = vmatmul.mubr.bf16.gmra.mxu0 %v2383
        %v2612 = vpop.f32.mrf.mxu0
        %v2613 = vadd.f32 %v2347, %v2612
        %v2614 = vpop.f32.mrf.mxu0
        %v2615 = vadd.f32 %v2351, %v2614
        %v2616 = vpop.f32.mrf.mxu0
        %v2617 = vadd.f32 %v2347, %v2616
        %v2618 = vpop.f32.mrf.mxu0
        %v2619 = vadd.f32 %v2351, %v2618
        %2620 = vdwg.mxu0
        %2621 = vmatprep.subr.bf16.mxu0 %v2515
        %2622 = vmatpush1.bf16.msra.mxu0 %v2514
        %2623 = vmatprep.subr.bf16.mxu0 %v2511
        %2624 = vmatpush1.bf16.msra.mxu0 %v2510
        %2625 = vmatprep.subr.bf16.mxu0 %v2507
        %2626 = vmatpush1.bf16.msra.mxu0 %v2506
        %2627 = vmatprep.subr.bf16.mxu0 %v2503
        %2628 = vmatpush1.bf16.msra.mxu0 %v2502
        %2629 = vmatprep.subr.bf16.mxu0 %v2499
        %2630 = vmatpush1.bf16.msra.mxu0 %v2498
        %2631 = vmatprep.subr.bf16.mxu0 %v2495
        %2632 = vmatpush1.bf16.msra.mxu0 %v2494
        %2633 = vmatprep.subr.bf16.mxu0 %v2491
        %2634 = vmatpush1.bf16.msra.mxu0 %v2490
        %2635 = vmatprep.subr.bf16.mxu0 %v2487
        %2636 = vmatpush1.bf16.msra.mxu0 %v2486
        %2637 = vmatprep.subr.bf16.mxu0 0
        %2638 = vmatpush2.bf16.msra.mxu0 0
        %2639 = vmatprep.subr.bf16.mxu0 0
        %2640 = vmatpush2.bf16.msra.mxu0 0
        %2641 = vmatprep.subr.bf16.mxu0 0
        %2642 = vmatpush2.bf16.msra.mxu0 0
        %2643 = vmatprep.subr.bf16.mxu0 0
        %2644 = vmatpush2.bf16.msra.mxu0 0
        %2645 = vmatprep.subr.bf16.mxu0 0
        %2646 = vmatpush2.bf16.msra.mxu0 0
        %2647 = vmatprep.subr.bf16.mxu0 0
        %2648 = vmatpush2.bf16.msra.mxu0 0
        %2649 = vmatprep.subr.bf16.mxu0 0
        %2650 = vmatpush2.bf16.msra.mxu0 0
        %2651 = vmatprep.subr.bf16.mxu0 0
        %2652 = vmatpush2.bf16.msra.mxu0 0
        %2653 = vmatprep.mubr.bf16.mxu0 0
        %2654 = vmatmul.mubr.bf16.gmra.mxu0 %v2380
        %v2655 = vpop.f32.mrf.mxu0
        %v2656 = vadd.f32 %v2355, %v2655
        %v2657 = vpop.f32.mrf.mxu0
        %v2658 = vadd.f32 %v2359, %v2657
        %v2659 = vpop.f32.mrf.mxu0
        %v2660 = vadd.f32 %v2355, %v2659
        %v2661 = vpop.f32.mrf.mxu0
        %v2662 = vadd.f32 %v2359, %v2661
        %2663 = vmatprep.mubr.bf16.mxu0 0
        %2664 = vmatmul.mubr.bf16.gmra.mxu0 %v2381
        %v2665 = vpop.f32.mrf.mxu0
        %v2666 = vadd.f32 %v2355, %v2665
        %v2667 = vpop.f32.mrf.mxu0
        %v2668 = vadd.f32 %v2359, %v2667
        %v2669 = vpop.f32.mrf.mxu0
        %v2670 = vadd.f32 %v2355, %v2669
        %v2671 = vpop.f32.mrf.mxu0
        %v2672 = vadd.f32 %v2359, %v2671
        %2673 = vmatprep.mubr.bf16.mxu0 0
        %2674 = vmatmul.mubr.bf16.gmra.mxu0 %v2382
        %v2675 = vpop.f32.mrf.mxu0
        %v2676 = vadd.f32 %v2355, %v2675
        %v2677 = vpop.f32.mrf.mxu0
        %v2678 = vadd.f32 %v2359, %v2677
        %v2679 = vpop.f32.mrf.mxu0
        %v2680 = vadd.f32 %v2355, %v2679
        %v2681 = vpop.f32.mrf.mxu0
        %v2682 = vadd.f32 %v2359, %v2681
        %2683 = vmatprep.mubr.bf16.mxu0 0
        %2684 = vmatmul.mubr.bf16.gmra.mxu0 %v2383
        %v2685 = vpop.f32.mrf.mxu0
        %v2686 = vadd.f32 %v2355, %v2685
        %v2687 = vpop.f32.mrf.mxu0
        %v2688 = vadd.f32 %v2359, %v2687
        %v2689 = vpop.f32.mrf.mxu0
        %v2690 = vadd.f32 %v2355, %v2689
        %v2691 = vpop.f32.mrf.mxu0
        %v2692 = vadd.f32 %v2359, %v2691
        %2693 = vdwg.mxu0
        %2694 = vst [vmem:[#allocation2] sm:$0xff] %v2583
        %2695 = vst [vmem:[#allocation2 + $0x8] sm:$0xff] %v2585
        %2696 = vst [vmem:[#allocation2 + $0x10] sm:$0xff] %v2656
        %2697 = vst [vmem:[#allocation2 + $0x18] sm:$0xff] %v2658
        %2698 = vst [vmem:[#allocation2 + $0x20] sm:$0xff] %v2587
        %2699 = vst [vmem:[#allocation2 + $0x28] sm:$0xff] %v2589
        %2700 = vst [vmem:[#allocation2 + $0x30] sm:$0xff] %v2660
        %2701 = vst [vmem:[#allocation2 + $0x38] sm:$0xff] %v2662
        %2702 = vst [vmem:[#allocation2 + $0x40] sm:$0xff] %v2593
        %2703 = vst [vmem:[#allocation2 + $0x48] sm:$0xff] %v2595
        %2704 = vst [vmem:[#allocation2 + $0x50] sm:$0xff] %v2666
        %2705 = vst [vmem:[#allocation2 + $0x58] sm:$0xff] %v2668
        %2706 = vst [vmem:[#allocation2 + $0x60] sm:$0xff] %v2597
        %2707 = vst [vmem:[#allocation2 + $0x68] sm:$0xff] %v2599
        %2708 = vst [vmem:[#allocation2 + $0x70] sm:$0xff] %v2670
        %2709 = vst [vmem:[#allocation2 + $0x78] sm:$0xff] %v2672
        %2710 = vst [vmem:[#allocation2 + $0x80] sm:$0xff] %v2603
        %2711 = vst [vmem:[#allocation2 + $0x88] sm:$0xff] %v2605
        %2712 = vst [vmem:[#allocation2 + $0x90] sm:$0xff] %v2676
        %2713 = vst [vmem:[#allocation2 + $0x98] sm:$0xff] %v2678
        %2714 = vst [vmem:[#allocation2 + $0xa0] sm:$0xff] %v2607
        %2715 = vst [vmem:[#allocation2 + $0xa8] sm:$0xff] %v2609
        %2716 = vst [vmem:[#allocation2 + $0xb0] sm:$0xff] %v2680
        %2717 = vst [vmem:[#allocation2 + $0xb8] sm:$0xff] %v2682
        %2718 = vst [vmem:[#allocation2 + $0xc0] sm:$0xff] %v2613
        %2719 = vst [vmem:[#allocation2 + $0xc8] sm:$0xff] %v2615
        %2720 = vst [vmem:[#allocation2 + $0xd0] sm:$0xff] %v2686
        %2721 = vst [vmem:[#allocation2 + $0xd8] sm:$0xff] %v2688
        %2722 = vst [vmem:[#allocation2 + $0xe0] sm:$0xff] %v2617
        %2723 = vst [vmem:[#allocation2 + $0xe8] sm:$0xff] %v2619
        %2724 = vst [vmem:[#allocation2 + $0xf0] sm:$0xff] %v2690
        %2725 = vst [vmem:[#allocation2 + $0xf8] sm:$0xff] %v2692
        %s2726 = scalar_lea.vmem [#allocation4], 32
        %v2727 = vld [vmem:[%s2726] sm:$0xff]
        %v2728 = vld [vmem:[%s2726 + $0x8] sm:$0xff]
        %s2729 = scalar_lea.vmem [#allocation4], 48
        %v2730 = vld [vmem:[%s2729] sm:$0xff]
        %v2731 = vld [vmem:[%s2729 + $0x8] sm:$0xff]
        %v2732 = vld [vmem:[#allocation2] sm:$0xff]
        %v2733 = vld [vmem:[#allocation2 + $0x8] sm:$0xff]
        %v2734 = vld [vmem:[#allocation2 + $0x10] sm:$0xff]
        %v2735 = vld [vmem:[#allocation2 + $0x18] sm:$0xff]
        %v2736 = vld [vmem:[#allocation2 + $0x20] sm:$0xff]
        %v2737 = vld [vmem:[#allocation2 + $0x28] sm:$0xff]
        %v2738 = vld [vmem:[#allocation2 + $0x30] sm:$0xff]
        %v2739 = vld [vmem:[#allocation2 + $0x38] sm:$0xff]
        %v2740 = vpack.c.bf16 %v2728, %v2727
        %v2741 = vld [vmem:[#allocation10] sm:$0xff]
        %v2742 = vld [vmem:[#allocation10 + $0x8] sm:$0xff]
        %v2743 = vld [vmem:[#allocation10 + $0x10] sm:$0xff]
        %v2744 = vld [vmem:[#allocation10 + $0x18] sm:$0xff]
        %v2745 = vld [vmem:[#allocation10 + $0x20] sm:$0xff]
        %v2746 = vld [vmem:[#allocation10 + $0x28] sm:$0xff]
        %v2747 = vld [vmem:[#allocation10 + $0x30] sm:$0xff]
        %v2748 = vld [vmem:[#allocation10 + $0x38] sm:$0xff]
        %v2749 = vld [vmem:[#allocation10 + $0x40] sm:$0xff]
        %v2750 = vld [vmem:[#allocation10 + $0x48] sm:$0xff]
        %v2751 = vld [vmem:[#allocation10 + $0x50] sm:$0xff]
        %v2752 = vld [vmem:[#allocation10 + $0x58] sm:$0xff]
        %v2753 = vld [vmem:[#allocation10 + $0x60] sm:$0xff]
        %v2754 = vld [vmem:[#allocation10 + $0x68] sm:$0xff]
        %v2755 = vld [vmem:[#allocation10 + $0x70] sm:$0xff]
        %v2756 = vld [vmem:[#allocation10 + $0x78] sm:$0xff]
        %v2757 = vld [vmem:[#allocation10 + $0x80] sm:$0xff]
        %v2758 = vld [vmem:[#allocation10 + $0x88] sm:$0xff]
        %v2759 = vld [vmem:[#allocation10 + $0x90] sm:$0xff]
        %v2760 = vld [vmem:[#allocation10 + $0x98] sm:$0xff]
        %v2761 = vld [vmem:[#allocation10 + $0xa0] sm:$0xff]
        %v2762 = vld [vmem:[#allocation10 + $0xa8] sm:$0xff]
        %v2763 = vld [vmem:[#allocation10 + $0xb0] sm:$0xff]
        %v2764 = vld [vmem:[#allocation10 + $0xb8] sm:$0xff]
        %v2765 = vld [vmem:[#allocation10 + $0xc0] sm:$0xff]
        %v2766 = vld [vmem:[#allocation10 + $0xc8] sm:$0xff]
        %v2767 = vld [vmem:[#allocation10 + $0xd0] sm:$0xff]
        %v2768 = vld [vmem:[#allocation10 + $0xd8] sm:$0xff]
        %v2769 = vld [vmem:[#allocation10 + $0xe0] sm:$0xff]
        %v2770 = vld [vmem:[#allocation10 + $0xe8] sm:$0xff]
        %v2771 = vld [vmem:[#allocation10 + $0xf0] sm:$0xff]
        %v2772 = vld [vmem:[#allocation10 + $0xf8] sm:$0xff]
        %v2805 = vunpack.c.l.b16 %v2741
        %v2806 = vunpack.c.h.b16 %v2741
        %v2807 = vunpack.c.l.b16 %v2742
        %v2808 = vunpack.c.h.b16 %v2742
        %v2809 = vunpack.c.l.b16 %v2743
        %v2810 = vunpack.c.h.b16 %v2743
        %v2811 = vunpack.c.l.b16 %v2744
        %v2812 = vunpack.c.h.b16 %v2744
        %v2813 = vunpack.c.l.b16 %v2745
        %v2814 = vunpack.c.h.b16 %v2745
        %v2815 = vunpack.c.l.b16 %v2746
        %v2816 = vunpack.c.h.b16 %v2746
        %v2817 = vunpack.c.l.b16 %v2747
        %v2818 = vunpack.c.h.b16 %v2747
        %v2819 = vunpack.c.l.b16 %v2748
        %v2820 = vunpack.c.h.b16 %v2748
        %v2821 = vunpack.c.l.b16 %v2749
        %v2822 = vunpack.c.h.b16 %v2749
        %v2823 = vunpack.c.l.b16 %v2750
        %v2824 = vunpack.c.h.b16 %v2750
        %v2825 = vunpack.c.l.b16 %v2751
        %v2826 = vunpack.c.h.b16 %v2751
        %v2827 = vunpack.c.l.b16 %v2752
        %v2828 = vunpack.c.h.b16 %v2752
        %v2829 = vunpack.c.l.b16 %v2753
        %v2830 = vunpack.c.h.b16 %v2753
        %v2831 = vunpack.c.l.b16 %v2754
        %v2832 = vunpack.c.h.b16 %v2754
        %v2833 = vunpack.c.l.b16 %v2755
        %v2834 = vunpack.c.h.b16 %v2755
        %v2835 = vunpack.c.l.b16 %v2756
        %v2836 = vunpack.c.h.b16 %v2756
        %v2837 = vunpack.c.l.b16 %v2757
        %v2838 = vunpack.c.h.b16 %v2757
        %v2839 = vunpack.c.l.b16 %v2758
        %v2840 = vunpack.c.h.b16 %v2758
        %v2841 = vunpack.c.l.b16 %v2759
        %v2842 = vunpack.c.h.b16 %v2759
        %v2843 = vunpack.c.l.b16 %v2760
        %v2844 = vunpack.c.h.b16 %v2760
        %v2845 = vunpack.c.l.b16 %v2761
        %v2846 = vunpack.c.h.b16 %v2761
        %v2847 = vunpack.c.l.b16 %v2762
        %v2848 = vunpack.c.h.b16 %v2762
        %v2849 = vunpack.c.l.b16 %v2763
        %v2850 = vunpack.c.h.b16 %v2763
        %v2851 = vunpack.c.l.b16 %v2764
        %v2852 = vunpack.c.h.b16 %v2764
        %v2853 = vunpack.c.l.b16 %v2765
        %v2854 = vunpack.c.h.b16 %v2765
        %v2855 = vunpack.c.l.b16 %v2766
        %v2856 = vunpack.c.h.b16 %v2766
        %v2857 = vunpack.c.l.b16 %v2767
        %v2858 = vunpack.c.h.b16 %v2767
        %v2859 = vunpack.c.l.b16 %v2768
        %v2860 = vunpack.c.h.b16 %v2768
        %v2861 = vunpack.c.l.b16 %v2769
        %v2862 = vunpack.c.h.b16 %v2769
        %v2863 = vunpack.c.l.b16 %v2770
        %v2864 = vunpack.c.h.b16 %v2770
        %v2865 = vunpack.c.l.b16 %v2771
        %v2866 = vunpack.c.h.b16 %v2771
        %v2867 = vunpack.c.l.b16 %v2772
        %v2868 = vunpack.c.h.b16 %v2772
        %v2869 = vpack.c.b16 %v2809, %v2805
        %v2870 = vpack.c.b16 %v2810, %v2806
        %v2871 = vpack.c.b16 %v2811, %v2807
        %v2872 = vpack.c.b16 %v2812, %v2808
        %v2873 = vpack.c.b16 %v2817, %v2813
        %v2874 = vpack.c.b16 %v2818, %v2814
        %v2875 = vpack.c.b16 %v2819, %v2815
        %v2876 = vpack.c.b16 %v2820, %v2816
        %v2877 = vpack.c.b16 %v2825, %v2821
        %v2878 = vpack.c.b16 %v2826, %v2822
        %v2879 = vpack.c.b16 %v2827, %v2823
        %v2880 = vpack.c.b16 %v2828, %v2824
        %v2881 = vpack.c.b16 %v2833, %v2829
        %v2882 = vpack.c.b16 %v2834, %v2830
        %v2883 = vpack.c.b16 %v2835, %v2831
        %v2884 = vpack.c.b16 %v2836, %v2832
        %v2885 = vpack.c.b16 %v2841, %v2837
        %v2886 = vpack.c.b16 %v2842, %v2838
        %v2887 = vpack.c.b16 %v2843, %v2839
        %v2888 = vpack.c.b16 %v2844, %v2840
        %v2889 = vpack.c.b16 %v2849, %v2845
        %v2890 = vpack.c.b16 %v2850, %v2846
        %v2891 = vpack.c.b16 %v2851, %v2847
        %v2892 = vpack.c.b16 %v2852, %v2848
        %v2893 = vpack.c.b16 %v2857, %v2853
        %v2894 = vpack.c.b16 %v2858, %v2854
        %v2895 = vpack.c.b16 %v2859, %v2855
        %v2896 = vpack.c.b16 %v2860, %v2856
        %v2897 = vpack.c.b16 %v2865, %v2861
        %v2898 = vpack.c.b16 %v2866, %v2862
        %v2899 = vpack.c.b16 %v2867, %v2863
        %v2900 = vpack.c.b16 %v2868, %v2864
        %2933 = vmatprep.subr.bf16.mxu0 %v2898
        %2934 = vmatpush1.bf16.msra.mxu0 %v2897
        %2935 = vmatprep.subr.bf16.mxu0 %v2894
        %2936 = vmatpush1.bf16.msra.mxu0 %v2893
        %2937 = vmatprep.subr.bf16.mxu0 %v2890
        %2938 = vmatpush1.bf16.msra.mxu0 %v2889
        %2939 = vmatprep.subr.bf16.mxu0 %v2886
        %2940 = vmatpush1.bf16.msra.mxu0 %v2885
        %2941 = vmatprep.subr.bf16.mxu0 %v2882
        %2942 = vmatpush1.bf16.msra.mxu0 %v2881
        %2943 = vmatprep.subr.bf16.mxu0 %v2878
        %2944 = vmatpush1.bf16.msra.mxu0 %v2877
        %2945 = vmatprep.subr.bf16.mxu0 %v2874
        %2946 = vmatpush1.bf16.msra.mxu0 %v2873
        %2947 = vmatprep.subr.bf16.mxu0 %v2870
        %2948 = vmatpush1.bf16.msra.mxu0 %v2869
        %2949 = vmatprep.subr.bf16.mxu0 0
        %2950 = vmatpush2.bf16.msra.mxu0 0
        %2951 = vmatprep.subr.bf16.mxu0 0
        %2952 = vmatpush2.bf16.msra.mxu0 0
        %2953 = vmatprep.subr.bf16.mxu0 0
        %2954 = vmatpush2.bf16.msra.mxu0 0
        %2955 = vmatprep.subr.bf16.mxu0 0
        %2956 = vmatpush2.bf16.msra.mxu0 0
        %2957 = vmatprep.subr.bf16.mxu0 0
        %2958 = vmatpush2.bf16.msra.mxu0 0
        %2959 = vmatprep.subr.bf16.mxu0 0
        %2960 = vmatpush2.bf16.msra.mxu0 0
        %2961 = vmatprep.subr.bf16.mxu0 0
        %2962 = vmatpush2.bf16.msra.mxu0 0
        %2963 = vmatprep.subr.bf16.mxu0 0
        %2964 = vmatpush2.bf16.msra.mxu0 0
        %2965 = vmatprep.mubr.bf16.mxu0 0
        %2966 = vmatmul.mubr.bf16.gmra.mxu0 %v2740
        %v2967 = vpop.f32.mrf.mxu0
        %v2968 = vadd.f32 0.0, %v2967
        %v2969 = vpop.f32.mrf.mxu0
        %v2970 = vadd.f32 0.0, %v2969
        %v2971 = vpop.f32.mrf.mxu0
        %v2972 = vadd.f32 0.0, %v2971
        %v2973 = vpop.f32.mrf.mxu0
        %v2974 = vadd.f32 0.0, %v2973
        %2975 = vdwg.mxu0
        %2976 = vmatprep.subr.bf16.mxu0 %v2900
        %2977 = vmatpush1.bf16.msra.mxu0 %v2899
        %2978 = vmatprep.subr.bf16.mxu0 %v2896
        %2979 = vmatpush1.bf16.msra.mxu0 %v2895
        %2980 = vmatprep.subr.bf16.mxu0 %v2892
        %2981 = vmatpush1.bf16.msra.mxu0 %v2891
        %2982 = vmatprep.subr.bf16.mxu0 %v2888
        %2983 = vmatpush1.bf16.msra.mxu0 %v2887
        %2984 = vmatprep.subr.bf16.mxu0 %v2884
        %2985 = vmatpush1.bf16.msra.mxu0 %v2883
        %2986 = vmatprep.subr.bf16.mxu0 %v2880
        %2987 = vmatpush1.bf16.msra.mxu0 %v2879
        %2988 = vmatprep.subr.bf16.mxu0 %v2876
        %2989 = vmatpush1.bf16.msra.mxu0 %v2875
        %2990 = vmatprep.subr.bf16.mxu0 %v2872
        %2991 = vmatpush1.bf16.msra.mxu0 %v2871
        %2992 = vmatprep.subr.bf16.mxu0 0
        %2993 = vmatpush2.bf16.msra.mxu0 0
        %2994 = vmatprep.subr.bf16.mxu0 0
        %2995 = vmatpush2.bf16.msra.mxu0 0
        %2996 = vmatprep.subr.bf16.mxu0 0
        %2997 = vmatpush2.bf16.msra.mxu0 0
        %2998 = vmatprep.subr.bf16.mxu0 0
        %2999 = vmatpush2.bf16.msra.mxu0 0
        %3000 = vmatprep.subr.bf16.mxu0 0
        %3001 = vmatpush2.bf16.msra.mxu0 0
        %3002 = vmatprep.subr.bf16.mxu0 0
        %3003 = vmatpush2.bf16.msra.mxu0 0
        %3004 = vmatprep.subr.bf16.mxu0 0
        %3005 = vmatpush2.bf16.msra.mxu0 0
        %3006 = vmatprep.subr.bf16.mxu0 0
        %3007 = vmatpush2.bf16.msra.mxu0 0
        %3008 = vmatprep.mubr.bf16.mxu0 0
        %3009 = vmatmul.mubr.bf16.gmra.mxu0 %v2740
        %v3010 = vpop.f32.mrf.mxu0
        %v3011 = vadd.f32 0.0, %v3010
        %v3012 = vpop.f32.mrf.mxu0
        %v3013 = vadd.f32 0.0, %v3012
        %v3014 = vpop.f32.mrf.mxu0
        %v3015 = vadd.f32 0.0, %v3014
        %v3016 = vpop.f32.mrf.mxu0
        %v3017 = vadd.f32 0.0, %v3016
        %3018 = vdwg.mxu0
        %v3019 = vadd.f32 %v2732, %v2968
        %v3020 = vadd.f32 %v2733, %v2970
        %v3021 = vadd.f32 %v2734, %v3011
        %v3022 = vadd.f32 %v2735, %v3013
        %v3023 = vadd.f32 %v2736, %v2972
        %v3024 = vadd.f32 %v2737, %v2974
        %v3025 = vadd.f32 %v2738, %v3015
        %v3026 = vadd.f32 %v2739, %v3017
        %v3027 = vxor.u32 %v3019, 2147483648
        %v3028 = vxor.u32 %v3020, 2147483648
        %v3029 = vxor.u32 %v3021, 2147483648
        %v3030 = vxor.u32 %v3023, 2147483648
        %v3031 = vxor.u32 %v3024, 2147483648
        %v3032 = vxor.u32 %v3025, 2147483648
        %v3033 = vmul.f32 %v3027, 1.442695
        %v3034 = vpow.pop %v3033
        %v3035 = vmul.f32 %v3028, 1.442695
        %v3036 = vpow.pop %v3035
        %v3037 = vmul.f32 %v3029, 1.442695
        %v3038 = vpow.pop %v3037
        %v3039 = vmul.f32 %v3030, 1.442695
        %v3040 = vpow.pop %v3039
        %v3041 = vmul.f32 %v3031, 1.442695
        %v3042 = vpow.pop %v3041
        %v3043 = vmul.f32 %v3032, 1.442695
        %v3044 = vpow.pop %v3043
        %v3045 = vadd.f32 %v3034, 1.0
        %v3046 = vadd.f32 %v3036, 1.0
        %v3047 = vadd.f32 %v3038, 1.0
        %v3048 = vadd.f32 %v3040, 1.0
        %v3049 = vadd.f32 %v3042, 1.0
        %v3050 = vadd.f32 %v3044, 1.0
        %v3051 = vrcp.pop %v3045
        %v3052 = vmul.f32 1.0, %v3051
        %v3053 = vrcp.pop %v3046
        %v3054 = vmul.f32 1.0, %v3053
        %v3055 = vrcp.pop %v3047
        %v3056 = vmul.f32 1.0, %v3055
        %v3057 = vrcp.pop %v3048
        %v3058 = vmul.f32 1.0, %v3057
        %v3059 = vrcp.pop %v3049
        %v3060 = vmul.f32 1.0, %v3059
        %v3061 = vrcp.pop %v3050
        %v3062 = vmul.f32 1.0, %v3061
        %v3063 = vtanh.pop %v3022
        %v3064 = vtanh.pop %v3026
        %v3065 = vmul.f32 %v3054, %v2730
        %v3066 = vmul.f32 %v3060, %v2731
        %v3067 = vmul.f32 %v3052, %v3063
        %v3068 = vmul.f32 %v3058, %v3064
        %v3069 = vadd.f32 %v3065, %v3067
        %v3070 = vadd.f32 %v3066, %v3068
        %v3071 = vtanh.pop %v3069
        %v3072 = vtanh.pop %v3070
        %v3073 = vmul.f32 %v3056, %v3071
        %v3074 = vmul.f32 %v3062, %v3072
        %v3075 = vpack.c.bf16 %v3074, %v3073
        %v3077 = vunpack.c.l.b16 %v3075
        %v3078 = vunpack.c.h.b16 %v3075
        %v3079 = vpack.c.b16 %v3077, %v3077
        %v3080 = vpack.c.b16 %v3078, %v3078
        %3083 = vst [vmem:[#allocation3] sm:$0xf] %v3079
        %3084 = vst [vmem:[#allocation3 + $0x4] sm:$0xf] %v3080
        %v3085 = vld [vmem:[#allocation2 + $0x40] sm:$0xff]
        %v3086 = vld [vmem:[#allocation2 + $0x48] sm:$0xff]
        %v3087 = vld [vmem:[#allocation2 + $0x50] sm:$0xff]
        %v3088 = vld [vmem:[#allocation2 + $0x58] sm:$0xff]
        %v3089 = vld [vmem:[#allocation2 + $0x60] sm:$0xff]
        %v3090 = vld [vmem:[#allocation2 + $0x68] sm:$0xff]
        %v3091 = vld [vmem:[#allocation2 + $0x70] sm:$0xff]
        %v3092 = vld [vmem:[#allocation2 + $0x78] sm:$0xff]
        %v3093 = vld [vmem:[#allocation10] sm:$0xff]
        %v3094 = vld [vmem:[#allocation10 + $0x8] sm:$0xff]
        %v3095 = vld [vmem:[#allocation10 + $0x10] sm:$0xff]
        %v3096 = vld [vmem:[#allocation10 + $0x18] sm:$0xff]
        %v3097 = vld [vmem:[#allocation10 + $0x20] sm:$0xff]
        %v3098 = vld [vmem:[#allocation10 + $0x28] sm:$0xff]
        %v3099 = vld [vmem:[#allocation10 + $0x30] sm:$0xff]
        %v3100 = vld [vmem:[#allocation10 + $0x38] sm:$0xff]
        %v3101 = vld [vmem:[#allocation10 + $0x40] sm:$0xff]
        %v3102 = vld [vmem:[#allocation10 + $0x48] sm:$0xff]
        %v3103 = vld [vmem:[#allocation10 + $0x50] sm:$0xff]
        %v3104 = vld [vmem:[#allocation10 + $0x58] sm:$0xff]
        %v3105 = vld [vmem:[#allocation10 + $0x60] sm:$0xff]
        %v3106 = vld [vmem:[#allocation10 + $0x68] sm:$0xff]
        %v3107 = vld [vmem:[#allocation10 + $0x70] sm:$0xff]
        %v3108 = vld [vmem:[#allocation10 + $0x78] sm:$0xff]
        %v3109 = vld [vmem:[#allocation10 + $0x80] sm:$0xff]
        %v3110 = vld [vmem:[#allocation10 + $0x88] sm:$0xff]
        %v3111 = vld [vmem:[#allocation10 + $0x90] sm:$0xff]
        %v3112 = vld [vmem:[#allocation10 + $0x98] sm:$0xff]
        %v3113 = vld [vmem:[#allocation10 + $0xa0] sm:$0xff]
        %v3114 = vld [vmem:[#allocation10 + $0xa8] sm:$0xff]
        %v3115 = vld [vmem:[#allocation10 + $0xb0] sm:$0xff]
        %v3116 = vld [vmem:[#allocation10 + $0xb8] sm:$0xff]
        %v3117 = vld [vmem:[#allocation10 + $0xc0] sm:$0xff]
        %v3118 = vld [vmem:[#allocation10 + $0xc8] sm:$0xff]
        %v3119 = vld [vmem:[#allocation10 + $0xd0] sm:$0xff]
        %v3120 = vld [vmem:[#allocation10 + $0xd8] sm:$0xff]
        %v3121 = vld [vmem:[#allocation10 + $0xe0] sm:$0xff]
        %v3122 = vld [vmem:[#allocation10 + $0xe8] sm:$0xff]
        %v3123 = vld [vmem:[#allocation10 + $0xf0] sm:$0xff]
        %v3124 = vld [vmem:[#allocation10 + $0xf8] sm:$0xff]
        %v3157 = vunpack.c.l.b16 %v3093
        %v3158 = vunpack.c.h.b16 %v3093
        %v3159 = vunpack.c.l.b16 %v3094
        %v3160 = vunpack.c.h.b16 %v3094
        %v3161 = vunpack.c.l.b16 %v3095
        %v3162 = vunpack.c.h.b16 %v3095
        %v3163 = vunpack.c.l.b16 %v3096
        %v3164 = vunpack.c.h.b16 %v3096
        %v3165 = vunpack.c.l.b16 %v3097
        %v3166 = vunpack.c.h.b16 %v3097
        %v3167 = vunpack.c.l.b16 %v3098
        %v3168 = vunpack.c.h.b16 %v3098
        %v3169 = vunpack.c.l.b16 %v3099
        %v3170 = vunpack.c.h.b16 %v3099
        %v3171 = vunpack.c.l.b16 %v3100
        %v3172 = vunpack.c.h.b16 %v3100
        %v3173 = vunpack.c.l.b16 %v3101
        %v3174 = vunpack.c.h.b16 %v3101
        %v3175 = vunpack.c.l.b16 %v3102
        %v3176 = vunpack.c.h.b16 %v3102
        %v3177 = vunpack.c.l.b16 %v3103
        %v3178 = vunpack.c.h.b16 %v3103
        %v3179 = vunpack.c.l.b16 %v3104
        %v3180 = vunpack.c.h.b16 %v3104
        %v3181 = vunpack.c.l.b16 %v3105
        %v3182 = vunpack.c.h.b16 %v3105
        %v3183 = vunpack.c.l.b16 %v3106
        %v3184 = vunpack.c.h.b16 %v3106
        %v3185 = vunpack.c.l.b16 %v3107
        %v3186 = vunpack.c.h.b16 %v3107
        %v3187 = vunpack.c.l.b16 %v3108
        %v3188 = vunpack.c.h.b16 %v3108
        %v3189 = vunpack.c.l.b16 %v3109
        %v3190 = vunpack.c.h.b16 %v3109
        %v3191 = vunpack.c.l.b16 %v3110
        %v3192 = vunpack.c.h.b16 %v3110
        %v3193 = vunpack.c.l.b16 %v3111
        %v3194 = vunpack.c.h.b16 %v3111
        %v3195 = vunpack.c.l.b16 %v3112
        %v3196 = vunpack.c.h.b16 %v3112
        %v3197 = vunpack.c.l.b16 %v3113
        %v3198 = vunpack.c.h.b16 %v3113
        %v3199 = vunpack.c.l.b16 %v3114
        %v3200 = vunpack.c.h.b16 %v3114
        %v3201 = vunpack.c.l.b16 %v3115
        %v3202 = vunpack.c.h.b16 %v3115
        %v3203 = vunpack.c.l.b16 %v3116
        %v3204 = vunpack.c.h.b16 %v3116
        %v3205 = vunpack.c.l.b16 %v3117
        %v3206 = vunpack.c.h.b16 %v3117
        %v3207 = vunpack.c.l.b16 %v3118
        %v3208 = vunpack.c.h.b16 %v3118
        %v3209 = vunpack.c.l.b16 %v3119
        %v3210 = vunpack.c.h.b16 %v3119
        %v3211 = vunpack.c.l.b16 %v3120
        %v3212 = vunpack.c.h.b16 %v3120
        %v3213 = vunpack.c.l.b16 %v3121
        %v3214 = vunpack.c.h.b16 %v3121
        %v3215 = vunpack.c.l.b16 %v3122
        %v3216 = vunpack.c.h.b16 %v3122
        %v3217 = vunpack.c.l.b16 %v3123
        %v3218 = vunpack.c.h.b16 %v3123
        %v3219 = vunpack.c.l.b16 %v3124
        %v3220 = vunpack.c.h.b16 %v3124
        %v3221 = vpack.c.b16 %v3161, %v3157
        %v3222 = vpack.c.b16 %v3162, %v3158
        %v3223 = vpack.c.b16 %v3163, %v3159
        %v3224 = vpack.c.b16 %v3164, %v3160
        %v3225 = vpack.c.b16 %v3169, %v3165
        %v3226 = vpack.c.b16 %v3170, %v3166
        %v3227 = vpack.c.b16 %v3171, %v3167
        %v3228 = vpack.c.b16 %v3172, %v3168
        %v3229 = vpack.c.b16 %v3177, %v3173
        %v3230 = vpack.c.b16 %v3178, %v3174
        %v3231 = vpack.c.b16 %v3179, %v3175
        %v3232 = vpack.c.b16 %v3180, %v3176
        %v3233 = vpack.c.b16 %v3185, %v3181
        %v3234 = vpack.c.b16 %v3186, %v3182
        %v3235 = vpack.c.b16 %v3187, %v3183
        %v3236 = vpack.c.b16 %v3188, %v3184
        %v3237 = vpack.c.b16 %v3193, %v3189
        %v3238 = vpack.c.b16 %v3194, %v3190
        %v3239 = vpack.c.b16 %v3195, %v3191
        %v3240 = vpack.c.b16 %v3196, %v3192
        %v3241 = vpack.c.b16 %v3201, %v3197
        %v3242 = vpack.c.b16 %v3202, %v3198
        %v3243 = vpack.c.b16 %v3203, %v3199
        %v3244 = vpack.c.b16 %v3204, %v3200
        %v3245 = vpack.c.b16 %v3209, %v3205
        %v3246 = vpack.c.b16 %v3210, %v3206
        %v3247 = vpack.c.b16 %v3211, %v3207
        %v3248 = vpack.c.b16 %v3212, %v3208
        %v3249 = vpack.c.b16 %v3217, %v3213
        %v3250 = vpack.c.b16 %v3218, %v3214
        %v3251 = vpack.c.b16 %v3219, %v3215
        %v3252 = vpack.c.b16 %v3220, %v3216
        %3285 = vmatprep.subr.bf16.mxu0 %v3250
        %3286 = vmatpush1.bf16.msra.mxu0 %v3249
        %3287 = vmatprep.subr.bf16.mxu0 %v3246
        %3288 = vmatpush1.bf16.msra.mxu0 %v3245
        %3289 = vmatprep.subr.bf16.mxu0 %v3242
        %3290 = vmatpush1.bf16.msra.mxu0 %v3241
        %3291 = vmatprep.subr.bf16.mxu0 %v3238
        %3292 = vmatpush1.bf16.msra.mxu0 %v3237
        %3293 = vmatprep.subr.bf16.mxu0 %v3234
        %3294 = vmatpush1.bf16.msra.mxu0 %v3233
        %3295 = vmatprep.subr.bf16.mxu0 %v3230
        %3296 = vmatpush1.bf16.msra.mxu0 %v3229
        %3297 = vmatprep.subr.bf16.mxu0 %v3226
        %3298 = vmatpush1.bf16.msra.mxu0 %v3225
        %3299 = vmatprep.subr.bf16.mxu0 %v3222
        %3300 = vmatpush1.bf16.msra.mxu0 %v3221
        %3301 = vmatprep.subr.bf16.mxu0 0
        %3302 = vmatpush2.bf16.msra.mxu0 0
        %3303 = vmatprep.subr.bf16.mxu0 0
        %3304 = vmatpush2.bf16.msra.mxu0 0
        %3305 = vmatprep.subr.bf16.mxu0 0
        %3306 = vmatpush2.bf16.msra.mxu0 0
        %3307 = vmatprep.subr.bf16.mxu0 0
        %3308 = vmatpush2.bf16.msra.mxu0 0
        %3309 = vmatprep.subr.bf16.mxu0 0
        %3310 = vmatpush2.bf16.msra.mxu0 0
        %3311 = vmatprep.subr.bf16.mxu0 0
        %3312 = vmatpush2.bf16.msra.mxu0 0
        %3313 = vmatprep.subr.bf16.mxu0 0
        %3314 = vmatpush2.bf16.msra.mxu0 0
        %3315 = vmatprep.subr.bf16.mxu0 0
        %3316 = vmatpush2.bf16.msra.mxu0 0
        %3317 = vmatprep.mubr.bf16.mxu0 0
        %3318 = vmatmul.mubr.bf16.gmra.mxu0 %v3075
        %v3319 = vpop.f32.mrf.mxu0
        %v3320 = vadd.f32 0.0, %v3319
        %v3321 = vpop.f32.mrf.mxu0
        %v3322 = vadd.f32 0.0, %v3321
        %v3323 = vpop.f32.mrf.mxu0
        %v3324 = vadd.f32 0.0, %v3323
        %v3325 = vpop.f32.mrf.mxu0
        %v3326 = vadd.f32 0.0, %v3325
        %3327 = vdwg.mxu0
        %3328 = vmatprep.subr.bf16.mxu0 %v3252
        %3329 = vmatpush1.bf16.msra.mxu0 %v3251
        %3330 = vmatprep.subr.bf16.mxu0 %v3248
        %3331 = vmatpush1.bf16.msra.mxu0 %v3247
        %3332 = vmatprep.subr.bf16.mxu0 %v3244
        %3333 = vmatpush1.bf16.msra.mxu0 %v3243
        %3334 = vmatprep.subr.bf16.mxu0 %v3240
        %3335 = vmatpush1.bf16.msra.mxu0 %v3239
        %3336 = vmatprep.subr.bf16.mxu0 %v3236
        %3337 = vmatpush1.bf16.msra.mxu0 %v3235
        %3338 = vmatprep.subr.bf16.mxu0 %v3232
        %3339 = vmatpush1.bf16.msra.mxu0 %v3231
        %3340 = vmatprep.subr.bf16.mxu0 %v3228
        %3341 = vmatpush1.bf16.msra.mxu0 %v3227
        %3342 = vmatprep.subr.bf16.mxu0 %v3224
        %3343 = vmatpush1.bf16.msra.mxu0 %v3223
        %3344 = vmatprep.subr.bf16.mxu0 0
        %3345 = vmatpush2.bf16.msra.mxu0 0
        %3346 = vmatprep.subr.bf16.mxu0 0
        %3347 = vmatpush2.bf16.msra.mxu0 0
        %3348 = vmatprep.subr.bf16.mxu0 0
        %3349 = vmatpush2.bf16.msra.mxu0 0
        %3350 = vmatprep.subr.bf16.mxu0 0
        %3351 = vmatpush2.bf16.msra.mxu0 0
        %3352 = vmatprep.subr.bf16.mxu0 0
        %3353 = vmatpush2.bf16.msra.mxu0 0
        %3354 = vmatprep.subr.bf16.mxu0 0
        %3355 = vmatpush2.bf16.msra.mxu0 0
        %3356 = vmatprep.subr.bf16.mxu0 0
        %3357 = vmatpush2.bf16.msra.mxu0 0
        %3358 = vmatprep.subr.bf16.mxu0 0
        %3359 = vmatpush2.bf16.msra.mxu0 0
        %3360 = vmatprep.mubr.bf16.mxu0 0
        %3361 = vmatmul.mubr.bf16.gmra.mxu0 %v3075
        %v3362 = vpop.f32.mrf.mxu0
        %v3363 = vadd.f32 0.0, %v3362
        %v3364 = vpop.f32.mrf.mxu0
        %v3365 = vadd.f32 0.0, %v3364
        %v3366 = vpop.f32.mrf.mxu0
        %v3367 = vadd.f32 0.0, %v3366
        %v3368 = vpop.f32.mrf.mxu0
        %v3369 = vadd.f32 0.0, %v3368
        %3370 = vdwg.mxu0
        %v3371 = vadd.f32 %v3085, %v3320
        %v3372 = vadd.f32 %v3086, %v3322
        %v3373 = vadd.f32 %v3087, %v3363
        %v3374 = vadd.f32 %v3088, %v3365
        %v3375 = vadd.f32 %v3089, %v3324
        %v3376 = vadd.f32 %v3090, %v3326
        %v3377 = vadd.f32 %v3091, %v3367
        %v3378 = vadd.f32 %v3092, %v3369
        %v3379 = vxor.u32 %v3371, 2147483648
        %v3380 = vxor.u32 %v3372, 2147483648
        %v3381 = vxor.u32 %v3373, 2147483648
        %v3382 = vxor.u32 %v3375, 2147483648
        %v3383 = vxor.u32 %v3376, 2147483648
        %v3384 = vxor.u32 %v3377, 2147483648
        %v3385 = vmul.f32 %v3379, 1.442695
        %v3386 = vpow.pop %v3385
        %v3387 = vmul.f32 %v3380, 1.442695
        %v3388 = vpow.pop %v3387
        %v3389 = vmul.f32 %v3381, 1.442695
        %v3390 = vpow.pop %v3389
        %v3391 = vmul.f32 %v3382, 1.442695
        %v3392 = vpow.pop %v3391
        %v3393 = vmul.f32 %v3383, 1.442695
        %v3394 = vpow.pop %v3393
        %v3395 = vmul.f32 %v3384, 1.442695
        %v3396 = vpow.pop %v3395
        %v3397 = vadd.f32 %v3386, 1.0
        %v3398 = vadd.f32 %v3388, 1.0
        %v3399 = vadd.f32 %v3390, 1.0
        %v3400 = vadd.f32 %v3392, 1.0
        %v3401 = vadd.f32 %v3394, 1.0
        %v3402 = vadd.f32 %v3396, 1.0
        %v3403 = vrcp.pop %v3397
        %v3404 = vmul.f32 1.0, %v3403
        %v3405 = vrcp.pop %v3398
        %v3406 = vmul.f32 1.0, %v3405
        %v3407 = vrcp.pop %v3399
        %v3408 = vmul.f32 1.0, %v3407
        %v3409 = vrcp.pop %v3400
        %v3410 = vmul.f32 1.0, %v3409
        %v3411 = vrcp.pop %v3401
        %v3412 = vmul.f32 1.0, %v3411
        %v3413 = vrcp.pop %v3402
        %v3414 = vmul.f32 1.0, %v3413
        %v3415 = vtanh.pop %v3374
        %v3416 = vtanh.pop %v3378
        %v3417 = vmul.f32 %v3406, %v3069
        %v3418 = vmul.f32 %v3412, %v3070
        %v3419 = vmul.f32 %v3404, %v3415
        %v3420 = vmul.f32 %v3410, %v3416
        %v3421 = vadd.f32 %v3417, %v3419
        %v3422 = vadd.f32 %v3418, %v3420
        %v3423 = vtanh.pop %v3421
        %v3424 = vtanh.pop %v3422
        %v3425 = vmul.f32 %v3408, %v3423
        %v3426 = vmul.f32 %v3414, %v3424
        %v3427 = vpack.c.bf16 %v3426, %v3425
        %v3429 = vunpack.c.l.b16 %v3427
        %v3430 = vunpack.c.h.b16 %v3427
        %v3431 = vpack.c.b16 %v3429, %v3429
        %v3432 = vpack.c.b16 %v3430, %v3430
        %3435 = vst [vmem:[#allocation3 + $0x8] sm:$0xf] %v3431
        %3436 = vst [vmem:[#allocation3 + $0xc] sm:$0xf] %v3432
        %v3437 = vld [vmem:[#allocation2 + $0x80] sm:$0xff]
        %v3438 = vld [vmem:[#allocation2 + $0x88] sm:$0xff]
        %v3439 = vld [vmem:[#allocation2 + $0x90] sm:$0xff]
        %v3440 = vld [vmem:[#allocation2 + $0x98] sm:$0xff]
        %v3441 = vld [vmem:[#allocation2 + $0xa0] sm:$0xff]
        %v3442 = vld [vmem:[#allocation2 + $0xa8] sm:$0xff]
        %v3443 = vld [vmem:[#allocation2 + $0xb0] sm:$0xff]
        %v3444 = vld [vmem:[#allocation2 + $0xb8] sm:$0xff]
        %v3445 = vld [vmem:[#allocation10] sm:$0xff]
        %v3446 = vld [vmem:[#allocation10 + $0x8] sm:$0xff]
        %v3447 = vld [vmem:[#allocation10 + $0x10] sm:$0xff]
        %v3448 = vld [vmem:[#allocation10 + $0x18] sm:$0xff]
        %v3449 = vld [vmem:[#allocation10 + $0x20] sm:$0xff]
        %v3450 = vld [vmem:[#allocation10 + $0x28] sm:$0xff]
        %v3451 = vld [vmem:[#allocation10 + $0x30] sm:$0xff]
        %v3452 = vld [vmem:[#allocation10 + $0x38] sm:$0xff]
        %v3453 = vld [vmem:[#allocation10 + $0x40] sm:$0xff]
        %v3454 = vld [vmem:[#allocation10 + $0x48] sm:$0xff]
        %v3455 = vld [vmem:[#allocation10 + $0x50] sm:$0xff]
        %v3456 = vld [vmem:[#allocation10 + $0x58] sm:$0xff]
        %v3457 = vld [vmem:[#allocation10 + $0x60] sm:$0xff]
        %v3458 = vld [vmem:[#allocation10 + $0x68] sm:$0xff]
        %v3459 = vld [vmem:[#allocation10 + $0x70] sm:$0xff]
        %v3460 = vld [vmem:[#allocation10 + $0x78] sm:$0xff]
        %v3461 = vld [vmem:[#allocation10 + $0x80] sm:$0xff]
        %v3462 = vld [vmem:[#allocation10 + $0x88] sm:$0xff]
        %v3463 = vld [vmem:[#allocation10 + $0x90] sm:$0xff]
        %v3464 = vld [vmem:[#allocation10 + $0x98] sm:$0xff]
        %v3465 = vld [vmem:[#allocation10 + $0xa0] sm:$0xff]
        %v3466 = vld [vmem:[#allocation10 + $0xa8] sm:$0xff]
        %v3467 = vld [vmem:[#allocation10 + $0xb0] sm:$0xff]
        %v3468 = vld [vmem:[#allocation10 + $0xb8] sm:$0xff]
        %v3469 = vld [vmem:[#allocation10 + $0xc0] sm:$0xff]
        %v3470 = vld [vmem:[#allocation10 + $0xc8] sm:$0xff]
        %v3471 = vld [vmem:[#allocation10 + $0xd0] sm:$0xff]
        %v3472 = vld [vmem:[#allocation10 + $0xd8] sm:$0xff]
        %v3473 = vld [vmem:[#allocation10 + $0xe0] sm:$0xff]
        %v3474 = vld [vmem:[#allocation10 + $0xe8] sm:$0xff]
        %v3475 = vld [vmem:[#allocation10 + $0xf0] sm:$0xff]
        %v3476 = vld [vmem:[#allocation10 + $0xf8] sm:$0xff]
        %v3509 = vunpack.c.l.b16 %v3445
        %v3510 = vunpack.c.h.b16 %v3445
        %v3511 = vunpack.c.l.b16 %v3446
        %v3512 = vunpack.c.h.b16 %v3446
        %v3513 = vunpack.c.l.b16 %v3447
        %v3514 = vunpack.c.h.b16 %v3447
        %v3515 = vunpack.c.l.b16 %v3448
        %v3516 = vunpack.c.h.b16 %v3448
        %v3517 = vunpack.c.l.b16 %v3449
        %v3518 = vunpack.c.h.b16 %v3449
        %v3519 = vunpack.c.l.b16 %v3450
        %v3520 = vunpack.c.h.b16 %v3450
        %v3521 = vunpack.c.l.b16 %v3451
        %v3522 = vunpack.c.h.b16 %v3451
        %v3523 = vunpack.c.l.b16 %v3452
        %v3524 = vunpack.c.h.b16 %v3452
        %v3525 = vunpack.c.l.b16 %v3453
        %v3526 = vunpack.c.h.b16 %v3453
        %v3527 = vunpack.c.l.b16 %v3454
        %v3528 = vunpack.c.h.b16 %v3454
        %v3529 = vunpack.c.l.b16 %v3455
        %v3530 = vunpack.c.h.b16 %v3455
        %v3531 = vunpack.c.l.b16 %v3456
        %v3532 = vunpack.c.h.b16 %v3456
        %v3533 = vunpack.c.l.b16 %v3457
        %v3534 = vunpack.c.h.b16 %v3457
        %v3535 = vunpack.c.l.b16 %v3458
        %v3536 = vunpack.c.h.b16 %v3458
        %v3537 = vunpack.c.l.b16 %v3459
        %v3538 = vunpack.c.h.b16 %v3459
        %v3539 = vunpack.c.l.b16 %v3460
        %v3540 = vunpack.c.h.b16 %v3460
        %v3541 = vunpack.c.l.b16 %v3461
        %v3542 = vunpack.c.h.b16 %v3461
        %v3543 = vunpack.c.l.b16 %v3462
        %v3544 = vunpack.c.h.b16 %v3462
        %v3545 = vunpack.c.l.b16 %v3463
        %v3546 = vunpack.c.h.b16 %v3463
        %v3547 = vunpack.c.l.b16 %v3464
        %v3548 = vunpack.c.h.b16 %v3464
        %v3549 = vunpack.c.l.b16 %v3465
        %v3550 = vunpack.c.h.b16 %v3465
        %v3551 = vunpack.c.l.b16 %v3466
        %v3552 = vunpack.c.h.b16 %v3466
        %v3553 = vunpack.c.l.b16 %v3467
        %v3554 = vunpack.c.h.b16 %v3467
        %v3555 = vunpack.c.l.b16 %v3468
        %v3556 = vunpack.c.h.b16 %v3468
        %v3557 = vunpack.c.l.b16 %v3469
        %v3558 = vunpack.c.h.b16 %v3469
        %v3559 = vunpack.c.l.b16 %v3470
        %v3560 = vunpack.c.h.b16 %v3470
        %v3561 = vunpack.c.l.b16 %v3471
        %v3562 = vunpack.c.h.b16 %v3471
        %v3563 = vunpack.c.l.b16 %v3472
        %v3564 = vunpack.c.h.b16 %v3472
        %v3565 = vunpack.c.l.b16 %v3473
        %v3566 = vunpack.c.h.b16 %v3473
        %v3567 = vunpack.c.l.b16 %v3474
        %v3568 = vunpack.c.h.b16 %v3474
        %v3569 = vunpack.c.l.b16 %v3475
        %v3570 = vunpack.c.h.b16 %v3475
        %v3571 = vunpack.c.l.b16 %v3476
        %v3572 = vunpack.c.h.b16 %v3476
        %v3573 = vpack.c.b16 %v3513, %v3509
        %v3574 = vpack.c.b16 %v3514, %v3510
        %v3575 = vpack.c.b16 %v3515, %v3511
        %v3576 = vpack.c.b16 %v3516, %v3512
        %v3577 = vpack.c.b16 %v3521, %v3517
        %v3578 = vpack.c.b16 %v3522, %v3518
        %v3579 = vpack.c.b16 %v3523, %v3519
        %v3580 = vpack.c.b16 %v3524, %v3520
        %v3581 = vpack.c.b16 %v3529, %v3525
        %v3582 = vpack.c.b16 %v3530, %v3526
        %v3583 = vpack.c.b16 %v3531, %v3527
        %v3584 = vpack.c.b16 %v3532, %v3528
        %v3585 = vpack.c.b16 %v3537, %v3533
        %v3586 = vpack.c.b16 %v3538, %v3534
        %v3587 = vpack.c.b16 %v3539, %v3535
        %v3588 = vpack.c.b16 %v3540, %v3536
        %v3589 = vpack.c.b16 %v3545, %v3541
        %v3590 = vpack.c.b16 %v3546, %v3542
        %v3591 = vpack.c.b16 %v3547, %v3543
        %v3592 = vpack.c.b16 %v3548, %v3544
        %v3593 = vpack.c.b16 %v3553, %v3549
        %v3594 = vpack.c.b16 %v3554, %v3550
        %v3595 = vpack.c.b16 %v3555, %v3551
        %v3596 = vpack.c.b16 %v3556, %v3552
        %v3597 = vpack.c.b16 %v3561, %v3557
        %v3598 = vpack.c.b16 %v3562, %v3558
        %v3599 = vpack.c.b16 %v3563, %v3559
        %v3600 = vpack.c.b16 %v3564, %v3560
        %v3601 = vpack.c.b16 %v3569, %v3565
        %v3602 = vpack.c.b16 %v3570, %v3566
        %v3603 = vpack.c.b16 %v3571, %v3567
        %v3604 = vpack.c.b16 %v3572, %v3568
        %3637 = vmatprep.subr.bf16.mxu0 %v3602
        %3638 = vmatpush1.bf16.msra.mxu0 %v3601
        %3639 = vmatprep.subr.bf16.mxu0 %v3598
        %3640 = vmatpush1.bf16.msra.mxu0 %v3597
        %3641 = vmatprep.subr.bf16.mxu0 %v3594
        %3642 = vmatpush1.bf16.msra.mxu0 %v3593
        %3643 = vmatprep.subr.bf16.mxu0 %v3590
        %3644 = vmatpush1.bf16.msra.mxu0 %v3589
        %3645 = vmatprep.subr.bf16.mxu0 %v3586
        %3646 = vmatpush1.bf16.msra.mxu0 %v3585
        %3647 = vmatprep.subr.bf16.mxu0 %v3582
        %3648 = vmatpush1.bf16.msra.mxu0 %v3581
        %3649 = vmatprep.subr.bf16.mxu0 %v3578
        %3650 = vmatpush1.bf16.msra.mxu0 %v3577
        %3651 = vmatprep.subr.bf16.mxu0 %v3574
        %3652 = vmatpush1.bf16.msra.mxu0 %v3573
        %3653 = vmatprep.subr.bf16.mxu0 0
        %3654 = vmatpush2.bf16.msra.mxu0 0
        %3655 = vmatprep.subr.bf16.mxu0 0
        %3656 = vmatpush2.bf16.msra.mxu0 0
        %3657 = vmatprep.subr.bf16.mxu0 0
        %3658 = vmatpush2.bf16.msra.mxu0 0
        %3659 = vmatprep.subr.bf16.mxu0 0
        %3660 = vmatpush2.bf16.msra.mxu0 0
        %3661 = vmatprep.subr.bf16.mxu0 0
        %3662 = vmatpush2.bf16.msra.mxu0 0
        %3663 = vmatprep.subr.bf16.mxu0 0
        %3664 = vmatpush2.bf16.msra.mxu0 0
        %3665 = vmatprep.subr.bf16.mxu0 0
        %3666 = vmatpush2.bf16.msra.mxu0 0
        %3667 = vmatprep.subr.bf16.mxu0 0
        %3668 = vmatpush2.bf16.msra.mxu0 0
        %3669 = vmatprep.mubr.bf16.mxu0 0
        %3670 = vmatmul.mubr.bf16.gmra.mxu0 %v3427
        %v3671 = vpop.f32.mrf.mxu0
        %v3672 = vadd.f32 0.0, %v3671
        %v3673 = vpop.f32.mrf.mxu0
        %v3674 = vadd.f32 0.0, %v3673
        %v3675 = vpop.f32.mrf.mxu0
        %v3676 = vadd.f32 0.0, %v3675
        %v3677 = vpop.f32.mrf.mxu0
        %v3678 = vadd.f32 0.0, %v3677
        %3679 = vdwg.mxu0
        %3680 = vmatprep.subr.bf16.mxu0 %v3604
        %3681 = vmatpush1.bf16.msra.mxu0 %v3603
        %3682 = vmatprep.subr.bf16.mxu0 %v3600
        %3683 = vmatpush1.bf16.msra.mxu0 %v3599
        %3684 = vmatprep.subr.bf16.mxu0 %v3596
        %3685 = vmatpush1.bf16.msra.mxu0 %v3595
        %3686 = vmatprep.subr.bf16.mxu0 %v3592
        %3687 = vmatpush1.bf16.msra.mxu0 %v3591
        %3688 = vmatprep.subr.bf16.mxu0 %v3588
        %3689 = vmatpush1.bf16.msra.mxu0 %v3587
        %3690 = vmatprep.subr.bf16.mxu0 %v3584
        %3691 = vmatpush1.bf16.msra.mxu0 %v3583
        %3692 = vmatprep.subr.bf16.mxu0 %v3580
        %3693 = vmatpush1.bf16.msra.mxu0 %v3579
        %3694 = vmatprep.subr.bf16.mxu0 %v3576
        %3695 = vmatpush1.bf16.msra.mxu0 %v3575
        %3696 = vmatprep.subr.bf16.mxu0 0
        %3697 = vmatpush2.bf16.msra.mxu0 0
        %3698 = vmatprep.subr.bf16.mxu0 0
        %3699 = vmatpush2.bf16.msra.mxu0 0
        %3700 = vmatprep.subr.bf16.mxu0 0
        %3701 = vmatpush2.bf16.msra.mxu0 0
        %3702 = vmatprep.subr.bf16.mxu0 0
        %3703 = vmatpush2.bf16.msra.mxu0 0
        %3704 = vmatprep.subr.bf16.mxu0 0
        %3705 = vmatpush2.bf16.msra.mxu0 0
        %3706 = vmatprep.subr.bf16.mxu0 0
        %3707 = vmatpush2.bf16.msra.mxu0 0
        %3708 = vmatprep.subr.bf16.mxu0 0
        %3709 = vmatpush2.bf16.msra.mxu0 0
        %3710 = vmatprep.subr.bf16.mxu0 0
        %3711 = vmatpush2.bf16.msra.mxu0 0
        %3712 = vmatprep.mubr.bf16.mxu0 0
        %3713 = vmatmul.mubr.bf16.gmra.mxu0 %v3427
        %v3714 = vpop.f32.mrf.mxu0
        %v3715 = vadd.f32 0.0, %v3714
        %v3716 = vpop.f32.mrf.mxu0
        %v3717 = vadd.f32 0.0, %v3716
        %v3718 = vpop.f32.mrf.mxu0
        %v3719 = vadd.f32 0.0, %v3718
        %v3720 = vpop.f32.mrf.mxu0
        %v3721 = vadd.f32 0.0, %v3720
        %3722 = vdwg.mxu0
        %v3723 = vadd.f32 %v3437, %v3672
        %v3724 = vadd.f32 %v3438, %v3674
        %v3725 = vadd.f32 %v3439, %v3715
        %v3726 = vadd.f32 %v3440, %v3717
        %v3727 = vadd.f32 %v3441, %v3676
        %v3728 = vadd.f32 %v3442, %v3678
        %v3729 = vadd.f32 %v3443, %v3719
        %v3730 = vadd.f32 %v3444, %v3721
        %v3731 = vxor.u32 %v3723, 2147483648
        %v3732 = vxor.u32 %v3724, 2147483648
        %v3733 = vxor.u32 %v3725, 2147483648
        %v3734 = vxor.u32 %v3727, 2147483648
        %v3735 = vxor.u32 %v3728, 2147483648
        %v3736 = vxor.u32 %v3729, 2147483648
        %v3737 = vmul.f32 %v3731, 1.442695
        %v3738 = vpow.pop %v3737
        %v3739 = vmul.f32 %v3732, 1.442695
        %v3740 = vpow.pop %v3739
        %v3741 = vmul.f32 %v3733, 1.442695
        %v3742 = vpow.pop %v3741
        %v3743 = vmul.f32 %v3734, 1.442695
        %v3744 = vpow.pop %v3743
        %v3745 = vmul.f32 %v3735, 1.442695
        %v3746 = vpow.pop %v3745
        %v3747 = vmul.f32 %v3736, 1.442695
        %v3748 = vpow.pop %v3747
        %v3749 = vadd.f32 %v3738, 1.0
        %v3750 = vadd.f32 %v3740, 1.0
        %v3751 = vadd.f32 %v3742, 1.0
        %v3752 = vadd.f32 %v3744, 1.0
        %v3753 = vadd.f32 %v3746, 1.0
        %v3754 = vadd.f32 %v3748, 1.0
        %v3755 = vrcp.pop %v3749
        %v3756 = vmul.f32 1.0, %v3755
        %v3757 = vrcp.pop %v3750
        %v3758 = vmul.f32 1.0, %v3757
        %v3759 = vrcp.pop %v3751
        %v3760 = vmul.f32 1.0, %v3759
        %v3761 = vrcp.pop %v3752
        %v3762 = vmul.f32 1.0, %v3761
        %v3763 = vrcp.pop %v3753
        %v3764 = vmul.f32 1.0, %v3763
        %v3765 = vrcp.pop %v3754
        %v3766 = vmul.f32 1.0, %v3765
        %v3767 = vtanh.pop %v3726
        %v3768 = vtanh.pop %v3730
        %v3769 = vmul.f32 %v3758, %v3421
        %v3770 = vmul.f32 %v3764, %v3422
        %v3771 = vmul.f32 %v3756, %v3767
        %v3772 = vmul.f32 %v3762, %v3768
        %v3773 = vadd.f32 %v3769, %v3771
        %v3774 = vadd.f32 %v3770, %v3772
        %v3775 = vtanh.pop %v3773
        %v3776 = vtanh.pop %v3774
        %v3777 = vmul.f32 %v3760, %v3775
        %v3778 = vmul.f32 %v3766, %v3776
        %v3779 = vpack.c.bf16 %v3778, %v3777
        %v3781 = vunpack.c.l.b16 %v3779
        %v3782 = vunpack.c.h.b16 %v3779
        %v3783 = vpack.c.b16 %v3781, %v3781
        %v3784 = vpack.c.b16 %v3782, %v3782
        %3787 = vst [vmem:[#allocation3 + $0x10] sm:$0xf] %v3783
        %3788 = vst [vmem:[#allocation3 + $0x14] sm:$0xf] %v3784
        %v3789 = vld [vmem:[#allocation2 + $0xc0] sm:$0xff]
        %v3790 = vld [vmem:[#allocation2 + $0xc8] sm:$0xff]
        %v3791 = vld [vmem:[#allocation2 + $0xd0] sm:$0xff]
        %v3792 = vld [vmem:[#allocation2 + $0xd8] sm:$0xff]
        %v3793 = vld [vmem:[#allocation2 + $0xe0] sm:$0xff]
        %v3794 = vld [vmem:[#allocation2 + $0xe8] sm:$0xff]
        %v3795 = vld [vmem:[#allocation2 + $0xf0] sm:$0xff]
        %v3796 = vld [vmem:[#allocation2 + $0xf8] sm:$0xff]
        %v3797 = vld [vmem:[#allocation10] sm:$0xff]
        %v3798 = vld [vmem:[#allocation10 + $0x8] sm:$0xff]
        %v3799 = vld [vmem:[#allocation10 + $0x10] sm:$0xff]
        %v3800 = vld [vmem:[#allocation10 + $0x18] sm:$0xff]
        %v3801 = vld [vmem:[#allocation10 + $0x20] sm:$0xff]
        %v3802 = vld [vmem:[#allocation10 + $0x28] sm:$0xff]
        %v3803 = vld [vmem:[#allocation10 + $0x30] sm:$0xff]
        %v3804 = vld [vmem:[#allocation10 + $0x38] sm:$0xff]
        %v3805 = vld [vmem:[#allocation10 + $0x40] sm:$0xff]
        %v3806 = vld [vmem:[#allocation10 + $0x48] sm:$0xff]
        %v3807 = vld [vmem:[#allocation10 + $0x50] sm:$0xff]
        %v3808 = vld [vmem:[#allocation10 + $0x58] sm:$0xff]
        %v3809 = vld [vmem:[#allocation10 + $0x60] sm:$0xff]
        %v3810 = vld [vmem:[#allocation10 + $0x68] sm:$0xff]
        %v3811 = vld [vmem:[#allocation10 + $0x70] sm:$0xff]
        %v3812 = vld [vmem:[#allocation10 + $0x78] sm:$0xff]
        %v3813 = vld [vmem:[#allocation10 + $0x80] sm:$0xff]
        %v3814 = vld [vmem:[#allocation10 + $0x88] sm:$0xff]
        %v3815 = vld [vmem:[#allocation10 + $0x90] sm:$0xff]
        %v3816 = vld [vmem:[#allocation10 + $0x98] sm:$0xff]
        %v3817 = vld [vmem:[#allocation10 + $0xa0] sm:$0xff]
        %v3818 = vld [vmem:[#allocation10 + $0xa8] sm:$0xff]
        %v3819 = vld [vmem:[#allocation10 + $0xb0] sm:$0xff]
        %v3820 = vld [vmem:[#allocation10 + $0xb8] sm:$0xff]
        %v3821 = vld [vmem:[#allocation10 + $0xc0] sm:$0xff]
        %v3822 = vld [vmem:[#allocation10 + $0xc8] sm:$0xff]
        %v3823 = vld [vmem:[#allocation10 + $0xd0] sm:$0xff]
        %v3824 = vld [vmem:[#allocation10 + $0xd8] sm:$0xff]
        %v3825 = vld [vmem:[#allocation10 + $0xe0] sm:$0xff]
        %v3826 = vld [vmem:[#allocation10 + $0xe8] sm:$0xff]
        %v3827 = vld [vmem:[#allocation10 + $0xf0] sm:$0xff]
        %v3828 = vld [vmem:[#allocation10 + $0xf8] sm:$0xff]
        %v3861 = vunpack.c.l.b16 %v3797
        %v3862 = vunpack.c.h.b16 %v3797
        %v3863 = vunpack.c.l.b16 %v3798
        %v3864 = vunpack.c.h.b16 %v3798
        %v3865 = vunpack.c.l.b16 %v3799
        %v3866 = vunpack.c.h.b16 %v3799
        %v3867 = vunpack.c.l.b16 %v3800
        %v3868 = vunpack.c.h.b16 %v3800
        %v3869 = vunpack.c.l.b16 %v3801
        %v3870 = vunpack.c.h.b16 %v3801
        %v3871 = vunpack.c.l.b16 %v3802
        %v3872 = vunpack.c.h.b16 %v3802
        %v3873 = vunpack.c.l.b16 %v3803
        %v3874 = vunpack.c.h.b16 %v3803
        %v3875 = vunpack.c.l.b16 %v3804
        %v3876 = vunpack.c.h.b16 %v3804
        %v3877 = vunpack.c.l.b16 %v3805
        %v3878 = vunpack.c.h.b16 %v3805
        %v3879 = vunpack.c.l.b16 %v3806
        %v3880 = vunpack.c.h.b16 %v3806
        %v3881 = vunpack.c.l.b16 %v3807
        %v3882 = vunpack.c.h.b16 %v3807
        %v3883 = vunpack.c.l.b16 %v3808
        %v3884 = vunpack.c.h.b16 %v3808
        %v3885 = vunpack.c.l.b16 %v3809
        %v3886 = vunpack.c.h.b16 %v3809
        %v3887 = vunpack.c.l.b16 %v3810
        %v3888 = vunpack.c.h.b16 %v3810
        %v3889 = vunpack.c.l.b16 %v3811
        %v3890 = vunpack.c.h.b16 %v3811
        %v3891 = vunpack.c.l.b16 %v3812
        %v3892 = vunpack.c.h.b16 %v3812
        %v3893 = vunpack.c.l.b16 %v3813
        %v3894 = vunpack.c.h.b16 %v3813
        %v3895 = vunpack.c.l.b16 %v3814
        %v3896 = vunpack.c.h.b16 %v3814
        %v3897 = vunpack.c.l.b16 %v3815
        %v3898 = vunpack.c.h.b16 %v3815
        %v3899 = vunpack.c.l.b16 %v3816
        %v3900 = vunpack.c.h.b16 %v3816
        %v3901 = vunpack.c.l.b16 %v3817
        %v3902 = vunpack.c.h.b16 %v3817
        %v3903 = vunpack.c.l.b16 %v3818
        %v3904 = vunpack.c.h.b16 %v3818
        %v3905 = vunpack.c.l.b16 %v3819
        %v3906 = vunpack.c.h.b16 %v3819
        %v3907 = vunpack.c.l.b16 %v3820
        %v3908 = vunpack.c.h.b16 %v3820
        %v3909 = vunpack.c.l.b16 %v3821
        %v3910 = vunpack.c.h.b16 %v3821
        %v3911 = vunpack.c.l.b16 %v3822
        %v3912 = vunpack.c.h.b16 %v3822
        %v3913 = vunpack.c.l.b16 %v3823
        %v3914 = vunpack.c.h.b16 %v3823
        %v3915 = vunpack.c.l.b16 %v3824
        %v3916 = vunpack.c.h.b16 %v3824
        %v3917 = vunpack.c.l.b16 %v3825
        %v3918 = vunpack.c.h.b16 %v3825
        %v3919 = vunpack.c.l.b16 %v3826
        %v3920 = vunpack.c.h.b16 %v3826
        %v3921 = vunpack.c.l.b16 %v3827
        %v3922 = vunpack.c.h.b16 %v3827
        %v3923 = vunpack.c.l.b16 %v3828
        %v3924 = vunpack.c.h.b16 %v3828
        %v3925 = vpack.c.b16 %v3865, %v3861
        %v3926 = vpack.c.b16 %v3866, %v3862
        %v3927 = vpack.c.b16 %v3867, %v3863
        %v3928 = vpack.c.b16 %v3868, %v3864
        %v3929 = vpack.c.b16 %v3873, %v3869
        %v3930 = vpack.c.b16 %v3874, %v3870
        %v3931 = vpack.c.b16 %v3875, %v3871
        %v3932 = vpack.c.b16 %v3876, %v3872
        %v3933 = vpack.c.b16 %v3881, %v3877
        %v3934 = vpack.c.b16 %v3882, %v3878
        %v3935 = vpack.c.b16 %v3883, %v3879
        %v3936 = vpack.c.b16 %v3884, %v3880
        %v3937 = vpack.c.b16 %v3889, %v3885
        %v3938 = vpack.c.b16 %v3890, %v3886
        %v3939 = vpack.c.b16 %v3891, %v3887
        %v3940 = vpack.c.b16 %v3892, %v3888
        %v3941 = vpack.c.b16 %v3897, %v3893
        %v3942 = vpack.c.b16 %v3898, %v3894
        %v3943 = vpack.c.b16 %v3899, %v3895
        %v3944 = vpack.c.b16 %v3900, %v3896
        %v3945 = vpack.c.b16 %v3905, %v3901
        %v3946 = vpack.c.b16 %v3906, %v3902
        %v3947 = vpack.c.b16 %v3907, %v3903
        %v3948 = vpack.c.b16 %v3908, %v3904
        %v3949 = vpack.c.b16 %v3913, %v3909
        %v3950 = vpack.c.b16 %v3914, %v3910
        %v3951 = vpack.c.b16 %v3915, %v3911
        %v3952 = vpack.c.b16 %v3916, %v3912
        %v3953 = vpack.c.b16 %v3921, %v3917
        %v3954 = vpack.c.b16 %v3922, %v3918
        %v3955 = vpack.c.b16 %v3923, %v3919
        %v3956 = vpack.c.b16 %v3924, %v3920
        %3989 = vmatprep.subr.bf16.mxu0 %v3954
        %3990 = vmatpush1.bf16.msra.mxu0 %v3953
        %3991 = vmatprep.subr.bf16.mxu0 %v3950
        %3992 = vmatpush1.bf16.msra.mxu0 %v3949
        %3993 = vmatprep.subr.bf16.mxu0 %v3946
        %3994 = vmatpush1.bf16.msra.mxu0 %v3945
        %3995 = vmatprep.subr.bf16.mxu0 %v3942
        %3996 = vmatpush1.bf16.msra.mxu0 %v3941
        %3997 = vmatprep.subr.bf16.mxu0 %v3938
        %3998 = vmatpush1.bf16.msra.mxu0 %v3937
        %3999 = vmatprep.subr.bf16.mxu0 %v3934
        %4000 = vmatpush1.bf16.msra.mxu0 %v3933
        %4001 = vmatprep.subr.bf16.mxu0 %v3930
        %4002 = vmatpush1.bf16.msra.mxu0 %v3929
        %4003 = vmatprep.subr.bf16.mxu0 %v3926
        %4004 = vmatpush1.bf16.msra.mxu0 %v3925
        %4005 = vmatprep.subr.bf16.mxu0 0
        %4006 = vmatpush2.bf16.msra.mxu0 0
        %4007 = vmatprep.subr.bf16.mxu0 0
        %4008 = vmatpush2.bf16.msra.mxu0 0
        %4009 = vmatprep.subr.bf16.mxu0 0
        %4010 = vmatpush2.bf16.msra.mxu0 0
        %4011 = vmatprep.subr.bf16.mxu0 0
        %4012 = vmatpush2.bf16.msra.mxu0 0
        %4013 = vmatprep.subr.bf16.mxu0 0
        %4014 = vmatpush2.bf16.msra.mxu0 0
        %4015 = vmatprep.subr.bf16.mxu0 0
        %4016 = vmatpush2.bf16.msra.mxu0 0
        %4017 = vmatprep.subr.bf16.mxu0 0
        %4018 = vmatpush2.bf16.msra.mxu0 0
        %4019 = vmatprep.subr.bf16.mxu0 0
        %4020 = vmatpush2.bf16.msra.mxu0 0
        %4021 = vmatprep.mubr.bf16.mxu0 0
        %4022 = vmatmul.mubr.bf16.gmra.mxu0 %v3779
        %v4023 = vpop.f32.mrf.mxu0
        %v4024 = vadd.f32 0.0, %v4023
        %v4025 = vpop.f32.mrf.mxu0
        %v4026 = vadd.f32 0.0, %v4025
        %v4027 = vpop.f32.mrf.mxu0
        %v4028 = vadd.f32 0.0, %v4027
        %v4029 = vpop.f32.mrf.mxu0
        %v4030 = vadd.f32 0.0, %v4029
        %4031 = vdwg.mxu0
        %4032 = vmatprep.subr.bf16.mxu0 %v3956
        %4033 = vmatpush1.bf16.msra.mxu0 %v3955
        %4034 = vmatprep.subr.bf16.mxu0 %v3952
        %4035 = vmatpush1.bf16.msra.mxu0 %v3951
        %4036 = vmatprep.subr.bf16.mxu0 %v3948
        %4037 = vmatpush1.bf16.msra.mxu0 %v3947
        %4038 = vmatprep.subr.bf16.mxu0 %v3944
        %4039 = vmatpush1.bf16.msra.mxu0 %v3943
        %4040 = vmatprep.subr.bf16.mxu0 %v3940
        %4041 = vmatpush1.bf16.msra.mxu0 %v3939
        %4042 = vmatprep.subr.bf16.mxu0 %v3936
        %4043 = vmatpush1.bf16.msra.mxu0 %v3935
        %4044 = vmatprep.subr.bf16.mxu0 %v3932
        %4045 = vmatpush1.bf16.msra.mxu0 %v3931
        %4046 = vmatprep.subr.bf16.mxu0 %v3928
        %4047 = vmatpush1.bf16.msra.mxu0 %v3927
        %4048 = vmatprep.subr.bf16.mxu0 0
        %4049 = vmatpush2.bf16.msra.mxu0 0
        %4050 = vmatprep.subr.bf16.mxu0 0
        %4051 = vmatpush2.bf16.msra.mxu0 0
        %4052 = vmatprep.subr.bf16.mxu0 0
        %4053 = vmatpush2.bf16.msra.mxu0 0
        %4054 = vmatprep.subr.bf16.mxu0 0
        %4055 = vmatpush2.bf16.msra.mxu0 0
        %4056 = vmatprep.subr.bf16.mxu0 0
        %4057 = vmatpush2.bf16.msra.mxu0 0
        %4058 = vmatprep.subr.bf16.mxu0 0
        %4059 = vmatpush2.bf16.msra.mxu0 0
        %4060 = vmatprep.subr.bf16.mxu0 0
        %4061 = vmatpush2.bf16.msra.mxu0 0
        %4062 = vmatprep.subr.bf16.mxu0 0
        %4063 = vmatpush2.bf16.msra.mxu0 0
        %4064 = vmatprep.mubr.bf16.mxu0 0
        %4065 = vmatmul.mubr.bf16.gmra.mxu0 %v3779
        %v4066 = vpop.f32.mrf.mxu0
        %v4067 = vadd.f32 0.0, %v4066
        %v4068 = vpop.f32.mrf.mxu0
        %v4069 = vadd.f32 0.0, %v4068
        %v4070 = vpop.f32.mrf.mxu0
        %v4071 = vadd.f32 0.0, %v4070
        %v4072 = vpop.f32.mrf.mxu0
        %v4073 = vadd.f32 0.0, %v4072
        %4074 = vdwg.mxu0
        %v4075 = vadd.f32 %v3789, %v4024
        %v4076 = vadd.f32 %v3790, %v4026
        %v4077 = vadd.f32 %v3791, %v4067
        %v4078 = vadd.f32 %v3792, %v4069
        %v4079 = vadd.f32 %v3793, %v4028
        %v4080 = vadd.f32 %v3794, %v4030
        %v4081 = vadd.f32 %v3795, %v4071
        %v4082 = vadd.f32 %v3796, %v4073
        %v4083 = vxor.u32 %v4075, 2147483648
        %v4084 = vxor.u32 %v4076, 2147483648
        %v4085 = vxor.u32 %v4077, 2147483648
        %v4086 = vxor.u32 %v4079, 2147483648
        %v4087 = vxor.u32 %v4080, 2147483648
        %v4088 = vxor.u32 %v4081, 2147483648
        %v4089 = vmul.f32 %v4083, 1.442695
        %v4090 = vpow.pop %v4089
        %v4091 = vmul.f32 %v4084, 1.442695
        %v4092 = vpow.pop %v4091
        %v4093 = vmul.f32 %v4085, 1.442695
        %v4094 = vpow.pop %v4093
        %v4095 = vmul.f32 %v4086, 1.442695
        %v4096 = vpow.pop %v4095
        %v4097 = vmul.f32 %v4087, 1.442695
        %v4098 = vpow.pop %v4097
        %v4099 = vmul.f32 %v4088, 1.442695
        %v4100 = vpow.pop %v4099
        %v4101 = vadd.f32 %v4090, 1.0
        %v4102 = vadd.f32 %v4092, 1.0
        %v4103 = vadd.f32 %v4094, 1.0
        %v4104 = vadd.f32 %v4096, 1.0
        %v4105 = vadd.f32 %v4098, 1.0
        %v4106 = vadd.f32 %v4100, 1.0
        %v4107 = vrcp.pop %v4101
        %v4108 = vmul.f32 1.0, %v4107
        %v4109 = vrcp.pop %v4102
        %v4110 = vmul.f32 1.0, %v4109
        %v4111 = vrcp.pop %v4103
        %v4112 = vmul.f32 1.0, %v4111
        %v4113 = vrcp.pop %v4104
        %v4114 = vmul.f32 1.0, %v4113
        %v4115 = vrcp.pop %v4105
        %v4116 = vmul.f32 1.0, %v4115
        %v4117 = vrcp.pop %v4106
        %v4118 = vmul.f32 1.0, %v4117
        %v4119 = vtanh.pop %v4078
        %v4120 = vtanh.pop %v4082
        %v4121 = vmul.f32 %v4110, %v3773
        %v4122 = vmul.f32 %v4116, %v3774
        %v4123 = vmul.f32 %v4108, %v4119
        %v4124 = vmul.f32 %v4114, %v4120
        %v4125 = vadd.f32 %v4121, %v4123
        %v4126 = vadd.f32 %v4122, %v4124
        %v4127 = vtanh.pop %v4125
        %v4128 = vtanh.pop %v4126
        %v4129 = vmul.f32 %v4112, %v4127
        %v4130 = vmul.f32 %v4118, %v4128
        %v4131 = vpack.c.bf16 %v4130, %v4129
        %v4133 = vunpack.c.l.b16 %v4131
        %v4134 = vunpack.c.h.b16 %v4131
        %v4135 = vpack.c.b16 %v4133, %v4133
        %v4136 = vpack.c.b16 %v4134, %v4134
        %4139 = vst [vmem:[#allocation3 + $0x18] sm:$0xf] %v4135
        %4140 = vst [vmem:[#allocation3 + $0x1c] sm:$0xf] %v4136
        %4141 = vst [vmem:[%s2726] sm:$0xff] %v4129
        %4142 = vst [vmem:[%s2726 + $0x8] sm:$0xff] %v4130
        %4143 = vst [vmem:[%s2729] sm:$0xff] %v4125
        %4144 = vst [vmem:[%s2729 + $0x8] sm:$0xff] %v4126
        %p4145 = scmp.eq.s32.totalorder %s25, 1
        // Predicated region
        $region89: #{residual_lstm_forward.1} parent=63 // pred_check
          %p4146 = pneg %p4145
        $region90: #{residual_lstm_forward.1} parent=63 // pred_check_branch
          %4148 = sbr.rel (%p4146) target = $region92
        $region91: #{residual_lstm_forward.1} parent=63 // pred_region
          %v4149 = vld [vmem:[%s445 + $0x18] sm:$0xf]
          %v4150 = vld [vmem:[%s445 + $0x1c] sm:$0xf]
          %v4151 = vld [vmem:[%s7] sm:$0xf]
          %v4152 = vld [vmem:[%s7 + $0x4] sm:$0xf]
          %v4153 = vld [vmem:[%s7 + $0x8] sm:$0xf]
          %v4154 = vld [vmem:[%s7 + $0xc] sm:$0xf]
          %v4155 = vld [vmem:[%s7 + $0x10] sm:$0xf]
          %v4156 = vld [vmem:[%s7 + $0x14] sm:$0xf]
          %v4157 = vld [vmem:[%s7 + $0x18] sm:$0xf]
          %v4158 = vld [vmem:[%s7 + $0x1c] sm:$0xf]
          %v4159 = vld [vmem:[%s7 + $0x20] sm:$0xf]
          %v4160 = vld [vmem:[%s7 + $0x24] sm:$0xf]
          %v4161 = vld [vmem:[%s7 + $0x28] sm:$0xf]
          %v4162 = vld [vmem:[%s7 + $0x2c] sm:$0xf]
          %v4163 = vld [vmem:[%s7 + $0x30] sm:$0xf]
          %v4164 = vld [vmem:[%s7 + $0x34] sm:$0xf]
          %v4165 = vld [vmem:[%s7 + $0x38] sm:$0xf]
          %v4166 = vld [vmem:[%s7 + $0x3c] sm:$0xf]
          %v4169 = vunpack.c.l.b16 %v4149
          %v4170 = vunpack.c.l.b16 %v4150
          %v4171 = vpack.c.b16 %v4170, %v4169
          %v4189 = vunpack.c.l.b16 %v4151
          %v4190 = vunpack.c.l.b16 %v4152
          %v4191 = vunpack.c.l.b16 %v4153
          %v4192 = vunpack.c.l.b16 %v4154
          %v4193 = vunpack.c.l.b16 %v4155
          %v4194 = vunpack.c.l.b16 %v4156
          %v4195 = vunpack.c.l.b16 %v4157
          %v4196 = vunpack.c.l.b16 %v4158
          %v4197 = vunpack.c.l.b16 %v4159
          %v4198 = vunpack.c.l.b16 %v4160
          %v4199 = vunpack.c.l.b16 %v4161
          %v4200 = vunpack.c.l.b16 %v4162
          %v4201 = vunpack.c.l.b16 %v4163
          %v4202 = vunpack.c.l.b16 %v4164
          %v4203 = vunpack.c.l.b16 %v4165
          %v4204 = vunpack.c.l.b16 %v4166
          %v4205 = vpack.c.b16 %v4190, %v4189
          %v4206 = vpack.c.b16 %v4192, %v4191
          %v4207 = vpack.c.b16 %v4194, %v4193
          %v4208 = vpack.c.b16 %v4196, %v4195
          %v4209 = vpack.c.b16 %v4198, %v4197
          %v4210 = vpack.c.b16 %v4200, %v4199
          %v4211 = vpack.c.b16 %v4202, %v4201
          %v4212 = vpack.c.b16 %v4204, %v4203
          %4221 = vmatprep.subr.bf16.mxu0 0
          %4222 = vmatpush1.bf16.msra.mxu0 %v4212
          %4223 = vmatprep.subr.bf16.mxu0 0
          %4224 = vmatpush1.bf16.msra.mxu0 %v4211
          %4225 = vmatprep.subr.bf16.mxu0 0
          %4226 = vmatpush1.bf16.msra.mxu0 %v4210
          %4227 = vmatprep.subr.bf16.mxu0 0
          %4228 = vmatpush1.bf16.msra.mxu0 %v4209
          %4229 = vmatprep.subr.bf16.mxu0 0
          %4230 = vmatpush1.bf16.msra.mxu0 %v4208
          %4231 = vmatprep.subr.bf16.mxu0 0
          %4232 = vmatpush1.bf16.msra.mxu0 %v4207
          %4233 = vmatprep.subr.bf16.mxu0 0
          %4234 = vmatpush1.bf16.msra.mxu0 %v4206
          %4235 = vmatprep.subr.bf16.mxu0 0
          %4236 = vmatpush1.bf16.msra.mxu0 %v4205
          %4237 = vmatprep.subr.bf16.mxu0 0
          %4238 = vmatpush2.bf16.msra.mxu0 0
          %4239 = vmatprep.subr.bf16.mxu0 0
          %4240 = vmatpush2.bf16.msra.mxu0 0
          %4241 = vmatprep.subr.bf16.mxu0 0
          %4242 = vmatpush2.bf16.msra.mxu0 0
          %4243 = vmatprep.subr.bf16.mxu0 0
          %4244 = vmatpush2.bf16.msra.mxu0 0
          %4245 = vmatprep.subr.bf16.mxu0 0
          %4246 = vmatpush2.bf16.msra.mxu0 0
          %4247 = vmatprep.subr.bf16.mxu0 0
          %4248 = vmatpush2.bf16.msra.mxu0 0
          %4249 = vmatprep.subr.bf16.mxu0 0
          %4250 = vmatpush2.bf16.msra.mxu0 0
          %4251 = vmatprep.subr.bf16.mxu0 0
          %4252 = vmatpush2.bf16.msra.mxu0 0
          %4253 = vmatprep.mubr.bf16.mxu0 0
          %4254 = vmatmul.mubr.bf16.gmra.mxu0 %v4171
          %v4255 = vpop.f32.mrf.mxu0
          %v4256 = vadd.f32 0.0, %v4255
          %v4257 = vpop.f32.mrf.mxu0
          %v4258 = vpop.f32.mrf.mxu0
          %v4259 = vadd.f32 0.0, %v4258
          %v4260 = vpop.f32.mrf.mxu0
          %4261 = vdwg.mxu0
          %v4262 = vadd.f32 %v4129, %v4256
          %v4263 = vadd.f32 %v4130, %v4259
          %v4264 = vld [vmem:[%s8] sm:$0x1]
          %v4266 = vlaneseq
          %v4267 = vshrl.u32 %v4266, 7
          %v4268 = vsub.s32 0, %v4267
          %v4269 = vrot.slane %v4264, %v4268
          %v4271 = vadd.f32 %v4262, %v4269
          %v4272 = vadd.f32 %v4263, %v4269
          %v4273 = vpack.c.bf16 %v4272, %v4271
          %v4274 = vld [vmem:[#allocation12] sm:$0xf]
          %v4275 = vld [vmem:[#allocation12 + $0x4] sm:$0xf]
          %v4276 = vld [vmem:[#allocation12 + $0x8] sm:$0xf]
          %v4277 = vld [vmem:[#allocation12 + $0xc] sm:$0xf]
          %v4278 = vld [vmem:[#allocation12 + $0x10] sm:$0xf]
          %v4279 = vld [vmem:[#allocation12 + $0x14] sm:$0xf]
          %v4280 = vld [vmem:[#allocation12 + $0x18] sm:$0xf]
          %v4281 = vld [vmem:[#allocation12 + $0x1c] sm:$0xf]
          %v4282 = vld [vmem:[#allocation12 + $0x20] sm:$0xf]
          %v4283 = vld [vmem:[#allocation12 + $0x24] sm:$0xf]
          %v4284 = vld [vmem:[#allocation12 + $0x28] sm:$0xf]
          %v4285 = vld [vmem:[#allocation12 + $0x2c] sm:$0xf]
          %v4286 = vld [vmem:[#allocation12 + $0x30] sm:$0xf]
          %v4287 = vld [vmem:[#allocation12 + $0x34] sm:$0xf]
          %v4288 = vld [vmem:[#allocation12 + $0x38] sm:$0xf]
          %v4289 = vld [vmem:[#allocation12 + $0x3c] sm:$0xf]
          %v4290 = vld [vmem:[%s10] sm:$0x1]
          %v4292 = vlaneseq
          %v4293 = vshrl.u32 %v4292, 7
          %v4294 = vsub.s32 0, %v4293
          %v4295 = vrot.slane %v4290, %v4294
          %v4313 = vunpack.c.l.b16 %v4274
          %v4314 = vunpack.c.l.b16 %v4275
          %v4315 = vunpack.c.l.b16 %v4276
          %v4316 = vunpack.c.l.b16 %v4277
          %v4317 = vunpack.c.l.b16 %v4278
          %v4318 = vunpack.c.l.b16 %v4279
          %v4319 = vunpack.c.l.b16 %v4280
          %v4320 = vunpack.c.l.b16 %v4281
          %v4321 = vunpack.c.l.b16 %v4282
          %v4322 = vunpack.c.l.b16 %v4283
          %v4323 = vunpack.c.l.b16 %v4284
          %v4324 = vunpack.c.l.b16 %v4285
          %v4325 = vunpack.c.l.b16 %v4286
          %v4326 = vunpack.c.l.b16 %v4287
          %v4327 = vunpack.c.l.b16 %v4288
          %v4328 = vunpack.c.l.b16 %v4289
          %v4329 = vpack.c.b16 %v4314, %v4313
          %v4330 = vpack.c.b16 %v4316, %v4315
          %v4331 = vpack.c.b16 %v4318, %v4317
          %v4332 = vpack.c.b16 %v4320, %v4319
          %v4333 = vpack.c.b16 %v4322, %v4321
          %v4334 = vpack.c.b16 %v4324, %v4323
          %v4335 = vpack.c.b16 %v4326, %v4325
          %v4336 = vpack.c.b16 %v4328, %v4327
          %4345 = vmatprep.subr.bf16.mxu0 0
          %4346 = vmatpush1.bf16.msra.mxu0 %v4336
          %4347 = vmatprep.subr.bf16.mxu0 0
          %4348 = vmatpush1.bf16.msra.mxu0 %v4335
          %4349 = vmatprep.subr.bf16.mxu0 0
          %4350 = vmatpush1.bf16.msra.mxu0 %v4334
          %4351 = vmatprep.subr.bf16.mxu0 0
          %4352 = vmatpush1.bf16.msra.mxu0 %v4333
          %4353 = vmatprep.subr.bf16.mxu0 0
          %4354 = vmatpush1.bf16.msra.mxu0 %v4332
          %4355 = vmatprep.subr.bf16.mxu0 0
          %4356 = vmatpush1.bf16.msra.mxu0 %v4331
          %4357 = vmatprep.subr.bf16.mxu0 0
          %4358 = vmatpush1.bf16.msra.mxu0 %v4330
          %4359 = vmatprep.subr.bf16.mxu0 0
          %4360 = vmatpush1.bf16.msra.mxu0 %v4329
          %4361 = vmatprep.subr.bf16.mxu0 0
          %4362 = vmatpush2.bf16.msra.mxu0 0
          %4363 = vmatprep.subr.bf16.mxu0 0
          %4364 = vmatpush2.bf16.msra.mxu0 0
          %4365 = vmatprep.subr.bf16.mxu0 0
          %4366 = vmatpush2.bf16.msra.mxu0 0
          %4367 = vmatprep.subr.bf16.mxu0 0
          %4368 = vmatpush2.bf16.msra.mxu0 0
          %4369 = vmatprep.subr.bf16.mxu0 0
          %4370 = vmatpush2.bf16.msra.mxu0 0
          %4371 = vmatprep.subr.bf16.mxu0 0
          %4372 = vmatpush2.bf16.msra.mxu0 0
          %4373 = vmatprep.subr.bf16.mxu0 0
          %4374 = vmatpush2.bf16.msra.mxu0 0
          %4375 = vmatprep.subr.bf16.mxu0 0
          %4376 = vmatpush2.bf16.msra.mxu0 0
          %4377 = vmatprep.mubr.bf16.mxu0 0
          %4378 = vmatmul.mubr.bf16.gmra.mxu0 %v4273
          %v4379 = vpop.f32.mrf.mxu0
          %v4380 = vadd.f32 %v4295, %v4379
          %v4381 = vpop.f32.mrf.mxu0
          %v4382 = vpop.f32.mrf.mxu0
          %v4383 = vadd.f32 %v4295, %v4382
          %v4384 = vpop.f32.mrf.mxu0
          %4385 = vdwg.mxu0
          %4386 = vst [vmem:[%s11] sm:$0xff] %v4380
          %4387 = vst [vmem:[%s11 + $0x8] sm:$0xff] %v4383
        $region92: #{residual_lstm_forward.1} parent=63 // pred_fallthru
          _
        // Predicated region
        $region93: #{residual_lstm_forward.1} parent=63 // pred_check
          %p4388 = pneg %p274
        $region94: #{residual_lstm_forward.1} parent=63 // pred_check_branch
          %4390 = sbr.rel (%p4388) target = $region96
        $region95: #{residual_lstm_forward.1} parent=63 // pred_region
          _
        $region96: #{residual_lstm_forward.1} parent=63 // pred_fallthru
          _
        // Predicated region
        $region97: #{residual_lstm_forward.1} parent=63 // pred_check
          %p4391 = pneg %p274
        $region98: #{residual_lstm_forward.1} parent=63 // pred_check_branch
          %4393 = sbr.rel (%p4391) target = $region100
        $region99: #{residual_lstm_forward.1} parent=63 // pred_region
          _
        $region100: #{residual_lstm_forward.1} parent=63 // pred_fallthru
          _
      $region64: #{residual_lstm_forward.1} parent=5 // pred_fallthru
        _
      %p4394 = scmp.le.s32.totalorder 2, %s20
      // Predicated region
      $region101: #{residual_lstm_forward.1} parent=5 // pred_check
        %p4395 = pneg %p4394
      $region102: #{residual_lstm_forward.1} parent=5 // pred_check_branch
        %4397 = sbr.rel (%p4395) target = $region104
      $region103: #{residual_lstm_forward.1} parent=5 // pred_region
        %s4398 = ssub.s32 %s20, 2
      $region104: #{residual_lstm_forward.1} parent=5 // pred_fallthru
        _
    $region6: #{residual_lstm_forward.1} parent=1 // loop_footer
      %s24 = sadd.s32 1, %s20
    $region7: #{residual_lstm_forward.1} parent=1 // loop_footer_branch
      %19 = sbr.rel target = $region3
    $region8: #{residual_lstm_forward.1} parent=1 // loop_exit
      _
    %4399 = vsyncpa [#allocation6], 1
    %s4400 = scalar_lea.sflag [#allocation6], 1
    %4401 = vsyncpa %s4400, 1
    %4402 = vsyncpa [#allocation8], 1
    %4403 = vsyncpa [#allocation11], 1

</llo_original>
